<compile_context>
chip_gen: v5e
topology: v5e:2x2
jax: 0.10.0
libtpu: 0.0.40
codegen_flags: <defaults>
</compile_context>

<pallas_src>
import functools

import jax
import jax.numpy as jnp
from jax.experimental import pallas as pl
from jax.experimental.pallas import tpu as pltpu

EPS = 1e-5


# ----------------------------- stage 1 ---------------------------------------
def _stage1_kernel(xpad_ref, w1_ref, w3_ref, conv_ref, stats_ref, pbuf_ref, *,
                   branch_is_3x3, taps3, th, W, Cin, cbr, pad):
    """Dilated-conv branches + per-tile BN / GAP partial statistics.

    xpad_ref : (1, Hp, Wp, Cin) bf16   one zero-padded batch sample (resident per b)
    w1_ref   : (n1, Cin, planes) bf16  1x1 branch weights
    w3_ref   : (n3, 9*Cin, planes) bf16  3x3 dilated branch weights (im2col layout)
    conv_ref : (1, th, W, cbr) f32     pre-BN branch outputs (rate-major lanes)
    stats_ref: (1, 1, 8, cbr) f32      rows: [sum, centered M2, x-sum (padded), 0..]
    pbuf_ref : (th, W, 9*Cin) bf16     per-rate im2col scratch (reused across rates)
    """
    ht = pl.program_id(1)
    row0 = pl.multiple_of(ht * th, th)
    n = th * W

    # rate-1 / GAP window: the unpadded center slice of this tile.
    center = xpad_ref[:, pl.ds(row0 + pad, th), pad:pad + W, :].reshape(n, Cin)
    xsum = jnp.sum(center.astype(jnp.float32), axis=0, keepdims=True)     # (1, Cin)

    outs = []
    i1 = 0
    i3 = 0
    for is3 in branch_is_3x3:
        if not is3:
            # 1x1 branch: no im2col, direct MXU dot on the center window.
            outs.append(jnp.dot(center, w1_ref[i1],
                                preferred_element_type=jnp.float32))
            i1 += 1
        else:
            # 3x3 dilated branch: gather 9 shifted windows into the reused
            # bf16 scratch, then ONE dot with K = 9*Cin (no structural zeros).
            for t, (hs, ws) in enumerate(taps3[i3]):
                pbuf_ref[:, :, t * Cin:(t + 1) * Cin] = (
                    xpad_ref[:, pl.ds(row0 + hs, th), ws:ws + W, :]
                    .reshape(th, W, Cin))
            patches = pbuf_ref[...].reshape(n, 9 * Cin)
            outs.append(jnp.dot(patches, w3_ref[i3],
                                preferred_element_type=jnp.float32))
            i3 += 1

    conv = jnp.concatenate(outs, axis=-1) if len(outs) > 1 else outs[0]   # (n, cbr)
    conv_ref[...] = conv.reshape(1, th, W, cbr)

    # per-tile centered statistics (combined wrapper-side via Chan's formula
    # -> avoids E[x^2]-E[x]^2 cancellation for large pixel counts).
    s1 = jnp.sum(conv, axis=0, keepdims=True)
    d = conv - s1 * (1.0 / n)
    m2 = jnp.sum(d * d, axis=0, keepdims=True)
    if cbr > Cin:
        xsum = jnp.concatenate(
            [xsum, jnp.zeros((1, cbr - Cin), jnp.float32)], axis=-1)
    stats_ref[...] = jnp.concatenate(
        [s1, m2, xsum, jnp.zeros((5, cbr), jnp.float32)],
        axis=0).reshape(1, 1, 8, cbr)


# ----------------------------- stage 2 ---------------------------------------
def _stage2_kernel(conv_ref, sA_ref, hA_ref, wfin_ref, z_ref, stats_ref, *,
                   th, W, cbr, planes):
    """Folded BN1+ReLU+attention -> fuse 1x1 matmul + per-tile z statistics.

    relu(BN(conv)) * att == relu(conv * (att*scale1) + att*shift1)  since att > 0,
    so the per-batch attention is pre-folded into (scaleA, shiftA).
    """
    b = pl.program_id(0)
    n = th * W
    conv = conv_ref[...].reshape(n, cbr)
    scale = sA_ref[pl.ds(b, 1), :]                              # (1, cbr)
    shift = hA_ref[pl.ds(b, 1), :]
    y = jnp.maximum(conv * scale + shift, 0.0)
    z = jnp.dot(y.astype(jnp.bfloat16), wfin_ref[...],
                preferred_element_type=jnp.float32)             # (n, planes)
    z_ref[...] = z.reshape(1, th, W, planes)

    s1 = jnp.sum(z, axis=0, keepdims=True)
    d = z - s1 * (1.0 / n)
    m2 = jnp.sum(d * d, axis=0, keepdims=True)
    stats_ref[...] = jnp.concatenate(
        [s1, m2, jnp.zeros((6, planes), jnp.float32)],
        axis=0).reshape(1, 1, 8, planes)


# ----------------------------- stage 3 ---------------------------------------
def _stage3_kernel(z_ref, s_ref, h_ref, out_ref):
    """Fuse-BN (folded) + ReLU, lane-folded (W*planes) elementwise writeback."""
    out_ref[...] = jnp.maximum(
        z_ref[...] * s_ref[...][None] + h_ref[...][None], 0.0)


# ----------------------------- wrapper ---------------------------------------
def _vmem_limit_bytes():
    cap = 64 * 1024 * 1024                      # safe floor (v7x physical VMEM)
    try:
        cap = int(pltpu.get_tpu_info().vmem_capacity_bytes)
    except Exception:
        pass
    # headroom for double-buffering + compiler scratch
    return int(min(cap * 3 // 4, 100 * 1024 * 1024))


def a2sp_forward(x_nchw, params, rates, *, tile_h=8):
    """NCHW in, NCHW out (matches the torch module, training-mode BatchNorm)."""
    B, Cin, H, W = x_nchw.shape
    planes = params["gamma_fin"].shape[-1]
    nrates = len(rates)
    cbr = planes * nrates
    # torch's `out * v_attention` broadcast requires planes == inplanes
    assert planes == Cin, "A2SP forward needs planes == inplanes"
    pad = max(rates)

    th = tile_h if (H % tile_h == 0) else H
    HT = H // th
    M = B * H * W
    n_tile = th * W
    Hp, Wp = H + 2 * pad, W + 2 * pad
    WP = W * planes

    # layout plumbing (free): NCHW -> NHWC bf16, spatial zero-pad once.
    x = jnp.transpose(x_nchw, (0, 2, 3, 1)).astype(jnp.bfloat16)
    xpad = jnp.pad(x, ((0, 0), (pad, pad), (pad, pad), (0, 0)))

    # per-rate tap offsets (relative to output row 0 in padded coordinates).
    branch_is_3x3 = tuple(r != 1 for r in rates)
    taps3 = tuple(
        tuple((pad + (ki - 1) * r, pad + (kj - 1) * r)
              for ki in range(3) for kj in range(3))
        for r in rates if r != 1)
    w1_list = [params["w_dil_raw"][i].reshape(Cin, planes)
               for i, r in enumerate(rates) if r == 1]
    w3_list = [params["w_dil_raw"][i].reshape(9 * Cin, planes)
               for i, r in enumerate(rates) if r != 1]
    w1stack = (jnp.stack(w1_list).astype(jnp.bfloat16) if w1_list
               else jnp.zeros((1, Cin, planes), jnp.bfloat16))
    w3stack = (jnp.stack(w3_list).astype(jnp.bfloat16) if w3_list
               else jnp.zeros((1, 9 * Cin, planes), jnp.bfloat16))
    wfin = params["w_fin"].astype(jnp.bfloat16)

    cparams = pltpu.CompilerParams(
        dimension_semantics=("parallel", "parallel"),
        vmem_limit_bytes=_vmem_limit_bytes())

    def _full(arr):                                  # small resident parameters
        zeros = (0,) * arr.ndim
        return pl.BlockSpec(arr.shape, lambda b, h: zeros)

    # -------------------- stage 1: branch convs + partial stats ----------------
    flops1 = 2 * M * Cin * planes * len(w1_list) \
        + 2 * M * 9 * Cin * planes * len(w3_list) + 6 * M * cbr
    bytes1 = (xpad.size * 2 + (w1stack.size + w3stack.size) * 2
              + (B * H * W * cbr + B * HT * 8 * cbr) * 4)
    conv, stats1 = pl.pallas_call(
        functools.partial(_stage1_kernel, branch_is_3x3=branch_is_3x3,
                          taps3=taps3, th=th, W=W, Cin=Cin, cbr=cbr, pad=pad),
        grid=(B, HT),
        in_specs=[
            pl.BlockSpec((1, Hp, Wp, Cin), lambda b, h: (b, 0, 0, 0)),
            _full(w1stack), _full(w3stack),
        ],
        out_specs=(
            pl.BlockSpec((1, th, W, cbr), lambda b, h: (b, h, 0, 0)),
            pl.BlockSpec((1, 1, 8, cbr), lambda b, h: (b, h, 0, 0)),
        ),
        out_shape=(
            jax.ShapeDtypeStruct((B, H, W, cbr), jnp.float32),
            jax.ShapeDtypeStruct((B, HT, 8, cbr), jnp.float32),
        ),
        scratch_shapes=[pltpu.VMEM((th, W, 9 * Cin), jnp.bfloat16)],
        compiler_params=cparams,
        cost_estimate=pl.CostEstimate(flops=int(flops1), transcendentals=0,
                                      bytes_accessed=int(bytes1)),
    )(xpad, w1stack, w3stack)

    # tiny wrapper glue: combine partial stats (Chan), fold BN1 + GAP attention.
    s1 = stats1[:, :, 0, :]
    m2 = stats1[:, :, 1, :]
    xs = stats1[:, :, 2, :Cin]
    mean1 = jnp.sum(s1, axis=(0, 1)) / M                        # (cbr,)
    tmean = s1 / n_tile
    var1 = (jnp.sum(m2, axis=(0, 1))
            + jnp.sum(n_tile * (tmean - mean1) ** 2, axis=(0, 1))) / M
    gamma_d = params["gamma_dil"].reshape(cbr).astype(jnp.float32)
    beta_d = params["beta_dil"].reshape(cbr).astype(jnp.float32)
    scale1 = gamma_d * jax.lax.rsqrt(var1 + EPS)
    shift1 = beta_d - mean1 * scale1

    gap = jnp.sum(xs, axis=1) / (H * W)                         # (B, Cin)
    att = jax.nn.sigmoid(gap @ params["w_gap"].astype(jnp.float32))   # (B, cbr)
    scaleA = att * scale1[None, :]
    shiftA = att * shift1[None, :]

    # ------------- stage 2: BN1+ReLU+attention -> fuse matmul + z stats --------
    flops2 = 2 * M * cbr * planes + 6 * M * cbr
    bytes2 = (B * H * W * cbr * 4 + wfin.size * 2
              + (B * H * W * planes + B * HT * 8 * planes) * 4)
    z, stats2 = pl.pallas_call(
        functools.partial(_stage2_kernel, th=th, W=W, cbr=cbr, planes=planes),
        grid=(B, HT),
        in_specs=[
            pl.BlockSpec((1, th, W, cbr), lambda b, h: (b, h, 0, 0)),
            _full(scaleA), _full(shiftA), _full(wfin),
        ],
        out_specs=(
            pl.BlockSpec((1, th, W, planes), lambda b, h: (b, h, 0, 0)),
            pl.BlockSpec((1, 1, 8, planes), lambda b, h: (b, h, 0, 0)),
        ),
        out_shape=(
            jax.ShapeDtypeStruct((B, H, W, planes), jnp.float32),
            jax.ShapeDtypeStruct((B, HT, 8, planes), jnp.float32),
        ),
        compiler_params=cparams,
        cost_estimate=pl.CostEstimate(flops=int(flops2), transcendentals=0,
                                      bytes_accessed=int(bytes2)),
    )(conv, scaleA, shiftA, wfin)

    s1z = stats2[:, :, 0, :]
    m2z = stats2[:, :, 1, :]
    mean2 = jnp.sum(s1z, axis=(0, 1)) / M
    tmean2 = s1z / n_tile
    var2 = (jnp.sum(m2z, axis=(0, 1))
            + jnp.sum(n_tile * (tmean2 - mean2) ** 2, axis=(0, 1))) / M
    gamma_f = params["gamma_fin"].reshape(planes).astype(jnp.float32)
    beta_f = params["beta_fin"].reshape(planes).astype(jnp.float32)
    scale2 = gamma_f * jax.lax.rsqrt(var2 + EPS)
    shift2 = beta_f - mean2 * scale2
    # lane-folded (W*planes) broadcast vectors for the final normalize pass.
    scale2w = jnp.tile(scale2, (W,)).reshape(1, WP)
    shift2w = jnp.tile(shift2, (W,)).reshape(1, WP)

    # ------------------ stage 3: fuse BN + ReLU, lane-dense --------------------
    # (B,H,W,planes) -> (B,H,W*planes) is a free wrapper-side reshape of the HBM
    # slab; the kernel then does full-width loads/stores instead of planes-wide
    # masked partial stores (the biggest single store-path lever).
    z2d = z.reshape(B, H, WP)
    out3 = pl.pallas_call(
        _stage3_kernel,
        grid=(B, HT),
        in_specs=[
            pl.BlockSpec((1, th, WP), lambda b, h: (b, h, 0)),
            _full(scale2w), _full(shift2w),
        ],
        out_specs=pl.BlockSpec((1, th, WP), lambda b, h: (b, h, 0)),
        out_shape=jax.ShapeDtypeStruct((B, H, WP), jnp.float32),
        compiler_params=cparams,
        cost_estimate=pl.CostEstimate(flops=int(2 * M * planes), transcendentals=0,
                                      bytes_accessed=int(2 * B * H * WP * 4)),
    )(z2d, scale2w, shift2w)

    # layout plumbing (free): (B,H,W*planes) -> NCHW
    return jnp.transpose(out3.reshape(B, H, W, planes), (0, 3, 1, 2))


# ------------------------- deterministic parameter init -------------------------
def init_params(key, Cin, planes, rates):
    nrates = len(rates)
    ks = jax.random.split(key, 6)

    w_dil_raw = []   # HWIO weights, as the torch module would hold them
    for i, r in enumerate(rates):
        ki = jax.random.fold_in(ks[0], i)
        if r == 1:
            w_dil_raw.append(0.3 * jax.random.normal(ki, (1, 1, Cin, planes), jnp.float32))
        else:
            w_dil_raw.append(0.3 * jax.random.normal(ki, (3, 3, Cin, planes), jnp.float32))

    gamma_dil = 1.0 + 0.1 * jax.random.normal(ks[1], (nrates, planes), jnp.float32)
    beta_dil = 0.1 * jax.random.normal(ks[2], (nrates, planes), jnp.float32)
    w_gap = 0.3 * jax.random.normal(ks[3], (Cin, Cin * nrates), jnp.float32)
    w_fin = 0.3 * jax.random.normal(ks[4], (planes * nrates, planes), jnp.float32)
    gamma_fin = (1.0 + 0.1 * jax.random.normal(ks[5], (planes,), jnp.float32)).reshape(1, planes)
    beta_fin = jnp.zeros((1, planes), jnp.float32)

    return dict(w_dil_raw=w_dil_raw, gamma_dil=gamma_dil, beta_dil=beta_dil,
                w_gap=w_gap, w_fin=w_fin, gamma_fin=gamma_fin, beta_fin=beta_fin)


# ------------------------- pure-JAX reference (for checking) -------------------------
def a2sp_reference(x_nchw, params, rates):
    x = jnp.transpose(x_nchw, (0, 2, 3, 1)).astype(jnp.float32)   # NHWC

    def bn_relu(v, gamma, beta):
        mu = jnp.mean(v, axis=(0, 1, 2), keepdims=True)
        var = jnp.mean((v - mu) ** 2, axis=(0, 1, 2), keepdims=True)
        return jnp.maximum((v - mu) * jax.lax.rsqrt(var + EPS) * gamma + beta, 0.0)

    dn = ('NHWC', 'HWIO', 'NHWC')
    outs = []
    for i, r in enumerate(rates):
        w = params["w_dil_raw"][i]
        if r == 1:
            c = jax.lax.conv_general_dilated(x, w, (1, 1), [(0, 0), (0, 0)],
                                             dimension_numbers=dn,
                                             precision=jax.lax.Precision.HIGHEST)
        else:
            c = jax.lax.conv_general_dilated(x, w, (1, 1), [(r, r), (r, r)],
                                             rhs_dilation=(r, r),
                                             dimension_numbers=dn,
                                             precision=jax.lax.Precision.HIGHEST)
        outs.append(bn_relu(c, params["gamma_dil"][i], params["beta_dil"][i]))
    out = jnp.concatenate(outs, axis=-1)

    gap = jnp.mean(x, axis=(1, 2))                                 # (B, Cin)
    att = jax.nn.sigmoid(jnp.dot(gap, params["w_gap"],
                                 precision=jax.lax.Precision.HIGHEST))
    y = out * att[:, None, None, :]

    z = jnp.einsum('bhwc,co->bhwo', y, params["w_fin"],
                   precision=jax.lax.Precision.HIGHEST)
    z = bn_relu(z, params["gamma_fin"][0], params["beta_fin"][0])
    return jnp.transpose(z, (0, 3, 1, 2))


if __name__ == "__main__":
    B, Cin, H, W = 2, 4, 16, 16
    planes = 4                  # must equal Cin (required by the torch module's broadcast)
    rates = (1, 2, 4)

    key = jax.random.PRNGKey(0)
    kx, kp = jax.random.split(key)
    x = jax.random.normal(kx, (B, Cin, H, W), jnp.float32)
    params = init_params(kp, Cin, planes, rates)

    out = a2sp_forward(x, params, rates)
    out = jax.block_until_ready(out)

    assert out.shape == (B, planes, H, W)
    ref = a2sp_reference(x, params, rates)
    max_err = float(jnp.max(jnp.abs(out - ref)))
    # bf16 MXU inputs with f32 accumulation; documented precision trade (< 3e-2)
    assert max_err < 3e-2, f"mismatch vs reference: max abs err = {max_err}"

    print("KERNEL_OK")
</pallas_src>

<mosaic_0001>
module attributes {stable_mosaic.version = 11 : i64} {
  func.func @_stage1_kernel(%arg0: i32, %arg1: i32, %arg2: memref<1x24x24x4xbf16, #tpu.memory_space<vmem>>, %arg3: memref<1x4x4xbf16, #tpu.memory_space<vmem>>, %arg4: memref<2x36x4xbf16, #tpu.memory_space<vmem>>, %arg5: memref<1x8x16x12xf32, #tpu.memory_space<vmem>>, %arg6: memref<1x1x8x12xf32, #tpu.memory_space<vmem>>, %arg7: memref<8x16x36xbf16, #tpu.memory_space<vmem>>) attributes {dimension_semantics = [#tpu.dimension_semantics<parallel>, #tpu.dimension_semantics<parallel>], iteration_bounds = array<i64: 2, 2>, scalar_prefetch = 0 : i64, scratch_operands = 1 : i64, tpu.core_type = #tpu.core_type<tc>, window_params = [{transform_indices = @transform_0, window_bounds = array<i64: 1, 24, 24, 4>}, {pipeline_mode = #tpu.pipeline_mode<synchronous>, transform_indices = @transform_1, window_bounds = array<i64: 1, 4, 4>}, {pipeline_mode = #tpu.pipeline_mode<synchronous>, transform_indices = @transform_2, window_bounds = array<i64: 2, 36, 4>}, {transform_indices = @transform_3, window_bounds = array<i64: 1, 8, 16, 12>}, {transform_indices = @transform_4, window_bounds = array<i64: 1, 1, 8, 12>}]} {
    %c8_i32 = arith.constant 8 : i32
    %0 = arith.muli %arg1, %c8_i32 : i32
    %1 = tpu.assume_multiple %0, 8 : i32
    %c4_i32 = arith.constant 4 : i32
    %2 = arith.addi %1, %c4_i32 : i32
    %c0 = arith.constant 0 : index
    %3 = arith.index_cast %2 : i32 to index
    %c4 = arith.constant 4 : index
    %c0_0 = arith.constant 0 : index
    %4 = vector.load %arg2[%c0, %3, %c4, %c0_0] : memref<1x24x24x4xbf16, #tpu.memory_space<vmem>>, vector<1x8x16x4xbf16>
    %5 = vector.shape_cast %4 : vector<1x8x16x4xbf16> to vector<128x4xbf16>
    %6 = arith.extf %5 : vector<128x4xbf16> to vector<128x4xf32>
    %cst = arith.constant dense<0.000000e+00> : vector<4xf32>
    %7 = vector.multi_reduction <add>, %6, %cst [0] : vector<128x4xf32> to vector<4xf32>
    %8 = vector.shape_cast %7 : vector<4xf32> to vector<1x4xf32>
    %c0_1 = arith.constant 0 : index
    %c0_2 = arith.constant 0 : index
    %c0_3 = arith.constant 0 : index
    %9 = vector.load %arg3[%c0_1, %c0_2, %c0_3] : memref<1x4x4xbf16, #tpu.memory_space<vmem>>, vector<1x4x4xbf16>
    %10 = vector.shape_cast %9 : vector<1x4x4xbf16> to vector<4x4xbf16>
    %cst_4 = arith.constant dense<0.000000e+00> : vector<128x4xf32>
    %11 = tpu.matmul %5, %10, %cst_4 {dimension_numbers = #tpu.dot_dimension_numbers<[1], [0], [0], [1], [0, 0, 1, 1], [], []>} : vector<128x4xbf16>, vector<4x4xbf16>, vector<128x4xf32> -> vector<128x4xf32>
    %c2_i32 = arith.constant 2 : i32
    %12 = arith.addi %1, %c2_i32 : i32
    %c0_5 = arith.constant 0 : index
    %13 = arith.index_cast %12 : i32 to index
    %c2 = arith.constant 2 : index
    %c0_6 = arith.constant 0 : index
    %14 = vector.load %arg2[%c0_5, %13, %c2, %c0_6] : memref<1x24x24x4xbf16, #tpu.memory_space<vmem>>, vector<1x8x16x4xbf16>
    %15 = vector.shape_cast %14 : vector<1x8x16x4xbf16> to vector<8x16x4xbf16>
    %c0_7 = arith.constant 0 : index
    %c0_8 = arith.constant 0 : index
    %c0_9 = arith.constant 0 : index
    %16 = vector.load %arg7[%c0_7, %c0_8, %c0_9] : memref<8x16x36xbf16, #tpu.memory_space<vmem>>, vector<8x16x4xbf16>
    tpu.vector_store %arg7[%c0_7, %c0_8, %c0_9], %15 {strides = array<i32>} : memref<8x16x36xbf16, #tpu.memory_space<vmem>>, vector<8x16x4xbf16>,
    %c2_i32_10 = arith.constant 2 : i32
    %17 = arith.addi %1, %c2_i32_10 : i32
    %c0_11 = arith.constant 0 : index
    %18 = arith.index_cast %17 : i32 to index
    %c4_12 = arith.constant 4 : index
    %c0_13 = arith.constant 0 : index
    %19 = vector.load %arg2[%c0_11, %18, %c4_12, %c0_13] : memref<1x24x24x4xbf16, #tpu.memory_space<vmem>>, vector<1x8x16x4xbf16>
    %20 = vector.shape_cast %19 : vector<1x8x16x4xbf16> to vector<8x16x4xbf16>
    %c0_14 = arith.constant 0 : index
    %c0_15 = arith.constant 0 : index
    %c4_16 = arith.constant 4 : index
    %21 = vector.load %arg7[%c0_14, %c0_15, %c4_16] : memref<8x16x36xbf16, #tpu.memory_space<vmem>>, vector<8x16x4xbf16>
    tpu.vector_store %arg7[%c0_14, %c0_15, %c4_16], %20 {strides = array<i32>} : memref<8x16x36xbf16, #tpu.memory_space<vmem>>, vector<8x16x4xbf16>,
    %c2_i32_17 = arith.constant 2 : i32
    %22 = arith.addi %1, %c2_i32_17 : i32
    %c0_18 = arith.constant 0 : index
    %23 = arith.index_cast %22 : i32 to index
    %c6 = arith.constant 6 : index
    %c0_19 = arith.constant 0 : index
    %24 = vector.load %arg2[%c0_18, %23, %c6, %c0_19] : memref<1x24x24x4xbf16, #tpu.memory_space<vmem>>, vector<1x8x16x4xbf16>
    %25 = vector.shape_cast %24 : vector<1x8x16x4xbf16> to vector<8x16x4xbf16>
    %c0_20 = arith.constant 0 : index
    %c0_21 = arith.constant 0 : index
    %c8 = arith.constant 8 : index
    %26 = vector.load %arg7[%c0_20, %c0_21, %c8] : memref<8x16x36xbf16, #tpu.memory_space<vmem>>, vector<8x16x4xbf16>
    tpu.vector_store %arg7[%c0_20, %c0_21, %c8], %25 {strides = array<i32>} : memref<8x16x36xbf16, #tpu.memory_space<vmem>>, vector<8x16x4xbf16>,
    %c4_i32_22 = arith.constant 4 : i32
    %27 = arith.addi %1, %c4_i32_22 : i32
    %c0_23 = arith.constant 0 : index
    %28 = arith.index_cast %27 : i32 to index
    %c2_24 = arith.constant 2 : index
    %c0_25 = arith.constant 0 : index
    %29 = vector.load %arg2[%c0_23, %28, %c2_24, %c0_25] : memref<1x24x24x4xbf16, #tpu.memory_space<vmem>>, vector<1x8x16x4xbf16>
    %30 = vector.shape_cast %29 : vector<1x8x16x4xbf16> to vector<8x16x4xbf16>
    %c0_26 = arith.constant 0 : index
    %c0_27 = arith.constant 0 : index
    %c12 = arith.constant 12 : index
    %31 = vector.load %arg7[%c0_26, %c0_27, %c12] : memref<8x16x36xbf16, #tpu.memory_space<vmem>>, vector<8x16x4xbf16>
    tpu.vector_store %arg7[%c0_26, %c0_27, %c12], %30 {strides = array<i32>} : memref<8x16x36xbf16, #tpu.memory_space<vmem>>, vector<8x16x4xbf16>,
    %c4_i32_28 = arith.constant 4 : i32
    %32 = arith.addi %1, %c4_i32_28 : i32
    %c0_29 = arith.constant 0 : index
    %33 = arith.index_cast %32 : i32 to index
    %c4_30 = arith.constant 4 : index
    %c0_31 = arith.constant 0 : index
    %34 = vector.load %arg2[%c0_29, %33, %c4_30, %c0_31] : memref<1x24x24x4xbf16, #tpu.memory_space<vmem>>, vector<1x8x16x4xbf16>
    %35 = vector.shape_cast %34 : vector<1x8x16x4xbf16> to vector<8x16x4xbf16>
    %c0_32 = arith.constant 0 : index
    %c0_33 = arith.constant 0 : index
    %c16 = arith.constant 16 : index
    %36 = vector.load %arg7[%c0_32, %c0_33, %c16] : memref<8x16x36xbf16, #tpu.memory_space<vmem>>, vector<8x16x4xbf16>
    tpu.vector_store %arg7[%c0_32, %c0_33, %c16], %35 {strides = array<i32>} : memref<8x16x36xbf16, #tpu.memory_space<vmem>>, vector<8x16x4xbf16>,
    %c4_i32_34 = arith.constant 4 : i32
    %37 = arith.addi %1, %c4_i32_34 : i32
    %c0_35 = arith.constant 0 : index
    %38 = arith.index_cast %37 : i32 to index
    %c6_36 = arith.constant 6 : index
    %c0_37 = arith.constant 0 : index
    %39 = vector.load %arg2[%c0_35, %38, %c6_36, %c0_37] : memref<1x24x24x4xbf16, #tpu.memory_space<vmem>>, vector<1x8x16x4xbf16>
    %40 = vector.shape_cast %39 : vector<1x8x16x4xbf16> to vector<8x16x4xbf16>
    %c0_38 = arith.constant 0 : index
    %c0_39 = arith.constant 0 : index
    %c20 = arith.constant 20 : index
    %41 = vector.load %arg7[%c0_38, %c0_39, %c20] : memref<8x16x36xbf16, #tpu.memory_space<vmem>>, vector<8x16x4xbf16>
    tpu.vector_store %arg7[%c0_38, %c0_39, %c20], %40 {strides = array<i32>} : memref<8x16x36xbf16, #tpu.memory_space<vmem>>, vector<8x16x4xbf16>,
    %c6_i32 = arith.constant 6 : i32
    %42 = arith.addi %1, %c6_i32 : i32
    %c0_40 = arith.constant 0 : index
    %43 = arith.index_cast %42 : i32 to index
    %c2_41 = arith.constant 2 : index
    %c0_42 = arith.constant 0 : index
    %44 = vector.load %arg2[%c0_40, %43, %c2_41, %c0_42] : memref<1x24x24x4xbf16, #tpu.memory_space<vmem>>, vector<1x8x16x4xbf16>
    %45 = vector.shape_cast %44 : vector<1x8x16x4xbf16> to vector<8x16x4xbf16>
    %c0_43 = arith.constant 0 : index
    %c0_44 = arith.constant 0 : index
    %c24 = arith.constant 24 : index
    %46 = vector.load %arg7[%c0_43, %c0_44, %c24] : memref<8x16x36xbf16, #tpu.memory_space<vmem>>, vector<8x16x4xbf16>
    tpu.vector_store %arg7[%c0_43, %c0_44, %c24], %45 {strides = array<i32>} : memref<8x16x36xbf16, #tpu.memory_space<vmem>>, vector<8x16x4xbf16>,
    %c6_i32_45 = arith.constant 6 : i32
    %47 = arith.addi %1, %c6_i32_45 : i32
    %c0_46 = arith.constant 0 : index
    %48 = arith.index_cast %47 : i32 to index
    %c4_47 = arith.constant 4 : index
    %c0_48 = arith.constant 0 : index
    %49 = vector.load %arg2[%c0_46, %48, %c4_47, %c0_48] : memref<1x24x24x4xbf16, #tpu.memory_space<vmem>>, vector<1x8x16x4xbf16>
    %50 = vector.shape_cast %49 : vector<1x8x16x4xbf16> to vector<8x16x4xbf16>
    %c0_49 = arith.constant 0 : index
    %c0_50 = arith.constant 0 : index
    %c28 = arith.constant 28 : index
    %51 = vector.load %arg7[%c0_49, %c0_50, %c28] : memref<8x16x36xbf16, #tpu.memory_space<vmem>>, vector<8x16x4xbf16>
    tpu.vector_store %arg7[%c0_49, %c0_50, %c28], %50 {strides = array<i32>} : memref<8x16x36xbf16, #tpu.memory_space<vmem>>, vector<8x16x4xbf16>,
    %c6_i32_51 = arith.constant 6 : i32
    %52 = arith.addi %1, %c6_i32_51 : i32
    %c0_52 = arith.constant 0 : index
    %53 = arith.index_cast %52 : i32 to index
    %c6_53 = arith.constant 6 : index
    %c0_54 = arith.constant 0 : index
    %54 = vector.load %arg2[%c0_52, %53, %c6_53, %c0_54] : memref<1x24x24x4xbf16, #tpu.memory_space<vmem>>, vector<1x8x16x4xbf16>
    %55 = vector.shape_cast %54 : vector<1x8x16x4xbf16> to vector<8x16x4xbf16>
    %c0_55 = arith.constant 0 : index
    %c0_56 = arith.constant 0 : index
    %c32 = arith.constant 32 : index
    %56 = vector.load %arg7[%c0_55, %c0_56, %c32] : memref<8x16x36xbf16, #tpu.memory_space<vmem>>, vector<8x16x4xbf16>
    tpu.vector_store %arg7[%c0_55, %c0_56, %c32], %55 {strides = array<i32>} : memref<8x16x36xbf16, #tpu.memory_space<vmem>>, vector<8x16x4xbf16>,
    %c0_57 = arith.constant 0 : index
    %c0_58 = arith.constant 0 : index
    %c0_59 = arith.constant 0 : index
    %57 = vector.load %arg7[%c0_57, %c0_58, %c0_59] : memref<8x16x36xbf16, #tpu.memory_space<vmem>>, vector<8x16x36xbf16>
    %58 = vector.shape_cast %57 : vector<8x16x36xbf16> to vector<128x36xbf16>
    %c0_60 = arith.constant 0 : index
    %c0_61 = arith.constant 0 : index
    %c0_62 = arith.constant 0 : index
    %59 = vector.load %arg4[%c0_60, %c0_61, %c0_62] : memref<2x36x4xbf16, #tpu.memory_space<vmem>>, vector<1x36x4xbf16>
    %60 = vector.shape_cast %59 : vector<1x36x4xbf16> to vector<36x4xbf16>
    %cst_63 = arith.constant dense<0.000000e+00> : vector<128x4xf32>
    %61 = tpu.matmul %58, %60, %cst_63 {dimension_numbers = #tpu.dot_dimension_numbers<[1], [0], [0], [1], [0, 0, 1, 1], [], []>} : vector<128x36xbf16>, vector<36x4xbf16>, vector<128x4xf32> -> vector<128x4xf32>
    %c0_i32 = arith.constant 0 : i32
    %62 = arith.addi %1, %c0_i32 : i32
    %c0_64 = arith.constant 0 : index
    %63 = arith.index_cast %62 : i32 to index
    %c0_65 = arith.constant 0 : index
    %c0_66 = arith.constant 0 : index
    %64 = vector.load %arg2[%c0_64, %63, %c0_65, %c0_66] : memref<1x24x24x4xbf16, #tpu.memory_space<vmem>>, vector<1x8x16x4xbf16>
    %65 = vector.shape_cast %64 : vector<1x8x16x4xbf16> to vector<8x16x4xbf16>
    %c0_67 = arith.constant 0 : index
    %c0_68 = arith.constant 0 : index
    %c0_69 = arith.constant 0 : index
    %66 = vector.load %arg7[%c0_67, %c0_68, %c0_69] : memref<8x16x36xbf16, #tpu.memory_space<vmem>>, vector<8x16x4xbf16>
    tpu.vector_store %arg7[%c0_67, %c0_68, %c0_69], %65 {strides = array<i32>} : memref<8x16x36xbf16, #tpu.memory_space<vmem>>, vector<8x16x4xbf16>,
    %c0_i32_70 = arith.constant 0 : i32
    %67 = arith.addi %1, %c0_i32_70 : i32
    %c0_71 = arith.constant 0 : index
    %68 = arith.index_cast %67 : i32 to index
    %c4_72 = arith.constant 4 : index
    %c0_73 = arith.constant 0 : index
    %69 = vector.load %arg2[%c0_71, %68, %c4_72, %c0_73] : memref<1x24x24x4xbf16, #tpu.memory_space<vmem>>, vector<1x8x16x4xbf16>
    %70 = vector.shape_cast %69 : vector<1x8x16x4xbf16> to vector<8x16x4xbf16>
    %c0_74 = arith.constant 0 : index
    %c0_75 = arith.constant 0 : index
    %c4_76 = arith.constant 4 : index
    %71 = vector.load %arg7[%c0_74, %c0_75, %c4_76] : memref<8x16x36xbf16, #tpu.memory_space<vmem>>, vector<8x16x4xbf16>
    tpu.vector_store %arg7[%c0_74, %c0_75, %c4_76], %70 {strides = array<i32>} : memref<8x16x36xbf16, #tpu.memory_space<vmem>>, vector<8x16x4xbf16>,
    %c0_i32_77 = arith.constant 0 : i32
    %72 = arith.addi %1, %c0_i32_77 : i32
    %c0_78 = arith.constant 0 : index
    %73 = arith.index_cast %72 : i32 to index
    %c8_79 = arith.constant 8 : index
    %c0_80 = arith.constant 0 : index
    %74 = vector.load %arg2[%c0_78, %73, %c8_79, %c0_80] : memref<1x24x24x4xbf16, #tpu.memory_space<vmem>>, vector<1x8x16x4xbf16>
    %75 = vector.shape_cast %74 : vector<1x8x16x4xbf16> to vector<8x16x4xbf16>
    %c0_81 = arith.constant 0 : index
    %c0_82 = arith.constant 0 : index
    %c8_83 = arith.constant 8 : index
    %76 = vector.load %arg7[%c0_81, %c0_82, %c8_83] : memref<8x16x36xbf16, #tpu.memory_space<vmem>>, vector<8x16x4xbf16>
    tpu.vector_store %arg7[%c0_81, %c0_82, %c8_83], %75 {strides = array<i32>} : memref<8x16x36xbf16, #tpu.memory_space<vmem>>, vector<8x16x4xbf16>,
    %c4_i32_84 = arith.constant 4 : i32
    %77 = arith.addi %1, %c4_i32_84 : i32
    %c0_85 = arith.constant 0 : index
    %78 = arith.index_cast %77 : i32 to index
    %c0_86 = arith.constant 0 : index
    %c0_87 = arith.constant 0 : index
    %79 = vector.load %arg2[%c0_85, %78, %c0_86, %c0_87] : memref<1x24x24x4xbf16, #tpu.memory_space<vmem>>, vector<1x8x16x4xbf16>
    %80 = vector.shape_cast %79 : vector<1x8x16x4xbf16> to vector<8x16x4xbf16>
    %c0_88 = arith.constant 0 : index
    %c0_89 = arith.constant 0 : index
    %c12_90 = arith.constant 12 : index
    %81 = vector.load %arg7[%c0_88, %c0_89, %c12_90] : memref<8x16x36xbf16, #tpu.memory_space<vmem>>, vector<8x16x4xbf16>
    tpu.vector_store %arg7[%c0_88, %c0_89, %c12_90], %80 {strides = array<i32>} : memref<8x16x36xbf16, #tpu.memory_space<vmem>>, vector<8x16x4xbf16>,
    %c4_i32_91 = arith.constant 4 : i32
    %82 = arith.addi %1, %c4_i32_91 : i32
    %c0_92 = arith.constant 0 : index
    %83 = arith.index_cast %82 : i32 to index
    %c4_93 = arith.constant 4 : index
    %c0_94 = arith.constant 0 : index
    %84 = vector.load %arg2[%c0_92, %83, %c4_93, %c0_94] : memref<1x24x24x4xbf16, #tpu.memory_space<vmem>>, vector<1x8x16x4xbf16>
    %85 = vector.shape_cast %84 : vector<1x8x16x4xbf16> to vector<8x16x4xbf16>
    %c0_95 = arith.constant 0 : index
    %c0_96 = arith.constant 0 : index
    %c16_97 = arith.constant 16 : index
    %86 = vector.load %arg7[%c0_95, %c0_96, %c16_97] : memref<8x16x36xbf16, #tpu.memory_space<vmem>>, vector<8x16x4xbf16>
    tpu.vector_store %arg7[%c0_95, %c0_96, %c16_97], %85 {strides = array<i32>} : memref<8x16x36xbf16, #tpu.memory_space<vmem>>, vector<8x16x4xbf16>,
    %c4_i32_98 = arith.constant 4 : i32
    %87 = arith.addi %1, %c4_i32_98 : i32
    %c0_99 = arith.constant 0 : index
    %88 = arith.index_cast %87 : i32 to index
    %c8_100 = arith.constant 8 : index
    %c0_101 = arith.constant 0 : index
    %89 = vector.load %arg2[%c0_99, %88, %c8_100, %c0_101] : memref<1x24x24x4xbf16, #tpu.memory_space<vmem>>, vector<1x8x16x4xbf16>
    %90 = vector.shape_cast %89 : vector<1x8x16x4xbf16> to vector<8x16x4xbf16>
    %c0_102 = arith.constant 0 : index
    %c0_103 = arith.constant 0 : index
    %c20_104 = arith.constant 20 : index
    %91 = vector.load %arg7[%c0_102, %c0_103, %c20_104] : memref<8x16x36xbf16, #tpu.memory_space<vmem>>, vector<8x16x4xbf16>
    tpu.vector_store %arg7[%c0_102, %c0_103, %c20_104], %90 {strides = array<i32>} : memref<8x16x36xbf16, #tpu.memory_space<vmem>>, vector<8x16x4xbf16>,
    %c8_i32_105 = arith.constant 8 : i32
    %92 = arith.addi %1, %c8_i32_105 : i32
    %c0_106 = arith.constant 0 : index
    %93 = arith.index_cast %92 : i32 to index
    %c0_107 = arith.constant 0 : index
    %c0_108 = arith.constant 0 : index
    %94 = vector.load %arg2[%c0_106, %93, %c0_107, %c0_108] : memref<1x24x24x4xbf16, #tpu.memory_space<vmem>>, vector<1x8x16x4xbf16>
    %95 = vector.shape_cast %94 : vector<1x8x16x4xbf16> to vector<8x16x4xbf16>
    %c0_109 = arith.constant 0 : index
    %c0_110 = arith.constant 0 : index
    %c24_111 = arith.constant 24 : index
    %96 = vector.load %arg7[%c0_109, %c0_110, %c24_111] : memref<8x16x36xbf16, #tpu.memory_space<vmem>>, vector<8x16x4xbf16>
    tpu.vector_store %arg7[%c0_109, %c0_110, %c24_111], %95 {strides = array<i32>} : memref<8x16x36xbf16, #tpu.memory_space<vmem>>, vector<8x16x4xbf16>,
    %c8_i32_112 = arith.constant 8 : i32
    %97 = arith.addi %1, %c8_i32_112 : i32
    %c0_113 = arith.constant 0 : index
    %98 = arith.index_cast %97 : i32 to index
    %c4_114 = arith.constant 4 : index
    %c0_115 = arith.constant 0 : index
    %99 = vector.load %arg2[%c0_113, %98, %c4_114, %c0_115] : memref<1x24x24x4xbf16, #tpu.memory_space<vmem>>, vector<1x8x16x4xbf16>
    %100 = vector.shape_cast %99 : vector<1x8x16x4xbf16> to vector<8x16x4xbf16>
    %c0_116 = arith.constant 0 : index
    %c0_117 = arith.constant 0 : index
    %c28_118 = arith.constant 28 : index
    %101 = vector.load %arg7[%c0_116, %c0_117, %c28_118] : memref<8x16x36xbf16, #tpu.memory_space<vmem>>, vector<8x16x4xbf16>
    tpu.vector_store %arg7[%c0_116, %c0_117, %c28_118], %100 {strides = array<i32>} : memref<8x16x36xbf16, #tpu.memory_space<vmem>>, vector<8x16x4xbf16>,
    %c8_i32_119 = arith.constant 8 : i32
    %102 = arith.addi %1, %c8_i32_119 : i32
    %c0_120 = arith.constant 0 : index
    %103 = arith.index_cast %102 : i32 to index
    %c8_121 = arith.constant 8 : index
    %c0_122 = arith.constant 0 : index
    %104 = vector.load %arg2[%c0_120, %103, %c8_121, %c0_122] : memref<1x24x24x4xbf16, #tpu.memory_space<vmem>>, vector<1x8x16x4xbf16>
    %105 = vector.shape_cast %104 : vector<1x8x16x4xbf16> to vector<8x16x4xbf16>
    %c0_123 = arith.constant 0 : index
    %c0_124 = arith.constant 0 : index
    %c32_125 = arith.constant 32 : index
    %106 = vector.load %arg7[%c0_123, %c0_124, %c32_125] : memref<8x16x36xbf16, #tpu.memory_space<vmem>>, vector<8x16x4xbf16>
    tpu.vector_store %arg7[%c0_123, %c0_124, %c32_125], %105 {strides = array<i32>} : memref<8x16x36xbf16, #tpu.memory_space<vmem>>, vector<8x16x4xbf16>,
    %c0_126 = arith.constant 0 : index
    %c0_127 = arith.constant 0 : index
    %c0_128 = arith.constant 0 : index
    %107 = vector.load %arg7[%c0_126, %c0_127, %c0_128] : memref<8x16x36xbf16, #tpu.memory_space<vmem>>, vector<8x16x36xbf16>
    %108 = vector.shape_cast %107 : vector<8x16x36xbf16> to vector<128x36xbf16>
    %c1 = arith.constant 1 : index
    %c0_129 = arith.constant 0 : index
    %c0_130 = arith.constant 0 : index
    %109 = vector.load %arg4[%c1, %c0_129, %c0_130] : memref<2x36x4xbf16, #tpu.memory_space<vmem>>, vector<1x36x4xbf16>
    %110 = vector.shape_cast %109 : vector<1x36x4xbf16> to vector<36x4xbf16>
    %cst_131 = arith.constant dense<0.000000e+00> : vector<128x4xf32>
    %111 = tpu.matmul %108, %110, %cst_131 {dimension_numbers = #tpu.dot_dimension_numbers<[1], [0], [0], [1], [0, 0, 1, 1], [], []>} : vector<128x36xbf16>, vector<36x4xbf16>, vector<128x4xf32> -> vector<128x4xf32>
    %112 = tpu.concatenate %11, %61, %111 in 1 : vector<128x4xf32>, vector<128x4xf32>, vector<128x4xf32> -> vector<128x12xf32>
    %113 = vector.shape_cast %112 : vector<128x12xf32> to vector<1x8x16x12xf32>
    %c0_132 = arith.constant 0 : index
    %c0_133 = arith.constant 0 : index
    %c0_134 = arith.constant 0 : index
    %c0_135 = arith.constant 0 : index
    %114 = vector.load %arg5[%c0_132, %c0_133, %c0_134, %c0_135] : memref<1x8x16x12xf32, #tpu.memory_space<vmem>>, vector<1x8x16x12xf32>
    tpu.vector_store %arg5[%c0_132, %c0_133, %c0_134, %c0_135], %113 {strides = array<i32>} : memref<1x8x16x12xf32, #tpu.memory_space<vmem>>, vector<1x8x16x12xf32>,
    %cst_136 = arith.constant dense<0.000000e+00> : vector<12xf32>
    %115 = vector.multi_reduction <add>, %112, %cst_136 [0] : vector<128x12xf32> to vector<12xf32>
    %116 = vector.shape_cast %115 : vector<12xf32> to vector<1x12xf32>
    %cst_137 = arith.constant 7.812500e-03 : f32
    %117 = vector.broadcast %cst_137 : f32 to vector<1x12xf32>
    %118 = arith.mulf %116, %117 : vector<1x12xf32>
    %119 = vector.broadcast %118 : vector<1x12xf32> to vector<128x12xf32>
    %120 = arith.subf %112, %119 : vector<128x12xf32>
    %121 = arith.mulf %120, %120 : vector<128x12xf32>
    %cst_138 = arith.constant dense<0.000000e+00> : vector<12xf32>
    %122 = vector.multi_reduction <add>, %121, %cst_138 [0] : vector<128x12xf32> to vector<12xf32>
    %123 = vector.shape_cast %122 : vector<12xf32> to vector<1x12xf32>
    %cst_139 = arith.constant 0.000000e+00 : f32
    %124 = vector.broadcast %cst_139 : f32 to vector<1x8xf32>
    %125 = tpu.concatenate %8, %124 in 1 : vector<1x4xf32>, vector<1x8xf32> -> vector<1x12xf32>
    %cst_140 = arith.constant 0.000000e+00 : f32
    %126 = vector.broadcast %cst_140 : f32 to vector<5x12xf32>
    %127 = tpu.concatenate %116, %123, %125, %126 in 0 : vector<1x12xf32>, vector<1x12xf32>, vector<1x12xf32>, vector<5x12xf32> -> vector<8x12xf32>
    %128 = vector.shape_cast %127 : vector<8x12xf32> to vector<1x1x8x12xf32>
    %c0_141 = arith.constant 0 : index
    %c0_142 = arith.constant 0 : index
    %c0_143 = arith.constant 0 : index
    %c0_144 = arith.constant 0 : index
    %129 = vector.load %arg6[%c0_141, %c0_142, %c0_143, %c0_144] : memref<1x1x8x12xf32, #tpu.memory_space<vmem>>, vector<1x1x8x12xf32>
    tpu.vector_store %arg6[%c0_141, %c0_142, %c0_143, %c0_144], %128 {strides = array<i32>} : memref<1x1x8x12xf32, #tpu.memory_space<vmem>>, vector<1x1x8x12xf32>,
    return
  }
  func.func @transform_0(%arg0: i32, %arg1: i32) -> (i32, i32, i32, i32) {
    %c0_i32 = arith.constant 0 : i32
    %c0_i32_0 = arith.constant 0 : i32
    %c0_i32_1 = arith.constant 0 : i32
    %c0_i32_2 = arith.constant 0 : i32
    return %arg0, %c0_i32, %c0_i32_0, %c0_i32_1 : i32, i32, i32, i32
  }
  func.func @transform_1(%arg0: i32, %arg1: i32) -> (i32, i32, i32) {
    %c0_i32 = arith.constant 0 : i32
    %c0_i32_0 = arith.constant 0 : i32
    %c0_i32_1 = arith.constant 0 : i32
    %c0_i32_2 = arith.constant 0 : i32
    return %c0_i32, %c0_i32_0, %c0_i32_1 : i32, i32, i32
  }
  func.func @transform_2(%arg0: i32, %arg1: i32) -> (i32, i32, i32) {
    %c0_i32 = arith.constant 0 : i32
    %c0_i32_0 = arith.constant 0 : i32
    %c0_i32_1 = arith.constant 0 : i32
    %c0_i32_2 = arith.constant 0 : i32
    return %c0_i32, %c0_i32_0, %c0_i32_1 : i32, i32, i32
  }
  func.func @transform_3(%arg0: i32, %arg1: i32) -> (i32, i32, i32, i32) {
    %c0_i32 = arith.constant 0 : i32
    %c0_i32_0 = arith.constant 0 : i32
    %c0_i32_1 = arith.constant 0 : i32
    return %arg0, %arg1, %c0_i32, %c0_i32_0 : i32, i32, i32, i32
  }
  func.func @transform_4(%arg0: i32, %arg1: i32) -> (i32, i32, i32, i32) {
    %c0_i32 = arith.constant 0 : i32
    %c0_i32_0 = arith.constant 0 : i32
    %c0_i32_1 = arith.constant 0 : i32
    return %arg0, %arg1, %c0_i32, %c0_i32_0 : i32, i32, i32, i32
  }
}

</mosaic_0001>

<llo_original>
// kernel: tpu_custom_call.1
$region0: #{tpu_custom_call.1}
  #allocation0 [shape = 'u32[]', space=smem, size = 0x4, offset = 0x4, fixed_abs, tag = 'smem constant byte address 0x4 - core index']
  #allocation1 [shape = 'u32[72,128]{1,0:T(1,128)}', space=vmem, size = 0x9000, scoped, tag = 'internal scratch']
  #allocation2 [shape = 'bf16[8,16,36]{2,1,0:T(8,128)(2,1)}', space=vmem, size = 0x8000, scoped, tag = 'scratch operand']
  %s0 = inlined_call_operand.vmem [shape: bf16[2,24,24,4], index: 0, kind: input, shape index: {}]
  %s1 = inlined_call_operand.vmem [shape: bf16[1,4,4], index: 1, kind: input, shape index: {}]
  %s2 = inlined_call_operand.vmem [shape: bf16[2,36,4], index: 2, kind: input, shape index: {}]
  %s3 = inlined_call_operand.vmem [shape: f32[2,16,16,12], index: 3, kind: output, shape index: {0}]
  %s4 = inlined_call_operand.hbm [shape: f32[2,2,8,12], index: 4, kind: output, shape index: {1}]
  %5 = xla_tuple %s3, %s4
  %s6 = sld [smem:[#allocation0]]
  $region53: #{tpu_custom_call.1} parent=0
    _
  %s8 = ssub.s32 1, %s6
  %s9 = scalar_select 0, %s8, %s6
  $region1: #{tpu_custom_call.1} parent=0
    #allocation3 [shape = 'u8[8192]{0}', space=vmem, size = 0x2000, scoped, tag = 'output window, operand 1']
    #allocation4 [shape = 's32[2]{0}', space=sflag, size = 0x8, scoped, tag = 'scoped memory for tpu_custom_call.1']
    %10 = vsyncpa [#allocation4], 0
    %s11 = scalar_lea.sflag [#allocation4], 1
    %12 = vsyncpa %s11, 0
    loop: start=0, step=1, limit=6
    $region2: #{tpu_custom_call.1} parent=1 // loop_pre_header
      _
    $region3: #{tpu_custom_call.1} parent=1 // loop_header
      %s14 = sphi 0, %s18
      %p15 = scmp.ge.s32.totalorder %s14, 6
      %s21 = sphi 0, %s33
      %s22 = sphi 0, %s29
      %s23 = sphi 0, %s21
      %s24 = sphi 0, %s22
      %s25 = sphi 0, %s23
      %s26 = sphi 0, %s24
      %s36 = sphi 0, %s38
      %s39 = sphi 0, %s36
      %s40 = sphi 0, %s39
      %s56 = sphi 0, %s40
      %s60 = sphi 0, %s60
      %s62 = sphi 0, %s60
      %s63 = sphi 0, %s62
      %s77 = sphi 0, %s63
      %s81 = sphi 0, %s81
      %s83 = sphi 0, %s81
      %s84 = sphi 0, %s83
      %s98 = sphi 0, %s84
      %s106 = sphi 0, %s108
      %s109 = sphi 0, %s106
      %s110 = sphi 0, %s109
      %s126 = sphi 0, %s110
      %s134 = sphi 0, %s136
      %s137 = sphi 0, %s134
      %s138 = sphi 0, %s137
      %s154 = sphi 0, %s138
    $region4: #{tpu_custom_call.1} parent=1 // loop_header_branch
      %17 = sbr.rel (%p15) target = $region8
    $region5: #{tpu_custom_call.1} parent=1 // loop_body
      %s19 = ssub.s32 %s14, 1
      %s20 = ssub.s32 %s14, 2
      %s27 = sadd.s32 1, %s22
      %p28 = scmp.ge.s32.totalorder %s27, 2
      %s29 = scalar_select %p28, 0, %s27
      %s30 = sadd.s32 1, %s21
      %s31 = scalar_select %p28, %s30, %s21
      %p32 = scmp.ge.s32.totalorder %s31, 2
      %s33 = scalar_select %p32, 0, %s31
      %s34 = ssub.s32 %s21, %s33
      %p35 = scmp.eq.s32.totalorder %s34, 0
      %s37 = sadd.s32 %s36, 1
      %s38 = scalar_select %p35, %s36, %s37
      %p41 = pneg %p35
      %p42 = scmp.eq.s32.totalorder %s14, 3
      %p43 = por %p41, %p42
      %p44 = scmp.ne.s32.totalorder %s36, %s39
      %p45 = scmp.eq.s32.totalorder %s14, 0
      %p46 = por %p44, %p45
      %p47 = scmp.ne.s32.totalorder %s36, %s39
      %p48 = scmp.eq.s32.totalorder %s19, 3
      %p49 = por %p47, %p48
      %p50 = scmp.ne.s32.totalorder %s39, %s40
      %p51 = scmp.eq.s32.totalorder %s19, 0
      %p52 = por %p50, %p51
      %p53 = scmp.ne.s32.totalorder %s39, %s40
      %p54 = scmp.eq.s32.totalorder %s20, 3
      %p55 = por %p53, %p54
      %p57 = scmp.ne.s32.totalorder %s40, %s56
      %p58 = scmp.eq.s32.totalorder %s20, 0
      %p59 = por %p57, %p58
      %s61 = sadd.s32 %s60, 1
      %p64 = scmp.eq.s32.totalorder %s14, 3
      %p65 = scmp.ne.s32.totalorder %s60, %s62
      %p66 = scmp.eq.s32.totalorder %s14, 0
      %p67 = por %p65, %p66
      %p68 = scmp.ne.s32.totalorder %s60, %s62
      %p69 = scmp.eq.s32.totalorder %s19, 3
      %p70 = por %p68, %p69
      %p71 = scmp.ne.s32.totalorder %s62, %s63
      %p72 = scmp.eq.s32.totalorder %s19, 0
      %p73 = por %p71, %p72
      %p74 = scmp.ne.s32.totalorder %s62, %s63
      %p75 = scmp.eq.s32.totalorder %s20, 3
      %p76 = por %p74, %p75
      %p78 = scmp.ne.s32.totalorder %s63, %s77
      %p79 = scmp.eq.s32.totalorder %s20, 0
      %p80 = por %p78, %p79
      %s82 = sadd.s32 %s81, 1
      %p85 = scmp.eq.s32.totalorder %s14, 3
      %p86 = scmp.ne.s32.totalorder %s81, %s83
      %p87 = scmp.eq.s32.totalorder %s14, 0
      %p88 = por %p86, %p87
      %p89 = scmp.ne.s32.totalorder %s81, %s83
      %p90 = scmp.eq.s32.totalorder %s19, 3
      %p91 = por %p89, %p90
      %p92 = scmp.ne.s32.totalorder %s83, %s84
      %p93 = scmp.eq.s32.totalorder %s19, 0
      %p94 = por %p92, %p93
      %p95 = scmp.ne.s32.totalorder %s83, %s84
      %p96 = scmp.eq.s32.totalorder %s20, 3
      %p97 = por %p95, %p96
      %p99 = scmp.ne.s32.totalorder %s84, %s98
      %p100 = scmp.eq.s32.totalorder %s20, 0
      %p101 = por %p99, %p100
      %s102 = ssub.s32 %s21, %s33
      %s103 = ssub.s32 %s22, %s29
      %s104 = sor.u32 %s102, %s103
      %p105 = scmp.eq.s32.totalorder %s104, 0
      %s107 = sadd.s32 %s106, 1
      %s108 = scalar_select %p105, %s106, %s107
      %p111 = pneg %p105
      %p112 = scmp.eq.s32.totalorder %s14, 3
      %p113 = por %p111, %p112
      %p114 = scmp.ne.s32.totalorder %s106, %s109
      %p115 = scmp.eq.s32.totalorder %s14, 0
      %p116 = por %p114, %p115
      %p117 = scmp.ne.s32.totalorder %s106, %s109
      %p118 = scmp.eq.s32.totalorder %s19, 3
      %p119 = por %p117, %p118
      %p120 = scmp.ne.s32.totalorder %s109, %s110
      %p121 = scmp.eq.s32.totalorder %s19, 0
      %p122 = por %p120, %p121
      %p123 = scmp.ne.s32.totalorder %s109, %s110
      %p124 = scmp.eq.s32.totalorder %s20, 3
      %p125 = por %p123, %p124
      %p127 = scmp.ne.s32.totalorder %s110, %s126
      %p128 = scmp.eq.s32.totalorder %s20, 0
      %p129 = por %p127, %p128
      %s130 = ssub.s32 %s21, %s33
      %s131 = ssub.s32 %s22, %s29
      %s132 = sor.u32 %s130, %s131
      %p133 = scmp.eq.s32.totalorder %s132, 0
      %s135 = sadd.s32 %s134, 1
      %s136 = scalar_select %p133, %s134, %s135
      %p139 = pneg %p133
      %p140 = scmp.eq.s32.totalorder %s14, 3
      %p141 = por %p139, %p140
      %p142 = scmp.ne.s32.totalorder %s134, %s137
      %p143 = scmp.eq.s32.totalorder %s14, 0
      %p144 = por %p142, %p143
      %p145 = scmp.ne.s32.totalorder %s134, %s137
      %p146 = scmp.eq.s32.totalorder %s19, 3
      %p147 = por %p145, %p146
      %p148 = scmp.ne.s32.totalorder %s137, %s138
      %p149 = scmp.eq.s32.totalorder %s19, 0
      %p150 = por %p148, %p149
      %p151 = scmp.ne.s32.totalorder %s137, %s138
      %p152 = scmp.eq.s32.totalorder %s20, 3
      %p153 = por %p151, %p152
      %p155 = scmp.ne.s32.totalorder %s138, %s154
      %p156 = scmp.eq.s32.totalorder %s20, 0
      %p157 = por %p155, %p156
      %p158 = scmp.le.s32.totalorder 1, %s14
      %p159 = scmp.lt.s32.totalorder %s14, 5
      %p160 = pnand %p158, %p159
      %p161 = pneg %p160
      // Predicated region
      $region9: #{tpu_custom_call.1} parent=5 // pred_check
        _
      $region10: #{tpu_custom_call.1} parent=5 // pred_check_branch
        %163 = sbr.rel (%p160) target = $region12
      $region11: #{tpu_custom_call.1} parent=5 // pred_region
        %s164 = ssub.s32 %s14, 1
        // Predicated region
        $region13: #{tpu_custom_call.1} parent=11 // pred_check
          %p165 = pneg %p73
        $region14: #{tpu_custom_call.1} parent=11 // pred_check_branch
          %167 = sbr.rel (%p165) target = $region16
        $region15: #{tpu_custom_call.1} parent=11 // pred_region
          _
        $region16: #{tpu_custom_call.1} parent=11 // pred_fallthru
          _
        // Predicated region
        $region17: #{tpu_custom_call.1} parent=11 // pred_check
          %p168 = pneg %p94
        $region18: #{tpu_custom_call.1} parent=11 // pred_check_branch
          %170 = sbr.rel (%p168) target = $region20
        $region19: #{tpu_custom_call.1} parent=11 // pred_region
          _
        $region20: #{tpu_custom_call.1} parent=11 // pred_fallthru
          _
      $region12: #{tpu_custom_call.1} parent=5 // pred_fallthru
        _
      %p171 = scmp.lt.s32.totalorder %s14, 4
      // Predicated region
      $region21: #{tpu_custom_call.1} parent=5 // pred_check
        %p172 = pneg %p171
      $region22: #{tpu_custom_call.1} parent=5 // pred_check_branch
        %174 = sbr.rel (%p172) target = $region24
      $region23: #{tpu_custom_call.1} parent=5 // pred_region
        // Predicated region
        $region25: #{tpu_custom_call.1} parent=23 // pred_check
          %p175 = pneg %p46
        $region26: #{tpu_custom_call.1} parent=23 // pred_check_branch
          %177 = sbr.rel (%p175) target = $region28
        $region27: #{tpu_custom_call.1} parent=23 // pred_region
          %p178 = scmp.lt.s32.totalorder %s21, 1
          %s179 = scalar_select %p178, %s21, 1
          %s180 = smul.addr %s179, 72
          %s181 = smul.addr %s180, 4
          %s182 = scalar_lea.vmem %s0, %s181
        $region28: #{tpu_custom_call.1} parent=23 // pred_fallthru
          _
      $region24: #{tpu_custom_call.1} parent=5 // pred_fallthru
        _
      %p183 = scmp.le.s32.totalorder 1, %s14
      %p184 = scmp.lt.s32.totalorder %s14, 5
      %p185 = pnand %p183, %p184
      %p186 = pneg %p185
      // Predicated region
      $region29: #{tpu_custom_call.1} parent=5 // pred_check
        _
      $region30: #{tpu_custom_call.1} parent=5 // pred_check_branch
        %188 = sbr.rel (%p185) target = $region32
      $region31: #{tpu_custom_call.1} parent=5 // pred_region
        %s189 = ssub.s32 %s14, 1
        %p190 = scmp.lt.s32.totalorder %s23, 1
        %s191 = scalar_select %p190, %s23, 1
        %s192 = smul.addr %s191, 72
        %s193 = smul.addr %s192, 4
        %s194 = scalar_lea.vmem %s0, %s193
        %p195 = pneg %p52
        %p196 = pneg %p49
        %p197 = pneg %p73
        %p198 = pneg %p70
        %p199 = pneg %p94
        %p200 = pneg %p91
        %p201 = pneg %p122
        %p202 = pneg %p119
        %s203 = smul.u32 8, %s24
        %p204 = scmp.lt.s32.totalorder %s23, 1
        %s205 = scalar_select %p204, %s23, 1
        %p206 = scmp.lt.s32.totalorder %s203, 15
        %s207 = scalar_select %p206, %s203, 15
        %s208 = smul.addr %s207, 2
        %s209 = smul.addr %s205, 32
        %s210 = sadd.s32 %s208, %s209
        %s211 = smul.addr %s210, 8
        %s212 = scalar_lea.vmem %s3, %s211
        %p213 = pneg %p150
        %p214 = pneg %p147
        %s215 = sand.u32 %s137, 1
        %s216 = scalar_lea.sflag [#allocation4], %s215
        %s217 = sand.u32 %s137, 1
        %s218 = smul.addr %s217, 8
        %s219 = scalar_lea.vmem [#allocation3], %s218
        %p220 = scmp.lt.s32.totalorder %s23, 1
        %s221 = scalar_select %p220, %s23, 1
        %s222 = smul.addr %s221, 72
        %s223 = smul.addr %s222, 4
        %s224 = scalar_lea.vmem %s0, %s223
        %s225 = smul.u32 8, %s24
        %p226 = scmp.lt.s32.totalorder %s23, 1
        %s227 = scalar_select %p226, %s23, 1
        %p228 = scmp.lt.s32.totalorder %s225, 15
        %s229 = scalar_select %p228, %s225, 15
        %s230 = smul.addr %s229, 2
        %s231 = smul.addr %s227, 32
        %s232 = sadd.s32 %s230, %s231
        %s233 = smul.addr %s232, 8
        %s234 = scalar_lea.vmem %s3, %s233
        %s235 = smul.u32 8, %s24
        %s237 = smul.u32 %s24, 8
        %s238 = sadd.s32 %s237, 4
        %s239 = smul.u32 %s238, 3
        %s240 = smul.addr %s239, 4
        %s241 = scalar_lea.vmem %s224, %s240
        %v242 = vld [vmem:[%s241] sm:$0xc]
        %v243 = vld [vmem:[%s241 + $0x4] sm:$0xf]
        %v244 = vld [vmem:[%s241 + $0x8] sm:$0x3]
        %v245 = vld [vmem:[%s241 + $0xc] sm:$0xc]
        %v246 = vld [vmem:[%s241 + $0x10] sm:$0xf]
        %v247 = vld [vmem:[%s241 + $0x14] sm:$0x3]
        %v248 = vld [vmem:[%s241 + $0x18] sm:$0xc]
        %v249 = vld [vmem:[%s241 + $0x1c] sm:$0xf]
        %v250 = vld [vmem:[%s241 + $0x20] sm:$0x3]
        %v251 = vld [vmem:[%s241 + $0x24] sm:$0xc]
        %v252 = vld [vmem:[%s241 + $0x28] sm:$0xf]
        %v253 = vld [vmem:[%s241 + $0x2c] sm:$0x3]
        %v254 = vld [vmem:[%s241 + $0x30] sm:$0xc]
        %v255 = vld [vmem:[%s241 + $0x34] sm:$0xf]
        %v256 = vld [vmem:[%s241 + $0x38] sm:$0x3]
        %v257 = vld [vmem:[%s241 + $0x3c] sm:$0xc]
        %v258 = vld [vmem:[%s241 + $0x40] sm:$0xf]
        %v259 = vld [vmem:[%s241 + $0x44] sm:$0x3]
        %v260 = vld [vmem:[%s241 + $0x48] sm:$0xc]
        %v261 = vld [vmem:[%s241 + $0x4c] sm:$0xf]
        %v262 = vld [vmem:[%s241 + $0x50] sm:$0x3]
        %v263 = vld [vmem:[%s241 + $0x54] sm:$0xc]
        %v264 = vld [vmem:[%s241 + $0x58] sm:$0xf]
        %v265 = vld [vmem:[%s241 + $0x5c] sm:$0x3]
        %vm290 = vcmask 1041408
        %vm291 = vcmask 1045508
        %vm292 = vmor %vm290, %vm291
        %v293 = vrot.slane %v242, 6
        %v294 = vrot.slane %v293, 4
        %v295 = vrot.slane %v243, 6
        %v296 = vsel %vm292, %v294, %v295
        %v297 = vrot.slane %v295, 4
        %v298 = vrot.slane %v244, 6
        %v299 = vsel %vm292, %v297, %v298
        %v300 = vrot.slane %v245, 6
        %v301 = vrot.slane %v300, 4
        %v302 = vrot.slane %v246, 6
        %v303 = vsel %vm292, %v301, %v302
        %v304 = vrot.slane %v302, 4
        %v305 = vrot.slane %v247, 6
        %v306 = vsel %vm292, %v304, %v305
        %v307 = vrot.slane %v248, 6
        %v308 = vrot.slane %v307, 4
        %v309 = vrot.slane %v249, 6
        %v310 = vsel %vm292, %v308, %v309
        %v311 = vrot.slane %v309, 4
        %v312 = vrot.slane %v250, 6
        %v313 = vsel %vm292, %v311, %v312
        %v314 = vrot.slane %v251, 6
        %v315 = vrot.slane %v314, 4
        %v316 = vrot.slane %v252, 6
        %v317 = vsel %vm292, %v315, %v316
        %v318 = vrot.slane %v316, 4
        %v319 = vrot.slane %v253, 6
        %v320 = vsel %vm292, %v318, %v319
        %v321 = vrot.slane %v254, 6
        %v322 = vrot.slane %v321, 4
        %v323 = vrot.slane %v255, 6
        %v324 = vsel %vm292, %v322, %v323
        %v325 = vrot.slane %v323, 4
        %v326 = vrot.slane %v256, 6
        %v327 = vsel %vm292, %v325, %v326
        %v328 = vrot.slane %v257, 6
        %v329 = vrot.slane %v328, 4
        %v330 = vrot.slane %v258, 6
        %v331 = vsel %vm292, %v329, %v330
        %v332 = vrot.slane %v330, 4
        %v333 = vrot.slane %v259, 6
        %v334 = vsel %vm292, %v332, %v333
        %v335 = vrot.slane %v260, 6
        %v336 = vrot.slane %v335, 4
        %v337 = vrot.slane %v261, 6
        %v338 = vsel %vm292, %v336, %v337
        %v339 = vrot.slane %v337, 4
        %v340 = vrot.slane %v262, 6
        %v341 = vsel %vm292, %v339, %v340
        %v342 = vrot.slane %v263, 6
        %v343 = vrot.slane %v342, 4
        %v344 = vrot.slane %v264, 6
        %v345 = vsel %vm292, %v343, %v344
        %v346 = vrot.slane %v344, 4
        %v347 = vrot.slane %v265, 6
        %v348 = vsel %vm292, %v346, %v347
        %v365 = vunpack.c.l.bf16 %v296
        %v366 = vunpack.c.l.bf16 %v299
        %v367 = vunpack.c.l.bf16 %v303
        %v368 = vunpack.c.l.bf16 %v306
        %v369 = vunpack.c.l.bf16 %v310
        %v370 = vunpack.c.l.bf16 %v313
        %v371 = vunpack.c.l.bf16 %v317
        %v372 = vunpack.c.l.bf16 %v320
        %v373 = vunpack.c.l.bf16 %v324
        %v374 = vunpack.c.l.bf16 %v327
        %v375 = vunpack.c.l.bf16 %v331
        %v376 = vunpack.c.l.bf16 %v334
        %v377 = vunpack.c.l.bf16 %v338
        %v378 = vunpack.c.l.bf16 %v341
        %v379 = vunpack.c.l.bf16 %v345
        %v380 = vunpack.c.l.bf16 %v348
        %vm381 = vcmask 31744
        %v382 = vsel %vm381, %v365, 0.0
        %v383 = vsel %vm381, %v366, 0.0
        %v384 = vadd.f32 %v382, %v383
        %v385 = vsel %vm381, %v367, 0.0
        %v386 = vadd.f32 %v384, %v385
        %v387 = vsel %vm381, %v368, 0.0
        %v388 = vadd.f32 %v386, %v387
        %v389 = vsel %vm381, %v369, 0.0
        %v390 = vadd.f32 %v388, %v389
        %v391 = vsel %vm381, %v370, 0.0
        %v392 = vadd.f32 %v390, %v391
        %v393 = vsel %vm381, %v371, 0.0
        %v394 = vadd.f32 %v392, %v393
        %v395 = vsel %vm381, %v372, 0.0
        %v396 = vadd.f32 %v394, %v395
        %v397 = vsel %vm381, %v373, 0.0
        %v398 = vadd.f32 %v396, %v397
        %v399 = vsel %vm381, %v374, 0.0
        %v400 = vadd.f32 %v398, %v399
        %v401 = vsel %vm381, %v375, 0.0
        %v402 = vadd.f32 %v400, %v401
        %v403 = vsel %vm381, %v376, 0.0
        %v404 = vadd.f32 %v402, %v403
        %v405 = vsel %vm381, %v377, 0.0
        %v406 = vadd.f32 %v404, %v405
        %v407 = vsel %vm381, %v378, 0.0
        %v408 = vadd.f32 %v406, %v407
        %v409 = vsel %vm381, %v379, 0.0
        %v410 = vadd.f32 %v408, %v409
        %v411 = vsel %vm381, %v380, 0.0
        %v412 = vadd.f32 %v410, %v411
        %v413 = vrot.slane %v412, 4
        %v414 = vadd.f32 %v412, %v413
        %v415 = vrot.slane %v414, 2
        %v416 = vadd.f32 %v414, %v415
        %v417 = vrot.slane %v416, 1
        %v418 = vadd.f32 %v416, %v417
        %v419 = vld [vmem:[%s1] sm:$0x3]
        %v420 = vunpack.c.l.b16 %v296
        %v421 = vunpack.c.l.b16 %v299
        %v422 = vunpack.c.l.b16 %v303
        %v423 = vunpack.c.l.b16 %v306
        %v424 = vunpack.c.l.b16 %v310
        %v425 = vunpack.c.l.b16 %v313
        %v426 = vunpack.c.l.b16 %v317
        %v427 = vunpack.c.l.b16 %v320
        %v428 = vunpack.c.l.b16 %v324
        %v429 = vunpack.c.l.b16 %v327
        %v430 = vunpack.c.l.b16 %v331
        %v431 = vunpack.c.l.b16 %v334
        %v432 = vunpack.c.l.b16 %v338
        %v433 = vunpack.c.l.b16 %v341
        %v434 = vunpack.c.l.b16 %v345
        %v435 = vunpack.c.l.b16 %v348
        %v436 = vpack.c.b16 %v421, %v420
        %v437 = vpack.c.b16 %v423, %v422
        %v438 = vpack.c.b16 %v425, %v424
        %v439 = vpack.c.b16 %v427, %v426
        %v440 = vpack.c.b16 %v429, %v428
        %v441 = vpack.c.b16 %v431, %v430
        %v442 = vpack.c.b16 %v433, %v432
        %v443 = vpack.c.b16 %v435, %v434
        %v445 = vsel %vm381, %v436, 0
        %v448 = vsel %vm381, %v437, 0
        %v451 = vsel %vm381, %v438, 0
        %v454 = vsel %vm381, %v439, 0
        %v457 = vsel %vm381, %v440, 0
        %v460 = vsel %vm381, %v441, 0
        %v463 = vsel %vm381, %v442, 0
        %v466 = vsel %vm381, %v443, 0
        %vm468 = vcmask 1041408
        %v470 = vsel %vm468, %v419, 0
        %472 = vmatpush.bf16.msra.mxu0 0
        %473 = vmatpush.bf16.msra.mxu0 0
        %474 = vmatpush.bf16.msra.mxu0 0
        %475 = vmatpush.bf16.msra.mxu0 0
        %476 = vmatpush.bf16.msra.mxu0 0
        %477 = vmatpush.bf16.msra.mxu0 0
        %478 = vmatpush.bf16.msra.mxu0 0
        %479 = vmatpush.bf16.msra.mxu0 %v470
        %480 = vmatmul.bf16.gmra.mxu0 %v445
        %v481 = vpop.f32.mrf.mxu0
        %v482 = vadd.f32 0.0, %v481
        %v483 = vpop.f32.mrf.mxu0
        %v484 = vadd.f32 0.0, %v483
        %485 = vmatmul.bf16.gmra.mxu0 %v448
        %v486 = vpop.f32.mrf.mxu0
        %v487 = vadd.f32 0.0, %v486
        %v488 = vpop.f32.mrf.mxu0
        %v489 = vadd.f32 0.0, %v488
        %490 = vmatmul.bf16.gmra.mxu0 %v451
        %v491 = vpop.f32.mrf.mxu0
        %v492 = vadd.f32 0.0, %v491
        %v493 = vpop.f32.mrf.mxu0
        %v494 = vadd.f32 0.0, %v493
        %495 = vmatmul.bf16.gmra.mxu0 %v454
        %v496 = vpop.f32.mrf.mxu0
        %v497 = vadd.f32 0.0, %v496
        %v498 = vpop.f32.mrf.mxu0
        %v499 = vadd.f32 0.0, %v498
        %500 = vmatmul.bf16.gmra.mxu0 %v457
        %v501 = vpop.f32.mrf.mxu0
        %v502 = vadd.f32 0.0, %v501
        %v503 = vpop.f32.mrf.mxu0
        %v504 = vadd.f32 0.0, %v503
        %505 = vmatmul.bf16.gmra.mxu0 %v460
        %v506 = vpop.f32.mrf.mxu0
        %v507 = vadd.f32 0.0, %v506
        %v508 = vpop.f32.mrf.mxu0
        %v509 = vadd.f32 0.0, %v508
        %510 = vmatmul.bf16.gmra.mxu0 %v463
        %v511 = vpop.f32.mrf.mxu0
        %v512 = vadd.f32 0.0, %v511
        %v513 = vpop.f32.mrf.mxu0
        %v514 = vadd.f32 0.0, %v513
        %515 = vmatmul.bf16.gmra.mxu0 %v466
        %v516 = vpop.f32.mrf.mxu0
        %v517 = vadd.f32 0.0, %v516
        %v518 = vpop.f32.mrf.mxu0
        %v519 = vadd.f32 0.0, %v518
        %520 = vdwg.mxu0
        %s521 = sadd.s32 %s237, 2
        %s522 = smul.u32 %s521, 3
        %s523 = smul.addr %s522, 4
        %s524 = scalar_lea.vmem %s224, %s523
        %v525 = vld [vmem:[%s524] sm:$0xe]
        %v526 = vld [vmem:[%s524 + $0x4] sm:$0xf]
        %v527 = vld [vmem:[%s524 + $0x8] sm:$0x1]
        %v528 = vld [vmem:[%s524 + $0xc] sm:$0xe]
        %v529 = vld [vmem:[%s524 + $0x10] sm:$0xf]
        %v530 = vld [vmem:[%s524 + $0x14] sm:$0x1]
        %v531 = vld [vmem:[%s524 + $0x18] sm:$0xe]
        %v532 = vld [vmem:[%s524 + $0x1c] sm:$0xf]
        %v533 = vld [vmem:[%s524 + $0x20] sm:$0x1]
        %v534 = vld [vmem:[%s524 + $0x24] sm:$0xe]
        %v535 = vld [vmem:[%s524 + $0x28] sm:$0xf]
        %v536 = vld [vmem:[%s524 + $0x2c] sm:$0x1]
        %v537 = vld [vmem:[%s524 + $0x30] sm:$0xe]
        %v538 = vld [vmem:[%s524 + $0x34] sm:$0xf]
        %v539 = vld [vmem:[%s524 + $0x38] sm:$0x1]
        %v540 = vld [vmem:[%s524 + $0x3c] sm:$0xe]
        %v541 = vld [vmem:[%s524 + $0x40] sm:$0xf]
        %v542 = vld [vmem:[%s524 + $0x44] sm:$0x1]
        %v543 = vld [vmem:[%s524 + $0x48] sm:$0xe]
        %v544 = vld [vmem:[%s524 + $0x4c] sm:$0xf]
        %v545 = vld [vmem:[%s524 + $0x50] sm:$0x1]
        %v546 = vld [vmem:[%s524 + $0x54] sm:$0xe]
        %v547 = vld [vmem:[%s524 + $0x58] sm:$0xf]
        %v548 = vld [vmem:[%s524 + $0x5c] sm:$0x1]
        %vm573 = vcmask 1042432
        %vm574 = vcmask 1046532
        %vm575 = vmor %vm573, %vm574
        %v576 = vrot.slane %v525, 5
        %v577 = vrot.slane %v576, 4
        %v578 = vrot.slane %v526, 5
        %v579 = vsel %vm575, %v577, %v578
        %v580 = vrot.slane %v578, 4
        %v581 = vrot.slane %v527, 5
        %v582 = vsel %vm575, %v580, %v581
        %v583 = vrot.slane %v528, 5
        %v584 = vrot.slane %v583, 4
        %v585 = vrot.slane %v529, 5
        %v586 = vsel %vm575, %v584, %v585
        %v587 = vrot.slane %v585, 4
        %v588 = vrot.slane %v530, 5
        %v589 = vsel %vm575, %v587, %v588
        %v590 = vrot.slane %v531, 5
        %v591 = vrot.slane %v590, 4
        %v592 = vrot.slane %v532, 5
        %v593 = vsel %vm575, %v591, %v592
        %v594 = vrot.slane %v592, 4
        %v595 = vrot.slane %v533, 5
        %v596 = vsel %vm575, %v594, %v595
        %v597 = vrot.slane %v534, 5
        %v598 = vrot.slane %v597, 4
        %v599 = vrot.slane %v535, 5
        %v600 = vsel %vm575, %v598, %v599
        %v601 = vrot.slane %v599, 4
        %v602 = vrot.slane %v536, 5
        %v603 = vsel %vm575, %v601, %v602
        %v604 = vrot.slane %v537, 5
        %v605 = vrot.slane %v604, 4
        %v606 = vrot.slane %v538, 5
        %v607 = vsel %vm575, %v605, %v606
        %v608 = vrot.slane %v606, 4
        %v609 = vrot.slane %v539, 5
        %v610 = vsel %vm575, %v608, %v609
        %v611 = vrot.slane %v540, 5
        %v612 = vrot.slane %v611, 4
        %v613 = vrot.slane %v541, 5
        %v614 = vsel %vm575, %v612, %v613
        %v615 = vrot.slane %v613, 4
        %v616 = vrot.slane %v542, 5
        %v617 = vsel %vm575, %v615, %v616
        %v618 = vrot.slane %v543, 5
        %v619 = vrot.slane %v618, 4
        %v620 = vrot.slane %v544, 5
        %v621 = vsel %vm575, %v619, %v620
        %v622 = vrot.slane %v620, 4
        %v623 = vrot.slane %v545, 5
        %v624 = vsel %vm575, %v622, %v623
        %v625 = vrot.slane %v546, 5
        %v626 = vrot.slane %v625, 4
        %v627 = vrot.slane %v547, 5
        %v628 = vsel %vm575, %v626, %v627
        %v629 = vrot.slane %v627, 4
        %v630 = vrot.slane %v548, 5
        %v631 = vsel %vm575, %v629, %v630
        %vm648 = vcmask 27648
        %649 = vst.msk [vmem:[#allocation2] sm:$0xf] %vm648, %v579
        %650 = vst.msk [vmem:[#allocation2 + $0x4] sm:$0xf] %vm648, %v582
        %651 = vst.msk [vmem:[#allocation2 + $0x8] sm:$0xf] %vm648, %v586
        %652 = vst.msk [vmem:[#allocation2 + $0xc] sm:$0xf] %vm648, %v589
        %653 = vst.msk [vmem:[#allocation2 + $0x10] sm:$0xf] %vm648, %v593
        %654 = vst.msk [vmem:[#allocation2 + $0x14] sm:$0xf] %vm648, %v596
        %655 = vst.msk [vmem:[#allocation2 + $0x18] sm:$0xf] %vm648, %v600
        %656 = vst.msk [vmem:[#allocation2 + $0x1c] sm:$0xf] %vm648, %v603
        %657 = vst.msk [vmem:[#allocation2 + $0x20] sm:$0xf] %vm648, %v607
        %658 = vst.msk [vmem:[#allocation2 + $0x24] sm:$0xf] %vm648, %v610
        %659 = vst.msk [vmem:[#allocation2 + $0x28] sm:$0xf] %vm648, %v614
        %660 = vst.msk [vmem:[#allocation2 + $0x2c] sm:$0xf] %vm648, %v617
        %661 = vst.msk [vmem:[#allocation2 + $0x30] sm:$0xf] %vm648, %v621
        %662 = vst.msk [vmem:[#allocation2 + $0x34] sm:$0xf] %vm648, %v624
        %663 = vst.msk [vmem:[#allocation2 + $0x38] sm:$0xf] %vm648, %v628
        %664 = vst.msk [vmem:[#allocation2 + $0x3c] sm:$0xf] %vm648, %v631
        %v665 = vld [vmem:[%s524] sm:$0xc]
        %v666 = vld [vmem:[%s524 + $0x4] sm:$0xf]
        %v667 = vld [vmem:[%s524 + $0x8] sm:$0x3]
        %v668 = vld [vmem:[%s524 + $0xc] sm:$0xc]
        %v669 = vld [vmem:[%s524 + $0x10] sm:$0xf]
        %v670 = vld [vmem:[%s524 + $0x14] sm:$0x3]
        %v671 = vld [vmem:[%s524 + $0x18] sm:$0xc]
        %v672 = vld [vmem:[%s524 + $0x1c] sm:$0xf]
        %v673 = vld [vmem:[%s524 + $0x20] sm:$0x3]
        %v674 = vld [vmem:[%s524 + $0x24] sm:$0xc]
        %v675 = vld [vmem:[%s524 + $0x28] sm:$0xf]
        %v676 = vld [vmem:[%s524 + $0x2c] sm:$0x3]
        %v677 = vld [vmem:[%s524 + $0x30] sm:$0xc]
        %v678 = vld [vmem:[%s524 + $0x34] sm:$0xf]
        %v679 = vld [vmem:[%s524 + $0x38] sm:$0x3]
        %v680 = vld [vmem:[%s524 + $0x3c] sm:$0xc]
        %v681 = vld [vmem:[%s524 + $0x40] sm:$0xf]
        %v682 = vld [vmem:[%s524 + $0x44] sm:$0x3]
        %v683 = vld [vmem:[%s524 + $0x48] sm:$0xc]
        %v684 = vld [vmem:[%s524 + $0x4c] sm:$0xf]
        %v685 = vld [vmem:[%s524 + $0x50] sm:$0x3]
        %v686 = vld [vmem:[%s524 + $0x54] sm:$0xc]
        %v687 = vld [vmem:[%s524 + $0x58] sm:$0xf]
        %v688 = vld [vmem:[%s524 + $0x5c] sm:$0x3]
        %v713 = vrot.slane %v665, 6
        %v714 = vrot.slane %v713, 4
        %v715 = vrot.slane %v666, 6
        %v716 = vsel %vm292, %v714, %v715
        %v717 = vrot.slane %v715, 4
        %v718 = vrot.slane %v667, 6
        %v719 = vsel %vm292, %v717, %v718
        %v720 = vrot.slane %v668, 6
        %v721 = vrot.slane %v720, 4
        %v722 = vrot.slane %v669, 6
        %v723 = vsel %vm292, %v721, %v722
        %v724 = vrot.slane %v722, 4
        %v725 = vrot.slane %v670, 6
        %v726 = vsel %vm292, %v724, %v725
        %v727 = vrot.slane %v671, 6
        %v728 = vrot.slane %v727, 4
        %v729 = vrot.slane %v672, 6
        %v730 = vsel %vm292, %v728, %v729
        %v731 = vrot.slane %v729, 4
        %v732 = vrot.slane %v673, 6
        %v733 = vsel %vm292, %v731, %v732
        %v734 = vrot.slane %v674, 6
        %v735 = vrot.slane %v734, 4
        %v736 = vrot.slane %v675, 6
        %v737 = vsel %vm292, %v735, %v736
        %v738 = vrot.slane %v736, 4
        %v739 = vrot.slane %v676, 6
        %v740 = vsel %vm292, %v738, %v739
        %v741 = vrot.slane %v677, 6
        %v742 = vrot.slane %v741, 4
        %v743 = vrot.slane %v678, 6
        %v744 = vsel %vm292, %v742, %v743
        %v745 = vrot.slane %v743, 4
        %v746 = vrot.slane %v679, 6
        %v747 = vsel %vm292, %v745, %v746
        %v748 = vrot.slane %v680, 6
        %v749 = vrot.slane %v748, 4
        %v750 = vrot.slane %v681, 6
        %v751 = vsel %vm292, %v749, %v750
        %v752 = vrot.slane %v750, 4
        %v753 = vrot.slane %v682, 6
        %v754 = vsel %vm292, %v752, %v753
        %v755 = vrot.slane %v683, 6
        %v756 = vrot.slane %v755, 4
        %v757 = vrot.slane %v684, 6
        %v758 = vsel %vm292, %v756, %v757
        %v759 = vrot.slane %v757, 4
        %v760 = vrot.slane %v685, 6
        %v761 = vsel %vm292, %v759, %v760
        %v762 = vrot.slane %v686, 6
        %v763 = vrot.slane %v762, 4
        %v764 = vrot.slane %v687, 6
        %v765 = vsel %vm292, %v763, %v764
        %v766 = vrot.slane %v764, 4
        %v767 = vrot.slane %v688, 6
        %v768 = vsel %vm292, %v766, %v767
        %769 = vrot.lane.b32.xlu0 %v716, 4
        %v770 = vpop.permute.xlu0 %769
        %771 = vrot.lane.b32.xlu0 %v719, 4
        %v772 = vpop.permute.xlu0 %771
        %773 = vrot.lane.b32.xlu0 %v723, 4
        %v774 = vpop.permute.xlu0 %773
        %775 = vrot.lane.b32.xlu0 %v726, 4
        %v776 = vpop.permute.xlu0 %775
        %777 = vrot.lane.b32.xlu0 %v730, 4
        %v778 = vpop.permute.xlu0 %777
        %779 = vrot.lane.b32.xlu0 %v733, 4
        %v780 = vpop.permute.xlu0 %779
        %781 = vrot.lane.b32.xlu0 %v737, 4
        %v782 = vpop.permute.xlu0 %781
        %783 = vrot.lane.b32.xlu0 %v740, 4
        %v784 = vpop.permute.xlu0 %783
        %785 = vrot.lane.b32.xlu0 %v744, 4
        %v786 = vpop.permute.xlu0 %785
        %787 = vrot.lane.b32.xlu0 %v747, 4
        %v788 = vpop.permute.xlu0 %787
        %789 = vrot.lane.b32.xlu0 %v751, 4
        %v790 = vpop.permute.xlu0 %789
        %791 = vrot.lane.b32.xlu0 %v754, 4
        %v792 = vpop.permute.xlu0 %791
        %793 = vrot.lane.b32.xlu0 %v758, 4
        %v794 = vpop.permute.xlu0 %793
        %795 = vrot.lane.b32.xlu0 %v761, 4
        %v796 = vpop.permute.xlu0 %795
        %797 = vrot.lane.b32.xlu0 %v765, 4
        %v798 = vpop.permute.xlu0 %797
        %799 = vrot.lane.b32.xlu0 %v768, 4
        %v800 = vpop.permute.xlu0 %799
        %vm817 = vcmask 60448
        %818 = vst.msk [vmem:[#allocation2] sm:$0xf] %vm817, %v770
        %819 = vst.msk [vmem:[#allocation2 + $0x4] sm:$0xf] %vm817, %v772
        %820 = vst.msk [vmem:[#allocation2 + $0x8] sm:$0xf] %vm817, %v774
        %821 = vst.msk [vmem:[#allocation2 + $0xc] sm:$0xf] %vm817, %v776
        %822 = vst.msk [vmem:[#allocation2 + $0x10] sm:$0xf] %vm817, %v778
        %823 = vst.msk [vmem:[#allocation2 + $0x14] sm:$0xf] %vm817, %v780
        %824 = vst.msk [vmem:[#allocation2 + $0x18] sm:$0xf] %vm817, %v782
        %825 = vst.msk [vmem:[#allocation2 + $0x1c] sm:$0xf] %vm817, %v784
        %826 = vst.msk [vmem:[#allocation2 + $0x20] sm:$0xf] %vm817, %v786
        %827 = vst.msk [vmem:[#allocation2 + $0x24] sm:$0xf] %vm817, %v788
        %828 = vst.msk [vmem:[#allocation2 + $0x28] sm:$0xf] %vm817, %v790
        %829 = vst.msk [vmem:[#allocation2 + $0x2c] sm:$0xf] %vm817, %v792
        %830 = vst.msk [vmem:[#allocation2 + $0x30] sm:$0xf] %vm817, %v794
        %831 = vst.msk [vmem:[#allocation2 + $0x34] sm:$0xf] %vm817, %v796
        %832 = vst.msk [vmem:[#allocation2 + $0x38] sm:$0xf] %vm817, %v798
        %833 = vst.msk [vmem:[#allocation2 + $0x3c] sm:$0xf] %vm817, %v800
        %v834 = vld [vmem:[%s524] sm:$0x8]
        %v835 = vld [vmem:[%s524 + $0x4] sm:$0xf]
        %v836 = vld [vmem:[%s524 + $0x8] sm:$0x7]
        %v837 = vld [vmem:[%s524 + $0xc] sm:$0x8]
        %v838 = vld [vmem:[%s524 + $0x10] sm:$0xf]
        %v839 = vld [vmem:[%s524 + $0x14] sm:$0x7]
        %v840 = vld [vmem:[%s524 + $0x18] sm:$0x8]
        %v841 = vld [vmem:[%s524 + $0x1c] sm:$0xf]
        %v842 = vld [vmem:[%s524 + $0x20] sm:$0x7]
        %v843 = vld [vmem:[%s524 + $0x24] sm:$0x8]
        %v844 = vld [vmem:[%s524 + $0x28] sm:$0xf]
        %v845 = vld [vmem:[%s524 + $0x2c] sm:$0x7]
        %v846 = vld [vmem:[%s524 + $0x30] sm:$0x8]
        %v847 = vld [vmem:[%s524 + $0x34] sm:$0xf]
        %v848 = vld [vmem:[%s524 + $0x38] sm:$0x7]
        %v849 = vld [vmem:[%s524 + $0x3c] sm:$0x8]
        %v850 = vld [vmem:[%s524 + $0x40] sm:$0xf]
        %v851 = vld [vmem:[%s524 + $0x44] sm:$0x7]
        %v852 = vld [vmem:[%s524 + $0x48] sm:$0x8]
        %v853 = vld [vmem:[%s524 + $0x4c] sm:$0xf]
        %v854 = vld [vmem:[%s524 + $0x50] sm:$0x7]
        %v855 = vld [vmem:[%s524 + $0x54] sm:$0x8]
        %v856 = vld [vmem:[%s524 + $0x58] sm:$0xf]
        %v857 = vld [vmem:[%s524 + $0x5c] sm:$0x7]
        %vm882 = vcmask 1040384
        %vm883 = vcmask 1044484
        %vm884 = vmor %vm882, %vm883
        %v885 = vrot.slane %v834, 7
        %v886 = vrot.slane %v885, 4
        %v887 = vrot.slane %v835, 7
        %v888 = vsel %vm884, %v886, %v887
        %v889 = vrot.slane %v887, 4
        %v890 = vrot.slane %v836, 7
        %v891 = vsel %vm884, %v889, %v890
        %v892 = vrot.slane %v837, 7
        %v893 = vrot.slane %v892, 4
        %v894 = vrot.slane %v838, 7
        %v895 = vsel %vm884, %v893, %v894
        %v896 = vrot.slane %v894, 4
        %v897 = vrot.slane %v839, 7
        %v898 = vsel %vm884, %v896, %v897
        %v899 = vrot.slane %v840, 7
        %v900 = vrot.slane %v899, 4
        %v901 = vrot.slane %v841, 7
        %v902 = vsel %vm884, %v900, %v901
        %v903 = vrot.slane %v901, 4
        %v904 = vrot.slane %v842, 7
        %v905 = vsel %vm884, %v903, %v904
        %v906 = vrot.slane %v843, 7
        %v907 = vrot.slane %v906, 4
        %v908 = vrot.slane %v844, 7
        %v909 = vsel %vm884, %v907, %v908
        %v910 = vrot.slane %v908, 4
        %v911 = vrot.slane %v845, 7
        %v912 = vsel %vm884, %v910, %v911
        %v913 = vrot.slane %v846, 7
        %v914 = vrot.slane %v913, 4
        %v915 = vrot.slane %v847, 7
        %v916 = vsel %vm884, %v914, %v915
        %v917 = vrot.slane %v915, 4
        %v918 = vrot.slane %v848, 7
        %v919 = vsel %vm884, %v917, %v918
        %v920 = vrot.slane %v849, 7
        %v921 = vrot.slane %v920, 4
        %v922 = vrot.slane %v850, 7
        %v923 = vsel %vm884, %v921, %v922
        %v924 = vrot.slane %v922, 4
        %v925 = vrot.slane %v851, 7
        %v926 = vsel %vm884, %v924, %v925
        %v927 = vrot.slane %v852, 7
        %v928 = vrot.slane %v927, 4
        %v929 = vrot.slane %v853, 7
        %v930 = vsel %vm884, %v928, %v929
        %v931 = vrot.slane %v929, 4
        %v932 = vrot.slane %v854, 7
        %v933 = vsel %vm884, %v931, %v932
        %v934 = vrot.slane %v855, 7
        %v935 = vrot.slane %v934, 4
        %v936 = vrot.slane %v856, 7
        %v937 = vsel %vm884, %v935, %v936
        %v938 = vrot.slane %v936, 4
        %v939 = vrot.slane %v857, 7
        %v940 = vsel %vm884, %v938, %v939
        %941 = vrot.lane.b32.xlu0 %v888, 8
        %v942 = vpop.permute.xlu0 %941
        %943 = vrot.lane.b32.xlu0 %v891, 8
        %v944 = vpop.permute.xlu0 %943
        %945 = vrot.lane.b32.xlu0 %v895, 8
        %v946 = vpop.permute.xlu0 %945
        %947 = vrot.lane.b32.xlu0 %v898, 8
        %v948 = vpop.permute.xlu0 %947
        %949 = vrot.lane.b32.xlu0 %v902, 8
        %v950 = vpop.permute.xlu0 %949
        %951 = vrot.lane.b32.xlu0 %v905, 8
        %v952 = vpop.permute.xlu0 %951
        %953 = vrot.lane.b32.xlu0 %v909, 8
        %v954 = vpop.permute.xlu0 %953
        %955 = vrot.lane.b32.xlu0 %v912, 8
        %v956 = vpop.permute.xlu0 %955
        %957 = vrot.lane.b32.xlu0 %v916, 8
        %v958 = vpop.permute.xlu0 %957
        %959 = vrot.lane.b32.xlu0 %v919, 8
        %v960 = vpop.permute.xlu0 %959
        %961 = vrot.lane.b32.xlu0 %v923, 8
        %v962 = vpop.permute.xlu0 %961
        %963 = vrot.lane.b32.xlu0 %v926, 8
        %v964 = vpop.permute.xlu0 %963
        %965 = vrot.lane.b32.xlu0 %v930, 8
        %v966 = vpop.permute.xlu0 %965
        %967 = vrot.lane.b32.xlu0 %v933, 8
        %v968 = vpop.permute.xlu0 %967
        %969 = vrot.lane.b32.xlu0 %v937, 8
        %v970 = vpop.permute.xlu0 %969
        %971 = vrot.lane.b32.xlu0 %v940, 8
        %v972 = vpop.permute.xlu0 %971
        %vm989 = vcmask 93248
        %990 = vst.msk [vmem:[#allocation2] sm:$0xf] %vm989, %v942
        %991 = vst.msk [vmem:[#allocation2 + $0x4] sm:$0xf] %vm989, %v944
        %992 = vst.msk [vmem:[#allocation2 + $0x8] sm:$0xf] %vm989, %v946
        %993 = vst.msk [vmem:[#allocation2 + $0xc] sm:$0xf] %vm989, %v948
        %994 = vst.msk [vmem:[#allocation2 + $0x10] sm:$0xf] %vm989, %v950
        %995 = vst.msk [vmem:[#allocation2 + $0x14] sm:$0xf] %vm989, %v952
        %996 = vst.msk [vmem:[#allocation2 + $0x18] sm:$0xf] %vm989, %v954
        %997 = vst.msk [vmem:[#allocation2 + $0x1c] sm:$0xf] %vm989, %v956
        %998 = vst.msk [vmem:[#allocation2 + $0x20] sm:$0xf] %vm989, %v958
        %999 = vst.msk [vmem:[#allocation2 + $0x24] sm:$0xf] %vm989, %v960
        %1000 = vst.msk [vmem:[#allocation2 + $0x28] sm:$0xf] %vm989, %v962
        %1001 = vst.msk [vmem:[#allocation2 + $0x2c] sm:$0xf] %vm989, %v964
        %1002 = vst.msk [vmem:[#allocation2 + $0x30] sm:$0xf] %vm989, %v966
        %1003 = vst.msk [vmem:[#allocation2 + $0x34] sm:$0xf] %vm989, %v968
        %1004 = vst.msk [vmem:[#allocation2 + $0x38] sm:$0xf] %vm989, %v970
        %1005 = vst.msk [vmem:[#allocation2 + $0x3c] sm:$0xf] %vm989, %v972
        %v1006 = vld [vmem:[%s241] sm:$0xe]
        %v1007 = vld [vmem:[%s241 + $0x4] sm:$0xf]
        %v1008 = vld [vmem:[%s241 + $0x8] sm:$0x1]
        %v1009 = vld [vmem:[%s241 + $0xc] sm:$0xe]
        %v1010 = vld [vmem:[%s241 + $0x10] sm:$0xf]
        %v1011 = vld [vmem:[%s241 + $0x14] sm:$0x1]
        %v1012 = vld [vmem:[%s241 + $0x18] sm:$0xe]
        %v1013 = vld [vmem:[%s241 + $0x1c] sm:$0xf]
        %v1014 = vld [vmem:[%s241 + $0x20] sm:$0x1]
        %v1015 = vld [vmem:[%s241 + $0x24] sm:$0xe]
        %v1016 = vld [vmem:[%s241 + $0x28] sm:$0xf]
        %v1017 = vld [vmem:[%s241 + $0x2c] sm:$0x1]
        %v1018 = vld [vmem:[%s241 + $0x30] sm:$0xe]
        %v1019 = vld [vmem:[%s241 + $0x34] sm:$0xf]
        %v1020 = vld [vmem:[%s241 + $0x38] sm:$0x1]
        %v1021 = vld [vmem:[%s241 + $0x3c] sm:$0xe]
        %v1022 = vld [vmem:[%s241 + $0x40] sm:$0xf]
        %v1023 = vld [vmem:[%s241 + $0x44] sm:$0x1]
        %v1024 = vld [vmem:[%s241 + $0x48] sm:$0xe]
        %v1025 = vld [vmem:[%s241 + $0x4c] sm:$0xf]
        %v1026 = vld [vmem:[%s241 + $0x50] sm:$0x1]
        %v1027 = vld [vmem:[%s241 + $0x54] sm:$0xe]
        %v1028 = vld [vmem:[%s241 + $0x58] sm:$0xf]
        %v1029 = vld [vmem:[%s241 + $0x5c] sm:$0x1]
        %v1054 = vrot.slane %v1006, 5
        %v1055 = vrot.slane %v1054, 4
        %v1056 = vrot.slane %v1007, 5
        %v1057 = vsel %vm575, %v1055, %v1056
        %v1058 = vrot.slane %v1056, 4
        %v1059 = vrot.slane %v1008, 5
        %v1060 = vsel %vm575, %v1058, %v1059
        %v1061 = vrot.slane %v1009, 5
        %v1062 = vrot.slane %v1061, 4
        %v1063 = vrot.slane %v1010, 5
        %v1064 = vsel %vm575, %v1062, %v1063
        %v1065 = vrot.slane %v1063, 4
        %v1066 = vrot.slane %v1011, 5
        %v1067 = vsel %vm575, %v1065, %v1066
        %v1068 = vrot.slane %v1012, 5
        %v1069 = vrot.slane %v1068, 4
        %v1070 = vrot.slane %v1013, 5
        %v1071 = vsel %vm575, %v1069, %v1070
        %v1072 = vrot.slane %v1070, 4
        %v1073 = vrot.slane %v1014, 5
        %v1074 = vsel %vm575, %v1072, %v1073
        %v1075 = vrot.slane %v1015, 5
        %v1076 = vrot.slane %v1075, 4
        %v1077 = vrot.slane %v1016, 5
        %v1078 = vsel %vm575, %v1076, %v1077
        %v1079 = vrot.slane %v1077, 4
        %v1080 = vrot.slane %v1017, 5
        %v1081 = vsel %vm575, %v1079, %v1080
        %v1082 = vrot.slane %v1018, 5
        %v1083 = vrot.slane %v1082, 4
        %v1084 = vrot.slane %v1019, 5
        %v1085 = vsel %vm575, %v1083, %v1084
        %v1086 = vrot.slane %v1084, 4
        %v1087 = vrot.slane %v1020, 5
        %v1088 = vsel %vm575, %v1086, %v1087
        %v1089 = vrot.slane %v1021, 5
        %v1090 = vrot.slane %v1089, 4
        %v1091 = vrot.slane %v1022, 5
        %v1092 = vsel %vm575, %v1090, %v1091
        %v1093 = vrot.slane %v1091, 4
        %v1094 = vrot.slane %v1023, 5
        %v1095 = vsel %vm575, %v1093, %v1094
        %v1096 = vrot.slane %v1024, 5
        %v1097 = vrot.slane %v1096, 4
        %v1098 = vrot.slane %v1025, 5
        %v1099 = vsel %vm575, %v1097, %v1098
        %v1100 = vrot.slane %v1098, 4
        %v1101 = vrot.slane %v1026, 5
        %v1102 = vsel %vm575, %v1100, %v1101
        %v1103 = vrot.slane %v1027, 5
        %v1104 = vrot.slane %v1103, 4
        %v1105 = vrot.slane %v1028, 5
        %v1106 = vsel %vm575, %v1104, %v1105
        %v1107 = vrot.slane %v1105, 4
        %v1108 = vrot.slane %v1029, 5
        %v1109 = vsel %vm575, %v1107, %v1108
        %1110 = vrot.lane.b32.xlu0 %v1057, 12
        %v1111 = vpop.permute.xlu0 %1110
        %1112 = vrot.lane.b32.xlu0 %v1060, 12
        %v1113 = vpop.permute.xlu0 %1112
        %1114 = vrot.lane.b32.xlu0 %v1064, 12
        %v1115 = vpop.permute.xlu0 %1114
        %1116 = vrot.lane.b32.xlu0 %v1067, 12
        %v1117 = vpop.permute.xlu0 %1116
        %1118 = vrot.lane.b32.xlu0 %v1071, 12
        %v1119 = vpop.permute.xlu0 %1118
        %1120 = vrot.lane.b32.xlu0 %v1074, 12
        %v1121 = vpop.permute.xlu0 %1120
        %1122 = vrot.lane.b32.xlu0 %v1078, 12
        %v1123 = vpop.permute.xlu0 %1122
        %1124 = vrot.lane.b32.xlu0 %v1081, 12
        %v1125 = vpop.permute.xlu0 %1124
        %1126 = vrot.lane.b32.xlu0 %v1085, 12
        %v1127 = vpop.permute.xlu0 %1126
        %1128 = vrot.lane.b32.xlu0 %v1088, 12
        %v1129 = vpop.permute.xlu0 %1128
        %1130 = vrot.lane.b32.xlu0 %v1092, 12
        %v1131 = vpop.permute.xlu0 %1130
        %1132 = vrot.lane.b32.xlu0 %v1095, 12
        %v1133 = vpop.permute.xlu0 %1132
        %1134 = vrot.lane.b32.xlu0 %v1099, 12
        %v1135 = vpop.permute.xlu0 %1134
        %1136 = vrot.lane.b32.xlu0 %v1102, 12
        %v1137 = vpop.permute.xlu0 %1136
        %1138 = vrot.lane.b32.xlu0 %v1106, 12
        %v1139 = vpop.permute.xlu0 %1138
        %1140 = vrot.lane.b32.xlu0 %v1109, 12
        %v1141 = vpop.permute.xlu0 %1140
        %vm1158 = vcmask 126048
        %1159 = vst.msk [vmem:[#allocation2] sm:$0xf] %vm1158, %v1111
        %1160 = vst.msk [vmem:[#allocation2 + $0x4] sm:$0xf] %vm1158, %v1113
        %1161 = vst.msk [vmem:[#allocation2 + $0x8] sm:$0xf] %vm1158, %v1115
        %1162 = vst.msk [vmem:[#allocation2 + $0xc] sm:$0xf] %vm1158, %v1117
        %1163 = vst.msk [vmem:[#allocation2 + $0x10] sm:$0xf] %vm1158, %v1119
        %1164 = vst.msk [vmem:[#allocation2 + $0x14] sm:$0xf] %vm1158, %v1121
        %1165 = vst.msk [vmem:[#allocation2 + $0x18] sm:$0xf] %vm1158, %v1123
        %1166 = vst.msk [vmem:[#allocation2 + $0x1c] sm:$0xf] %vm1158, %v1125
        %1167 = vst.msk [vmem:[#allocation2 + $0x20] sm:$0xf] %vm1158, %v1127
        %1168 = vst.msk [vmem:[#allocation2 + $0x24] sm:$0xf] %vm1158, %v1129
        %1169 = vst.msk [vmem:[#allocation2 + $0x28] sm:$0xf] %vm1158, %v1131
        %1170 = vst.msk [vmem:[#allocation2 + $0x2c] sm:$0xf] %vm1158, %v1133
        %1171 = vst.msk [vmem:[#allocation2 + $0x30] sm:$0xf] %vm1158, %v1135
        %1172 = vst.msk [vmem:[#allocation2 + $0x34] sm:$0xf] %vm1158, %v1137
        %1173 = vst.msk [vmem:[#allocation2 + $0x38] sm:$0xf] %vm1158, %v1139
        %1174 = vst.msk [vmem:[#allocation2 + $0x3c] sm:$0xf] %vm1158, %v1141
        %v1175 = vld [vmem:[%s241] sm:$0xc]
        %v1176 = vld [vmem:[%s241 + $0x4] sm:$0xf]
        %v1177 = vld [vmem:[%s241 + $0x8] sm:$0x3]
        %v1178 = vld [vmem:[%s241 + $0xc] sm:$0xc]
        %v1179 = vld [vmem:[%s241 + $0x10] sm:$0xf]
        %v1180 = vld [vmem:[%s241 + $0x14] sm:$0x3]
        %v1181 = vld [vmem:[%s241 + $0x18] sm:$0xc]
        %v1182 = vld [vmem:[%s241 + $0x1c] sm:$0xf]
        %v1183 = vld [vmem:[%s241 + $0x20] sm:$0x3]
        %v1184 = vld [vmem:[%s241 + $0x24] sm:$0xc]
        %v1185 = vld [vmem:[%s241 + $0x28] sm:$0xf]
        %v1186 = vld [vmem:[%s241 + $0x2c] sm:$0x3]
        %v1187 = vld [vmem:[%s241 + $0x30] sm:$0xc]
        %v1188 = vld [vmem:[%s241 + $0x34] sm:$0xf]
        %v1189 = vld [vmem:[%s241 + $0x38] sm:$0x3]
        %v1190 = vld [vmem:[%s241 + $0x3c] sm:$0xc]
        %v1191 = vld [vmem:[%s241 + $0x40] sm:$0xf]
        %v1192 = vld [vmem:[%s241 + $0x44] sm:$0x3]
        %v1193 = vld [vmem:[%s241 + $0x48] sm:$0xc]
        %v1194 = vld [vmem:[%s241 + $0x4c] sm:$0xf]
        %v1195 = vld [vmem:[%s241 + $0x50] sm:$0x3]
        %v1196 = vld [vmem:[%s241 + $0x54] sm:$0xc]
        %v1197 = vld [vmem:[%s241 + $0x58] sm:$0xf]
        %v1198 = vld [vmem:[%s241 + $0x5c] sm:$0x3]
        %v1223 = vrot.slane %v1175, 6
        %v1224 = vrot.slane %v1223, 4
        %v1225 = vrot.slane %v1176, 6
        %v1226 = vsel %vm292, %v1224, %v1225
        %v1227 = vrot.slane %v1225, 4
        %v1228 = vrot.slane %v1177, 6
        %v1229 = vsel %vm292, %v1227, %v1228
        %v1230 = vrot.slane %v1178, 6
        %v1231 = vrot.slane %v1230, 4
        %v1232 = vrot.slane %v1179, 6
        %v1233 = vsel %vm292, %v1231, %v1232
        %v1234 = vrot.slane %v1232, 4
        %v1235 = vrot.slane %v1180, 6
        %v1236 = vsel %vm292, %v1234, %v1235
        %v1237 = vrot.slane %v1181, 6
        %v1238 = vrot.slane %v1237, 4
        %v1239 = vrot.slane %v1182, 6
        %v1240 = vsel %vm292, %v1238, %v1239
        %v1241 = vrot.slane %v1239, 4
        %v1242 = vrot.slane %v1183, 6
        %v1243 = vsel %vm292, %v1241, %v1242
        %v1244 = vrot.slane %v1184, 6
        %v1245 = vrot.slane %v1244, 4
        %v1246 = vrot.slane %v1185, 6
        %v1247 = vsel %vm292, %v1245, %v1246
        %v1248 = vrot.slane %v1246, 4
        %v1249 = vrot.slane %v1186, 6
        %v1250 = vsel %vm292, %v1248, %v1249
        %v1251 = vrot.slane %v1187, 6
        %v1252 = vrot.slane %v1251, 4
        %v1253 = vrot.slane %v1188, 6
        %v1254 = vsel %vm292, %v1252, %v1253
        %v1255 = vrot.slane %v1253, 4
        %v1256 = vrot.slane %v1189, 6
        %v1257 = vsel %vm292, %v1255, %v1256
        %v1258 = vrot.slane %v1190, 6
        %v1259 = vrot.slane %v1258, 4
        %v1260 = vrot.slane %v1191, 6
        %v1261 = vsel %vm292, %v1259, %v1260
        %v1262 = vrot.slane %v1260, 4
        %v1263 = vrot.slane %v1192, 6
        %v1264 = vsel %vm292, %v1262, %v1263
        %v1265 = vrot.slane %v1193, 6
        %v1266 = vrot.slane %v1265, 4
        %v1267 = vrot.slane %v1194, 6
        %v1268 = vsel %vm292, %v1266, %v1267
        %v1269 = vrot.slane %v1267, 4
        %v1270 = vrot.slane %v1195, 6
        %v1271 = vsel %vm292, %v1269, %v1270
        %v1272 = vrot.slane %v1196, 6
        %v1273 = vrot.slane %v1272, 4
        %v1274 = vrot.slane %v1197, 6
        %v1275 = vsel %vm292, %v1273, %v1274
        %v1276 = vrot.slane %v1274, 4
        %v1277 = vrot.slane %v1198, 6
        %v1278 = vsel %vm292, %v1276, %v1277
        %1279 = vrot.lane.b32.xlu0 %v1226, 16
        %v1280 = vpop.permute.xlu0 %1279
        %1281 = vrot.lane.b32.xlu0 %v1229, 16
        %v1282 = vpop.permute.xlu0 %1281
        %1283 = vrot.lane.b32.xlu0 %v1233, 16
        %v1284 = vpop.permute.xlu0 %1283
        %1285 = vrot.lane.b32.xlu0 %v1236, 16
        %v1286 = vpop.permute.xlu0 %1285
        %1287 = vrot.lane.b32.xlu0 %v1240, 16
        %v1288 = vpop.permute.xlu0 %1287
        %1289 = vrot.lane.b32.xlu0 %v1243, 16
        %v1290 = vpop.permute.xlu0 %1289
        %1291 = vrot.lane.b32.xlu0 %v1247, 16
        %v1292 = vpop.permute.xlu0 %1291
        %1293 = vrot.lane.b32.xlu0 %v1250, 16
        %v1294 = vpop.permute.xlu0 %1293
        %1295 = vrot.lane.b32.xlu0 %v1254, 16
        %v1296 = vpop.permute.xlu0 %1295
        %1297 = vrot.lane.b32.xlu0 %v1257, 16
        %v1298 = vpop.permute.xlu0 %1297
        %1299 = vrot.lane.b32.xlu0 %v1261, 16
        %v1300 = vpop.permute.xlu0 %1299
        %1301 = vrot.lane.b32.xlu0 %v1264, 16
        %v1302 = vpop.permute.xlu0 %1301
        %1303 = vrot.lane.b32.xlu0 %v1268, 16
        %v1304 = vpop.permute.xlu0 %1303
        %1305 = vrot.lane.b32.xlu0 %v1271, 16
        %v1306 = vpop.permute.xlu0 %1305
        %1307 = vrot.lane.b32.xlu0 %v1275, 16
        %v1308 = vpop.permute.xlu0 %1307
        %1309 = vrot.lane.b32.xlu0 %v1278, 16
        %v1310 = vpop.permute.xlu0 %1309
        %vm1327 = vcmask 158848
        %1328 = vst.msk [vmem:[#allocation2] sm:$0xf] %vm1327, %v1280
        %1329 = vst.msk [vmem:[#allocation2 + $0x4] sm:$0xf] %vm1327, %v1282
        %1330 = vst.msk [vmem:[#allocation2 + $0x8] sm:$0xf] %vm1327, %v1284
        %1331 = vst.msk [vmem:[#allocation2 + $0xc] sm:$0xf] %vm1327, %v1286
        %1332 = vst.msk [vmem:[#allocation2 + $0x10] sm:$0xf] %vm1327, %v1288
        %1333 = vst.msk [vmem:[#allocation2 + $0x14] sm:$0xf] %vm1327, %v1290
        %1334 = vst.msk [vmem:[#allocation2 + $0x18] sm:$0xf] %vm1327, %v1292
        %1335 = vst.msk [vmem:[#allocation2 + $0x1c] sm:$0xf] %vm1327, %v1294
        %1336 = vst.msk [vmem:[#allocation2 + $0x20] sm:$0xf] %vm1327, %v1296
        %1337 = vst.msk [vmem:[#allocation2 + $0x24] sm:$0xf] %vm1327, %v1298
        %1338 = vst.msk [vmem:[#allocation2 + $0x28] sm:$0xf] %vm1327, %v1300
        %1339 = vst.msk [vmem:[#allocation2 + $0x2c] sm:$0xf] %vm1327, %v1302
        %1340 = vst.msk [vmem:[#allocation2 + $0x30] sm:$0xf] %vm1327, %v1304
        %1341 = vst.msk [vmem:[#allocation2 + $0x34] sm:$0xf] %vm1327, %v1306
        %1342 = vst.msk [vmem:[#allocation2 + $0x38] sm:$0xf] %vm1327, %v1308
        %1343 = vst.msk [vmem:[#allocation2 + $0x3c] sm:$0xf] %vm1327, %v1310
        %v1344 = vld [vmem:[%s241] sm:$0x8]
        %v1345 = vld [vmem:[%s241 + $0x4] sm:$0xf]
        %v1346 = vld [vmem:[%s241 + $0x8] sm:$0x7]
        %v1347 = vld [vmem:[%s241 + $0xc] sm:$0x8]
        %v1348 = vld [vmem:[%s241 + $0x10] sm:$0xf]
        %v1349 = vld [vmem:[%s241 + $0x14] sm:$0x7]
        %v1350 = vld [vmem:[%s241 + $0x18] sm:$0x8]
        %v1351 = vld [vmem:[%s241 + $0x1c] sm:$0xf]
        %v1352 = vld [vmem:[%s241 + $0x20] sm:$0x7]
        %v1353 = vld [vmem:[%s241 + $0x24] sm:$0x8]
        %v1354 = vld [vmem:[%s241 + $0x28] sm:$0xf]
        %v1355 = vld [vmem:[%s241 + $0x2c] sm:$0x7]
        %v1356 = vld [vmem:[%s241 + $0x30] sm:$0x8]
        %v1357 = vld [vmem:[%s241 + $0x34] sm:$0xf]
        %v1358 = vld [vmem:[%s241 + $0x38] sm:$0x7]
        %v1359 = vld [vmem:[%s241 + $0x3c] sm:$0x8]
        %v1360 = vld [vmem:[%s241 + $0x40] sm:$0xf]
        %v1361 = vld [vmem:[%s241 + $0x44] sm:$0x7]
        %v1362 = vld [vmem:[%s241 + $0x48] sm:$0x8]
        %v1363 = vld [vmem:[%s241 + $0x4c] sm:$0xf]
        %v1364 = vld [vmem:[%s241 + $0x50] sm:$0x7]
        %v1365 = vld [vmem:[%s241 + $0x54] sm:$0x8]
        %v1366 = vld [vmem:[%s241 + $0x58] sm:$0xf]
        %v1367 = vld [vmem:[%s241 + $0x5c] sm:$0x7]
        %v1392 = vrot.slane %v1344, 7
        %v1393 = vrot.slane %v1392, 4
        %v1394 = vrot.slane %v1345, 7
        %v1395 = vsel %vm884, %v1393, %v1394
        %v1396 = vrot.slane %v1394, 4
        %v1397 = vrot.slane %v1346, 7
        %v1398 = vsel %vm884, %v1396, %v1397
        %v1399 = vrot.slane %v1347, 7
        %v1400 = vrot.slane %v1399, 4
        %v1401 = vrot.slane %v1348, 7
        %v1402 = vsel %vm884, %v1400, %v1401
        %v1403 = vrot.slane %v1401, 4
        %v1404 = vrot.slane %v1349, 7
        %v1405 = vsel %vm884, %v1403, %v1404
        %v1406 = vrot.slane %v1350, 7
        %v1407 = vrot.slane %v1406, 4
        %v1408 = vrot.slane %v1351, 7
        %v1409 = vsel %vm884, %v1407, %v1408
        %v1410 = vrot.slane %v1408, 4
        %v1411 = vrot.slane %v1352, 7
        %v1412 = vsel %vm884, %v1410, %v1411
        %v1413 = vrot.slane %v1353, 7
        %v1414 = vrot.slane %v1413, 4
        %v1415 = vrot.slane %v1354, 7
        %v1416 = vsel %vm884, %v1414, %v1415
        %v1417 = vrot.slane %v1415, 4
        %v1418 = vrot.slane %v1355, 7
        %v1419 = vsel %vm884, %v1417, %v1418
        %v1420 = vrot.slane %v1356, 7
        %v1421 = vrot.slane %v1420, 4
        %v1422 = vrot.slane %v1357, 7
        %v1423 = vsel %vm884, %v1421, %v1422
        %v1424 = vrot.slane %v1422, 4
        %v1425 = vrot.slane %v1358, 7
        %v1426 = vsel %vm884, %v1424, %v1425
        %v1427 = vrot.slane %v1359, 7
        %v1428 = vrot.slane %v1427, 4
        %v1429 = vrot.slane %v1360, 7
        %v1430 = vsel %vm884, %v1428, %v1429
        %v1431 = vrot.slane %v1429, 4
        %v1432 = vrot.slane %v1361, 7
        %v1433 = vsel %vm884, %v1431, %v1432
        %v1434 = vrot.slane %v1362, 7
        %v1435 = vrot.slane %v1434, 4
        %v1436 = vrot.slane %v1363, 7
        %v1437 = vsel %vm884, %v1435, %v1436
        %v1438 = vrot.slane %v1436, 4
        %v1439 = vrot.slane %v1364, 7
        %v1440 = vsel %vm884, %v1438, %v1439
        %v1441 = vrot.slane %v1365, 7
        %v1442 = vrot.slane %v1441, 4
        %v1443 = vrot.slane %v1366, 7
        %v1444 = vsel %vm884, %v1442, %v1443
        %v1445 = vrot.slane %v1443, 4
        %v1446 = vrot.slane %v1367, 7
        %v1447 = vsel %vm884, %v1445, %v1446
        %1448 = vrot.lane.b32.xlu0 %v1395, 20
        %v1449 = vpop.permute.xlu0 %1448
        %1450 = vrot.lane.b32.xlu0 %v1398, 20
        %v1451 = vpop.permute.xlu0 %1450
        %1452 = vrot.lane.b32.xlu0 %v1402, 20
        %v1453 = vpop.permute.xlu0 %1452
        %1454 = vrot.lane.b32.xlu0 %v1405, 20
        %v1455 = vpop.permute.xlu0 %1454
        %1456 = vrot.lane.b32.xlu0 %v1409, 20
        %v1457 = vpop.permute.xlu0 %1456
        %1458 = vrot.lane.b32.xlu0 %v1412, 20
        %v1459 = vpop.permute.xlu0 %1458
        %1460 = vrot.lane.b32.xlu0 %v1416, 20
        %v1461 = vpop.permute.xlu0 %1460
        %1462 = vrot.lane.b32.xlu0 %v1419, 20
        %v1463 = vpop.permute.xlu0 %1462
        %1464 = vrot.lane.b32.xlu0 %v1423, 20
        %v1465 = vpop.permute.xlu0 %1464
        %1466 = vrot.lane.b32.xlu0 %v1426, 20
        %v1467 = vpop.permute.xlu0 %1466
        %1468 = vrot.lane.b32.xlu0 %v1430, 20
        %v1469 = vpop.permute.xlu0 %1468
        %1470 = vrot.lane.b32.xlu0 %v1433, 20
        %v1471 = vpop.permute.xlu0 %1470
        %1472 = vrot.lane.b32.xlu0 %v1437, 20
        %v1473 = vpop.permute.xlu0 %1472
        %1474 = vrot.lane.b32.xlu0 %v1440, 20
        %v1475 = vpop.permute.xlu0 %1474
        %1476 = vrot.lane.b32.xlu0 %v1444, 20
        %v1477 = vpop.permute.xlu0 %1476
        %1478 = vrot.lane.b32.xlu0 %v1447, 20
        %v1479 = vpop.permute.xlu0 %1478
        %vm1496 = vcmask 191648
        %1497 = vst.msk [vmem:[#allocation2] sm:$0xf] %vm1496, %v1449
        %1498 = vst.msk [vmem:[#allocation2 + $0x4] sm:$0xf] %vm1496, %v1451
        %1499 = vst.msk [vmem:[#allocation2 + $0x8] sm:$0xf] %vm1496, %v1453
        %1500 = vst.msk [vmem:[#allocation2 + $0xc] sm:$0xf] %vm1496, %v1455
        %1501 = vst.msk [vmem:[#allocation2 + $0x10] sm:$0xf] %vm1496, %v1457
        %1502 = vst.msk [vmem:[#allocation2 + $0x14] sm:$0xf] %vm1496, %v1459
        %1503 = vst.msk [vmem:[#allocation2 + $0x18] sm:$0xf] %vm1496, %v1461
        %1504 = vst.msk [vmem:[#allocation2 + $0x1c] sm:$0xf] %vm1496, %v1463
        %1505 = vst.msk [vmem:[#allocation2 + $0x20] sm:$0xf] %vm1496, %v1465
        %1506 = vst.msk [vmem:[#allocation2 + $0x24] sm:$0xf] %vm1496, %v1467
        %1507 = vst.msk [vmem:[#allocation2 + $0x28] sm:$0xf] %vm1496, %v1469
        %1508 = vst.msk [vmem:[#allocation2 + $0x2c] sm:$0xf] %vm1496, %v1471
        %1509 = vst.msk [vmem:[#allocation2 + $0x30] sm:$0xf] %vm1496, %v1473
        %1510 = vst.msk [vmem:[#allocation2 + $0x34] sm:$0xf] %vm1496, %v1475
        %1511 = vst.msk [vmem:[#allocation2 + $0x38] sm:$0xf] %vm1496, %v1477
        %1512 = vst.msk [vmem:[#allocation2 + $0x3c] sm:$0xf] %vm1496, %v1479
        %s1513 = sadd.s32 %s237, 6
        %s1514 = smul.u32 %s1513, 3
        %s1515 = smul.addr %s1514, 4
        %s1516 = scalar_lea.vmem %s224, %s1515
        %v1517 = vld [vmem:[%s1516] sm:$0xe]
        %v1518 = vld [vmem:[%s1516 + $0x4] sm:$0xf]
        %v1519 = vld [vmem:[%s1516 + $0x8] sm:$0x1]
        %v1520 = vld [vmem:[%s1516 + $0xc] sm:$0xe]
        %v1521 = vld [vmem:[%s1516 + $0x10] sm:$0xf]
        %v1522 = vld [vmem:[%s1516 + $0x14] sm:$0x1]
        %v1523 = vld [vmem:[%s1516 + $0x18] sm:$0xe]
        %v1524 = vld [vmem:[%s1516 + $0x1c] sm:$0xf]
        %v1525 = vld [vmem:[%s1516 + $0x20] sm:$0x1]
        %v1526 = vld [vmem:[%s1516 + $0x24] sm:$0xe]
        %v1527 = vld [vmem:[%s1516 + $0x28] sm:$0xf]
        %v1528 = vld [vmem:[%s1516 + $0x2c] sm:$0x1]
        %v1529 = vld [vmem:[%s1516 + $0x30] sm:$0xe]
        %v1530 = vld [vmem:[%s1516 + $0x34] sm:$0xf]
        %v1531 = vld [vmem:[%s1516 + $0x38] sm:$0x1]
        %v1532 = vld [vmem:[%s1516 + $0x3c] sm:$0xe]
        %v1533 = vld [vmem:[%s1516 + $0x40] sm:$0xf]
        %v1534 = vld [vmem:[%s1516 + $0x44] sm:$0x1]
        %v1535 = vld [vmem:[%s1516 + $0x48] sm:$0xe]
        %v1536 = vld [vmem:[%s1516 + $0x4c] sm:$0xf]
        %v1537 = vld [vmem:[%s1516 + $0x50] sm:$0x1]
        %v1538 = vld [vmem:[%s1516 + $0x54] sm:$0xe]
        %v1539 = vld [vmem:[%s1516 + $0x58] sm:$0xf]
        %v1540 = vld [vmem:[%s1516 + $0x5c] sm:$0x1]
        %v1565 = vrot.slane %v1517, 5
        %v1566 = vrot.slane %v1565, 4
        %v1567 = vrot.slane %v1518, 5
        %v1568 = vsel %vm575, %v1566, %v1567
        %v1569 = vrot.slane %v1567, 4
        %v1570 = vrot.slane %v1519, 5
        %v1571 = vsel %vm575, %v1569, %v1570
        %v1572 = vrot.slane %v1520, 5
        %v1573 = vrot.slane %v1572, 4
        %v1574 = vrot.slane %v1521, 5
        %v1575 = vsel %vm575, %v1573, %v1574
        %v1576 = vrot.slane %v1574, 4
        %v1577 = vrot.slane %v1522, 5
        %v1578 = vsel %vm575, %v1576, %v1577
        %v1579 = vrot.slane %v1523, 5
        %v1580 = vrot.slane %v1579, 4
        %v1581 = vrot.slane %v1524, 5
        %v1582 = vsel %vm575, %v1580, %v1581
        %v1583 = vrot.slane %v1581, 4
        %v1584 = vrot.slane %v1525, 5
        %v1585 = vsel %vm575, %v1583, %v1584
        %v1586 = vrot.slane %v1526, 5
        %v1587 = vrot.slane %v1586, 4
        %v1588 = vrot.slane %v1527, 5
        %v1589 = vsel %vm575, %v1587, %v1588
        %v1590 = vrot.slane %v1588, 4
        %v1591 = vrot.slane %v1528, 5
        %v1592 = vsel %vm575, %v1590, %v1591
        %v1593 = vrot.slane %v1529, 5
        %v1594 = vrot.slane %v1593, 4
        %v1595 = vrot.slane %v1530, 5
        %v1596 = vsel %vm575, %v1594, %v1595
        %v1597 = vrot.slane %v1595, 4
        %v1598 = vrot.slane %v1531, 5
        %v1599 = vsel %vm575, %v1597, %v1598
        %v1600 = vrot.slane %v1532, 5
        %v1601 = vrot.slane %v1600, 4
        %v1602 = vrot.slane %v1533, 5
        %v1603 = vsel %vm575, %v1601, %v1602
        %v1604 = vrot.slane %v1602, 4
        %v1605 = vrot.slane %v1534, 5
        %v1606 = vsel %vm575, %v1604, %v1605
        %v1607 = vrot.slane %v1535, 5
        %v1608 = vrot.slane %v1607, 4
        %v1609 = vrot.slane %v1536, 5
        %v1610 = vsel %vm575, %v1608, %v1609
        %v1611 = vrot.slane %v1609, 4
        %v1612 = vrot.slane %v1537, 5
        %v1613 = vsel %vm575, %v1611, %v1612
        %v1614 = vrot.slane %v1538, 5
        %v1615 = vrot.slane %v1614, 4
        %v1616 = vrot.slane %v1539, 5
        %v1617 = vsel %vm575, %v1615, %v1616
        %v1618 = vrot.slane %v1616, 4
        %v1619 = vrot.slane %v1540, 5
        %v1620 = vsel %vm575, %v1618, %v1619
        %1621 = vrot.lane.b32.xlu0 %v1568, 24
        %v1622 = vpop.permute.xlu0 %1621
        %1623 = vrot.lane.b32.xlu0 %v1571, 24
        %v1624 = vpop.permute.xlu0 %1623
        %1625 = vrot.lane.b32.xlu0 %v1575, 24
        %v1626 = vpop.permute.xlu0 %1625
        %1627 = vrot.lane.b32.xlu0 %v1578, 24
        %v1628 = vpop.permute.xlu0 %1627
        %1629 = vrot.lane.b32.xlu0 %v1582, 24
        %v1630 = vpop.permute.xlu0 %1629
        %1631 = vrot.lane.b32.xlu0 %v1585, 24
        %v1632 = vpop.permute.xlu0 %1631
        %1633 = vrot.lane.b32.xlu0 %v1589, 24
        %v1634 = vpop.permute.xlu0 %1633
        %1635 = vrot.lane.b32.xlu0 %v1592, 24
        %v1636 = vpop.permute.xlu0 %1635
        %1637 = vrot.lane.b32.xlu0 %v1596, 24
        %v1638 = vpop.permute.xlu0 %1637
        %1639 = vrot.lane.b32.xlu0 %v1599, 24
        %v1640 = vpop.permute.xlu0 %1639
        %1641 = vrot.lane.b32.xlu0 %v1603, 24
        %v1642 = vpop.permute.xlu0 %1641
        %1643 = vrot.lane.b32.xlu0 %v1606, 24
        %v1644 = vpop.permute.xlu0 %1643
        %1645 = vrot.lane.b32.xlu0 %v1610, 24
        %v1646 = vpop.permute.xlu0 %1645
        %1647 = vrot.lane.b32.xlu0 %v1613, 24
        %v1648 = vpop.permute.xlu0 %1647
        %1649 = vrot.lane.b32.xlu0 %v1617, 24
        %v1650 = vpop.permute.xlu0 %1649
        %1651 = vrot.lane.b32.xlu0 %v1620, 24
        %v1652 = vpop.permute.xlu0 %1651
        %vm1669 = vcmask 224448
        %1670 = vst.msk [vmem:[#allocation2] sm:$0xf] %vm1669, %v1622
        %1671 = vst.msk [vmem:[#allocation2 + $0x4] sm:$0xf] %vm1669, %v1624
        %1672 = vst.msk [vmem:[#allocation2 + $0x8] sm:$0xf] %vm1669, %v1626
        %1673 = vst.msk [vmem:[#allocation2 + $0xc] sm:$0xf] %vm1669, %v1628
        %1674 = vst.msk [vmem:[#allocation2 + $0x10] sm:$0xf] %vm1669, %v1630
        %1675 = vst.msk [vmem:[#allocation2 + $0x14] sm:$0xf] %vm1669, %v1632
        %1676 = vst.msk [vmem:[#allocation2 + $0x18] sm:$0xf] %vm1669, %v1634
        %1677 = vst.msk [vmem:[#allocation2 + $0x1c] sm:$0xf] %vm1669, %v1636
        %1678 = vst.msk [vmem:[#allocation2 + $0x20] sm:$0xf] %vm1669, %v1638
        %1679 = vst.msk [vmem:[#allocation2 + $0x24] sm:$0xf] %vm1669, %v1640
        %1680 = vst.msk [vmem:[#allocation2 + $0x28] sm:$0xf] %vm1669, %v1642
        %1681 = vst.msk [vmem:[#allocation2 + $0x2c] sm:$0xf] %vm1669, %v1644
        %1682 = vst.msk [vmem:[#allocation2 + $0x30] sm:$0xf] %vm1669, %v1646
        %1683 = vst.msk [vmem:[#allocation2 + $0x34] sm:$0xf] %vm1669, %v1648
        %1684 = vst.msk [vmem:[#allocation2 + $0x38] sm:$0xf] %vm1669, %v1650
        %1685 = vst.msk [vmem:[#allocation2 + $0x3c] sm:$0xf] %vm1669, %v1652
        %v1686 = vld [vmem:[%s1516] sm:$0xc]
        %v1687 = vld [vmem:[%s1516 + $0x4] sm:$0xf]
        %v1688 = vld [vmem:[%s1516 + $0x8] sm:$0x3]
        %v1689 = vld [vmem:[%s1516 + $0xc] sm:$0xc]
        %v1690 = vld [vmem:[%s1516 + $0x10] sm:$0xf]
        %v1691 = vld [vmem:[%s1516 + $0x14] sm:$0x3]
        %v1692 = vld [vmem:[%s1516 + $0x18] sm:$0xc]
        %v1693 = vld [vmem:[%s1516 + $0x1c] sm:$0xf]
        %v1694 = vld [vmem:[%s1516 + $0x20] sm:$0x3]
        %v1695 = vld [vmem:[%s1516 + $0x24] sm:$0xc]
        %v1696 = vld [vmem:[%s1516 + $0x28] sm:$0xf]
        %v1697 = vld [vmem:[%s1516 + $0x2c] sm:$0x3]
        %v1698 = vld [vmem:[%s1516 + $0x30] sm:$0xc]
        %v1699 = vld [vmem:[%s1516 + $0x34] sm:$0xf]
        %v1700 = vld [vmem:[%s1516 + $0x38] sm:$0x3]
        %v1701 = vld [vmem:[%s1516 + $0x3c] sm:$0xc]
        %v1702 = vld [vmem:[%s1516 + $0x40] sm:$0xf]
        %v1703 = vld [vmem:[%s1516 + $0x44] sm:$0x3]
        %v1704 = vld [vmem:[%s1516 + $0x48] sm:$0xc]
        %v1705 = vld [vmem:[%s1516 + $0x4c] sm:$0xf]
        %v1706 = vld [vmem:[%s1516 + $0x50] sm:$0x3]
        %v1707 = vld [vmem:[%s1516 + $0x54] sm:$0xc]
        %v1708 = vld [vmem:[%s1516 + $0x58] sm:$0xf]
        %v1709 = vld [vmem:[%s1516 + $0x5c] sm:$0x3]
        %v1734 = vrot.slane %v1686, 6
        %v1735 = vrot.slane %v1734, 4
        %v1736 = vrot.slane %v1687, 6
        %v1737 = vsel %vm292, %v1735, %v1736
        %v1738 = vrot.slane %v1736, 4
        %v1739 = vrot.slane %v1688, 6
        %v1740 = vsel %vm292, %v1738, %v1739
        %v1741 = vrot.slane %v1689, 6
        %v1742 = vrot.slane %v1741, 4
        %v1743 = vrot.slane %v1690, 6
        %v1744 = vsel %vm292, %v1742, %v1743
        %v1745 = vrot.slane %v1743, 4
        %v1746 = vrot.slane %v1691, 6
        %v1747 = vsel %vm292, %v1745, %v1746
        %v1748 = vrot.slane %v1692, 6
        %v1749 = vrot.slane %v1748, 4
        %v1750 = vrot.slane %v1693, 6
        %v1751 = vsel %vm292, %v1749, %v1750
        %v1752 = vrot.slane %v1750, 4
        %v1753 = vrot.slane %v1694, 6
        %v1754 = vsel %vm292, %v1752, %v1753
        %v1755 = vrot.slane %v1695, 6
        %v1756 = vrot.slane %v1755, 4
        %v1757 = vrot.slane %v1696, 6
        %v1758 = vsel %vm292, %v1756, %v1757
        %v1759 = vrot.slane %v1757, 4
        %v1760 = vrot.slane %v1697, 6
        %v1761 = vsel %vm292, %v1759, %v1760
        %v1762 = vrot.slane %v1698, 6
        %v1763 = vrot.slane %v1762, 4
        %v1764 = vrot.slane %v1699, 6
        %v1765 = vsel %vm292, %v1763, %v1764
        %v1766 = vrot.slane %v1764, 4
        %v1767 = vrot.slane %v1700, 6
        %v1768 = vsel %vm292, %v1766, %v1767
        %v1769 = vrot.slane %v1701, 6
        %v1770 = vrot.slane %v1769, 4
        %v1771 = vrot.slane %v1702, 6
        %v1772 = vsel %vm292, %v1770, %v1771
        %v1773 = vrot.slane %v1771, 4
        %v1774 = vrot.slane %v1703, 6
        %v1775 = vsel %vm292, %v1773, %v1774
        %v1776 = vrot.slane %v1704, 6
        %v1777 = vrot.slane %v1776, 4
        %v1778 = vrot.slane %v1705, 6
        %v1779 = vsel %vm292, %v1777, %v1778
        %v1780 = vrot.slane %v1778, 4
        %v1781 = vrot.slane %v1706, 6
        %v1782 = vsel %vm292, %v1780, %v1781
        %v1783 = vrot.slane %v1707, 6
        %v1784 = vrot.slane %v1783, 4
        %v1785 = vrot.slane %v1708, 6
        %v1786 = vsel %vm292, %v1784, %v1785
        %v1787 = vrot.slane %v1785, 4
        %v1788 = vrot.slane %v1709, 6
        %v1789 = vsel %vm292, %v1787, %v1788
        %1790 = vrot.lane.b32.xlu0 %v1737, 28
        %v1791 = vpop.permute.xlu0 %1790
        %1792 = vrot.lane.b32.xlu0 %v1740, 28
        %v1793 = vpop.permute.xlu0 %1792
        %1794 = vrot.lane.b32.xlu0 %v1744, 28
        %v1795 = vpop.permute.xlu0 %1794
        %1796 = vrot.lane.b32.xlu0 %v1747, 28
        %v1797 = vpop.permute.xlu0 %1796
        %1798 = vrot.lane.b32.xlu0 %v1751, 28
        %v1799 = vpop.permute.xlu0 %1798
        %1800 = vrot.lane.b32.xlu0 %v1754, 28
        %v1801 = vpop.permute.xlu0 %1800
        %1802 = vrot.lane.b32.xlu0 %v1758, 28
        %v1803 = vpop.permute.xlu0 %1802
        %1804 = vrot.lane.b32.xlu0 %v1761, 28
        %v1805 = vpop.permute.xlu0 %1804
        %1806 = vrot.lane.b32.xlu0 %v1765, 28
        %v1807 = vpop.permute.xlu0 %1806
        %1808 = vrot.lane.b32.xlu0 %v1768, 28
        %v1809 = vpop.permute.xlu0 %1808
        %1810 = vrot.lane.b32.xlu0 %v1772, 28
        %v1811 = vpop.permute.xlu0 %1810
        %1812 = vrot.lane.b32.xlu0 %v1775, 28
        %v1813 = vpop.permute.xlu0 %1812
        %1814 = vrot.lane.b32.xlu0 %v1779, 28
        %v1815 = vpop.permute.xlu0 %1814
        %1816 = vrot.lane.b32.xlu0 %v1782, 28
        %v1817 = vpop.permute.xlu0 %1816
        %1818 = vrot.lane.b32.xlu0 %v1786, 28
        %v1819 = vpop.permute.xlu0 %1818
        %1820 = vrot.lane.b32.xlu0 %v1789, 28
        %v1821 = vpop.permute.xlu0 %1820
        %vm1838 = vcmask 257248
        %1839 = vst.msk [vmem:[#allocation2] sm:$0xf] %vm1838, %v1791
        %1840 = vst.msk [vmem:[#allocation2 + $0x4] sm:$0xf] %vm1838, %v1793
        %1841 = vst.msk [vmem:[#allocation2 + $0x8] sm:$0xf] %vm1838, %v1795
        %1842 = vst.msk [vmem:[#allocation2 + $0xc] sm:$0xf] %vm1838, %v1797
        %1843 = vst.msk [vmem:[#allocation2 + $0x10] sm:$0xf] %vm1838, %v1799
        %1844 = vst.msk [vmem:[#allocation2 + $0x14] sm:$0xf] %vm1838, %v1801
        %1845 = vst.msk [vmem:[#allocation2 + $0x18] sm:$0xf] %vm1838, %v1803
        %1846 = vst.msk [vmem:[#allocation2 + $0x1c] sm:$0xf] %vm1838, %v1805
        %1847 = vst.msk [vmem:[#allocation2 + $0x20] sm:$0xf] %vm1838, %v1807
        %1848 = vst.msk [vmem:[#allocation2 + $0x24] sm:$0xf] %vm1838, %v1809
        %1849 = vst.msk [vmem:[#allocation2 + $0x28] sm:$0xf] %vm1838, %v1811
        %1850 = vst.msk [vmem:[#allocation2 + $0x2c] sm:$0xf] %vm1838, %v1813
        %1851 = vst.msk [vmem:[#allocation2 + $0x30] sm:$0xf] %vm1838, %v1815
        %1852 = vst.msk [vmem:[#allocation2 + $0x34] sm:$0xf] %vm1838, %v1817
        %1853 = vst.msk [vmem:[#allocation2 + $0x38] sm:$0xf] %vm1838, %v1819
        %1854 = vst.msk [vmem:[#allocation2 + $0x3c] sm:$0xf] %vm1838, %v1821
        %v1855 = vld [vmem:[%s1516] sm:$0x8]
        %v1856 = vld [vmem:[%s1516 + $0x4] sm:$0xf]
        %v1857 = vld [vmem:[%s1516 + $0x8] sm:$0x7]
        %v1858 = vld [vmem:[%s1516 + $0xc] sm:$0x8]
        %v1859 = vld [vmem:[%s1516 + $0x10] sm:$0xf]
        %v1860 = vld [vmem:[%s1516 + $0x14] sm:$0x7]
        %v1861 = vld [vmem:[%s1516 + $0x18] sm:$0x8]
        %v1862 = vld [vmem:[%s1516 + $0x1c] sm:$0xf]
        %v1863 = vld [vmem:[%s1516 + $0x20] sm:$0x7]
        %v1864 = vld [vmem:[%s1516 + $0x24] sm:$0x8]
        %v1865 = vld [vmem:[%s1516 + $0x28] sm:$0xf]
        %v1866 = vld [vmem:[%s1516 + $0x2c] sm:$0x7]
        %v1867 = vld [vmem:[%s1516 + $0x30] sm:$0x8]
        %v1868 = vld [vmem:[%s1516 + $0x34] sm:$0xf]
        %v1869 = vld [vmem:[%s1516 + $0x38] sm:$0x7]
        %v1870 = vld [vmem:[%s1516 + $0x3c] sm:$0x8]
        %v1871 = vld [vmem:[%s1516 + $0x40] sm:$0xf]
        %v1872 = vld [vmem:[%s1516 + $0x44] sm:$0x7]
        %v1873 = vld [vmem:[%s1516 + $0x48] sm:$0x8]
        %v1874 = vld [vmem:[%s1516 + $0x4c] sm:$0xf]
        %v1875 = vld [vmem:[%s1516 + $0x50] sm:$0x7]
        %v1876 = vld [vmem:[%s1516 + $0x54] sm:$0x8]
        %v1877 = vld [vmem:[%s1516 + $0x58] sm:$0xf]
        %v1878 = vld [vmem:[%s1516 + $0x5c] sm:$0x7]
        %v1903 = vrot.slane %v1855, 7
        %v1904 = vrot.slane %v1903, 4
        %v1905 = vrot.slane %v1856, 7
        %v1906 = vsel %vm884, %v1904, %v1905
        %v1907 = vrot.slane %v1905, 4
        %v1908 = vrot.slane %v1857, 7
        %v1909 = vsel %vm884, %v1907, %v1908
        %v1910 = vrot.slane %v1858, 7
        %v1911 = vrot.slane %v1910, 4
        %v1912 = vrot.slane %v1859, 7
        %v1913 = vsel %vm884, %v1911, %v1912
        %v1914 = vrot.slane %v1912, 4
        %v1915 = vrot.slane %v1860, 7
        %v1916 = vsel %vm884, %v1914, %v1915
        %v1917 = vrot.slane %v1861, 7
        %v1918 = vrot.slane %v1917, 4
        %v1919 = vrot.slane %v1862, 7
        %v1920 = vsel %vm884, %v1918, %v1919
        %v1921 = vrot.slane %v1919, 4
        %v1922 = vrot.slane %v1863, 7
        %v1923 = vsel %vm884, %v1921, %v1922
        %v1924 = vrot.slane %v1864, 7
        %v1925 = vrot.slane %v1924, 4
        %v1926 = vrot.slane %v1865, 7
        %v1927 = vsel %vm884, %v1925, %v1926
        %v1928 = vrot.slane %v1926, 4
        %v1929 = vrot.slane %v1866, 7
        %v1930 = vsel %vm884, %v1928, %v1929
        %v1931 = vrot.slane %v1867, 7
        %v1932 = vrot.slane %v1931, 4
        %v1933 = vrot.slane %v1868, 7
        %v1934 = vsel %vm884, %v1932, %v1933
        %v1935 = vrot.slane %v1933, 4
        %v1936 = vrot.slane %v1869, 7
        %v1937 = vsel %vm884, %v1935, %v1936
        %v1938 = vrot.slane %v1870, 7
        %v1939 = vrot.slane %v1938, 4
        %v1940 = vrot.slane %v1871, 7
        %v1941 = vsel %vm884, %v1939, %v1940
        %v1942 = vrot.slane %v1940, 4
        %v1943 = vrot.slane %v1872, 7
        %v1944 = vsel %vm884, %v1942, %v1943
        %v1945 = vrot.slane %v1873, 7
        %v1946 = vrot.slane %v1945, 4
        %v1947 = vrot.slane %v1874, 7
        %v1948 = vsel %vm884, %v1946, %v1947
        %v1949 = vrot.slane %v1947, 4
        %v1950 = vrot.slane %v1875, 7
        %v1951 = vsel %vm884, %v1949, %v1950
        %v1952 = vrot.slane %v1876, 7
        %v1953 = vrot.slane %v1952, 4
        %v1954 = vrot.slane %v1877, 7
        %v1955 = vsel %vm884, %v1953, %v1954
        %v1956 = vrot.slane %v1954, 4
        %v1957 = vrot.slane %v1878, 7
        %v1958 = vsel %vm884, %v1956, %v1957
        %1959 = vrot.lane.b32.xlu0 %v1906, 32
        %v1960 = vpop.permute.xlu0 %1959
        %1961 = vrot.lane.b32.xlu0 %v1909, 32
        %v1962 = vpop.permute.xlu0 %1961
        %1963 = vrot.lane.b32.xlu0 %v1913, 32
        %v1964 = vpop.permute.xlu0 %1963
        %1965 = vrot.lane.b32.xlu0 %v1916, 32
        %v1966 = vpop.permute.xlu0 %1965
        %1967 = vrot.lane.b32.xlu0 %v1920, 32
        %v1968 = vpop.permute.xlu0 %1967
        %1969 = vrot.lane.b32.xlu0 %v1923, 32
        %v1970 = vpop.permute.xlu0 %1969
        %1971 = vrot.lane.b32.xlu0 %v1927, 32
        %v1972 = vpop.permute.xlu0 %1971
        %1973 = vrot.lane.b32.xlu0 %v1930, 32
        %v1974 = vpop.permute.xlu0 %1973
        %1975 = vrot.lane.b32.xlu0 %v1934, 32
        %v1976 = vpop.permute.xlu0 %1975
        %1977 = vrot.lane.b32.xlu0 %v1937, 32
        %v1978 = vpop.permute.xlu0 %1977
        %1979 = vrot.lane.b32.xlu0 %v1941, 32
        %v1980 = vpop.permute.xlu0 %1979
        %1981 = vrot.lane.b32.xlu0 %v1944, 32
        %v1982 = vpop.permute.xlu0 %1981
        %1983 = vrot.lane.b32.xlu0 %v1948, 32
        %v1984 = vpop.permute.xlu0 %1983
        %1985 = vrot.lane.b32.xlu0 %v1951, 32
        %v1986 = vpop.permute.xlu0 %1985
        %1987 = vrot.lane.b32.xlu0 %v1955, 32
        %v1988 = vpop.permute.xlu0 %1987
        %1989 = vrot.lane.b32.xlu0 %v1958, 32
        %v1990 = vpop.permute.xlu0 %1989
        %vm2007 = vcmask 290048
        %2008 = vst.msk [vmem:[#allocation2] sm:$0xf] %vm2007, %v1960
        %2009 = vst.msk [vmem:[#allocation2 + $0x4] sm:$0xf] %vm2007, %v1962
        %2010 = vst.msk [vmem:[#allocation2 + $0x8] sm:$0xf] %vm2007, %v1964
        %2011 = vst.msk [vmem:[#allocation2 + $0xc] sm:$0xf] %vm2007, %v1966
        %2012 = vst.msk [vmem:[#allocation2 + $0x10] sm:$0xf] %vm2007, %v1968
        %2013 = vst.msk [vmem:[#allocation2 + $0x14] sm:$0xf] %vm2007, %v1970
        %2014 = vst.msk [vmem:[#allocation2 + $0x18] sm:$0xf] %vm2007, %v1972
        %2015 = vst.msk [vmem:[#allocation2 + $0x1c] sm:$0xf] %vm2007, %v1974
        %2016 = vst.msk [vmem:[#allocation2 + $0x20] sm:$0xf] %vm2007, %v1976
        %2017 = vst.msk [vmem:[#allocation2 + $0x24] sm:$0xf] %vm2007, %v1978
        %2018 = vst.msk [vmem:[#allocation2 + $0x28] sm:$0xf] %vm2007, %v1980
        %2019 = vst.msk [vmem:[#allocation2 + $0x2c] sm:$0xf] %vm2007, %v1982
        %2020 = vst.msk [vmem:[#allocation2 + $0x30] sm:$0xf] %vm2007, %v1984
        %2021 = vst.msk [vmem:[#allocation2 + $0x34] sm:$0xf] %vm2007, %v1986
        %2022 = vst.msk [vmem:[#allocation2 + $0x38] sm:$0xf] %vm2007, %v1988
        %2023 = vst.msk [vmem:[#allocation2 + $0x3c] sm:$0xf] %vm2007, %v1990
        %v2024 = vld [vmem:[#allocation2] sm:$0xf]
        %v2025 = vld [vmem:[#allocation2 + $0x4] sm:$0xf]
        %v2026 = vld [vmem:[#allocation2 + $0x8] sm:$0xf]
        %v2027 = vld [vmem:[#allocation2 + $0xc] sm:$0xf]
        %v2028 = vld [vmem:[#allocation2 + $0x10] sm:$0xf]
        %v2029 = vld [vmem:[#allocation2 + $0x14] sm:$0xf]
        %v2030 = vld [vmem:[#allocation2 + $0x18] sm:$0xf]
        %v2031 = vld [vmem:[#allocation2 + $0x1c] sm:$0xf]
        %v2032 = vld [vmem:[#allocation2 + $0x20] sm:$0xf]
        %v2033 = vld [vmem:[#allocation2 + $0x24] sm:$0xf]
        %v2034 = vld [vmem:[#allocation2 + $0x28] sm:$0xf]
        %v2035 = vld [vmem:[#allocation2 + $0x2c] sm:$0xf]
        %v2036 = vld [vmem:[#allocation2 + $0x30] sm:$0xf]
        %v2037 = vld [vmem:[#allocation2 + $0x34] sm:$0xf]
        %v2038 = vld [vmem:[#allocation2 + $0x38] sm:$0xf]
        %v2039 = vld [vmem:[#allocation2 + $0x3c] sm:$0xf]
        %v2040 = vld [vmem:[%s2] sm:$0xf]
        %v2041 = vld [vmem:[%s2 + $0x4] sm:$0xf]
        %v2042 = vld [vmem:[%s2 + $0x8] sm:$0xf]
        %v2043 = vld [vmem:[%s2 + $0xc] sm:$0xf]
        %v2044 = vld [vmem:[%s2 + $0x10] sm:$0x3]
        %v2061 = vunpack.c.l.b16 %v2024
        %v2062 = vunpack.c.l.b16 %v2025
        %v2063 = vunpack.c.l.b16 %v2026
        %v2064 = vunpack.c.l.b16 %v2027
        %v2065 = vunpack.c.l.b16 %v2028
        %v2066 = vunpack.c.l.b16 %v2029
        %v2067 = vunpack.c.l.b16 %v2030
        %v2068 = vunpack.c.l.b16 %v2031
        %v2069 = vunpack.c.l.b16 %v2032
        %v2070 = vunpack.c.l.b16 %v2033
        %v2071 = vunpack.c.l.b16 %v2034
        %v2072 = vunpack.c.l.b16 %v2035
        %v2073 = vunpack.c.l.b16 %v2036
        %v2074 = vunpack.c.l.b16 %v2037
        %v2075 = vunpack.c.l.b16 %v2038
        %v2076 = vunpack.c.l.b16 %v2039
        %v2077 = vpack.c.b16 %v2062, %v2061
        %v2078 = vpack.c.b16 %v2064, %v2063
        %v2079 = vpack.c.b16 %v2066, %v2065
        %v2080 = vpack.c.b16 %v2068, %v2067
        %v2081 = vpack.c.b16 %v2070, %v2069
        %v2082 = vpack.c.b16 %v2072, %v2071
        %v2083 = vpack.c.b16 %v2074, %v2073
        %v2084 = vpack.c.b16 %v2076, %v2075
        %v2090 = vunpack.c.l.b16 %v2040
        %v2091 = vunpack.c.l.b16 %v2041
        %v2092 = vunpack.c.l.b16 %v2042
        %v2093 = vunpack.c.l.b16 %v2043
        %v2094 = vunpack.c.l.b16 %v2044
        %v2095 = vpack.c.b16 %v2091, %v2090
        %v2096 = vpack.c.b16 %v2093, %v2092
        %v2097 = vpack.c.b16 %v2094, %v2094
        %vm2100 = vcmask 293888
        %v2102 = vsel %vm2100, %v2077, 0
        %v2105 = vsel %vm2100, %v2078, 0
        %v2108 = vsel %vm2100, %v2079, 0
        %v2111 = vsel %vm2100, %v2080, 0
        %v2114 = vsel %vm2100, %v2081, 0
        %v2117 = vsel %vm2100, %v2082, 0
        %v2120 = vsel %vm2100, %v2083, 0
        %v2123 = vsel %vm2100, %v2084, 0
        %v2126 = vsel %vm468, %v2097, 0
        %2128 = vmatpush.bf16.msra.mxu0 0
        %2129 = vmatpush.bf16.msra.mxu0 0
        %2130 = vmatpush.bf16.msra.mxu0 0
        %2131 = vmatpush.bf16.msra.mxu0 0
        %2132 = vmatpush.bf16.msra.mxu0 0
        %2133 = vmatpush.bf16.msra.mxu0 %v2126
        %2134 = vmatpush.bf16.msra.mxu0 %v2096
        %2135 = vmatpush.bf16.msra.mxu0 %v2095
        %2136 = vmatmul.bf16.gmra.mxu0 %v2102
        %v2137 = vpop.f32.mrf.mxu0
        %v2138 = vadd.f32 0.0, %v2137
        %v2139 = vpop.f32.mrf.mxu0
        %v2140 = vadd.f32 0.0, %v2139
        %2141 = vmatmul.bf16.gmra.mxu0 %v2105
        %v2142 = vpop.f32.mrf.mxu0
        %v2143 = vadd.f32 0.0, %v2142
        %v2144 = vpop.f32.mrf.mxu0
        %v2145 = vadd.f32 0.0, %v2144
        %2146 = vmatmul.bf16.gmra.mxu0 %v2108
        %v2147 = vpop.f32.mrf.mxu0
        %v2148 = vadd.f32 0.0, %v2147
        %v2149 = vpop.f32.mrf.mxu0
        %v2150 = vadd.f32 0.0, %v2149
        %2151 = vmatmul.bf16.gmra.mxu0 %v2111
        %v2152 = vpop.f32.mrf.mxu0
        %v2153 = vadd.f32 0.0, %v2152
        %v2154 = vpop.f32.mrf.mxu0
        %v2155 = vadd.f32 0.0, %v2154
        %2156 = vmatmul.bf16.gmra.mxu0 %v2114
        %v2157 = vpop.f32.mrf.mxu0
        %v2158 = vadd.f32 0.0, %v2157
        %v2159 = vpop.f32.mrf.mxu0
        %v2160 = vadd.f32 0.0, %v2159
        %2161 = vmatmul.bf16.gmra.mxu0 %v2117
        %v2162 = vpop.f32.mrf.mxu0
        %v2163 = vadd.f32 0.0, %v2162
        %v2164 = vpop.f32.mrf.mxu0
        %v2165 = vadd.f32 0.0, %v2164
        %2166 = vmatmul.bf16.gmra.mxu0 %v2120
        %v2167 = vpop.f32.mrf.mxu0
        %v2168 = vadd.f32 0.0, %v2167
        %v2169 = vpop.f32.mrf.mxu0
        %v2170 = vadd.f32 0.0, %v2169
        %2171 = vmatmul.bf16.gmra.mxu0 %v2123
        %v2172 = vpop.f32.mrf.mxu0
        %v2173 = vadd.f32 0.0, %v2172
        %v2174 = vpop.f32.mrf.mxu0
        %v2175 = vadd.f32 0.0, %v2174
        %2176 = vdwg.mxu0
        %s2177 = smul.u32 %s237, 3
        %s2178 = smul.addr %s2177, 4
        %s2179 = scalar_lea.vmem %s224, %s2178
        %v2180 = vld [vmem:[%s2179] sm:$0xf]
        %v2181 = vld [vmem:[%s2179 + $0x4] sm:$0xf]
        %v2182 = vld [vmem:[%s2179 + $0xc] sm:$0xf]
        %v2183 = vld [vmem:[%s2179 + $0x10] sm:$0xf]
        %v2184 = vld [vmem:[%s2179 + $0x18] sm:$0xf]
        %v2185 = vld [vmem:[%s2179 + $0x1c] sm:$0xf]
        %v2186 = vld [vmem:[%s2179 + $0x24] sm:$0xf]
        %v2187 = vld [vmem:[%s2179 + $0x28] sm:$0xf]
        %v2188 = vld [vmem:[%s2179 + $0x30] sm:$0xf]
        %v2189 = vld [vmem:[%s2179 + $0x34] sm:$0xf]
        %v2190 = vld [vmem:[%s2179 + $0x3c] sm:$0xf]
        %v2191 = vld [vmem:[%s2179 + $0x40] sm:$0xf]
        %v2192 = vld [vmem:[%s2179 + $0x48] sm:$0xf]
        %v2193 = vld [vmem:[%s2179 + $0x4c] sm:$0xf]
        %v2194 = vld [vmem:[%s2179 + $0x54] sm:$0xf]
        %v2195 = vld [vmem:[%s2179 + $0x58] sm:$0xf]
        %2196 = vst.msk [vmem:[#allocation2] sm:$0xf] %vm648, %v2180
        %2197 = vst.msk [vmem:[#allocation2 + $0x4] sm:$0xf] %vm648, %v2181
        %2198 = vst.msk [vmem:[#allocation2 + $0x8] sm:$0xf] %vm648, %v2182
        %2199 = vst.msk [vmem:[#allocation2 + $0xc] sm:$0xf] %vm648, %v2183
        %2200 = vst.msk [vmem:[#allocation2 + $0x10] sm:$0xf] %vm648, %v2184
        %2201 = vst.msk [vmem:[#allocation2 + $0x14] sm:$0xf] %vm648, %v2185
        %2202 = vst.msk [vmem:[#allocation2 + $0x18] sm:$0xf] %vm648, %v2186
        %2203 = vst.msk [vmem:[#allocation2 + $0x1c] sm:$0xf] %vm648, %v2187
        %2204 = vst.msk [vmem:[#allocation2 + $0x20] sm:$0xf] %vm648, %v2188
        %2205 = vst.msk [vmem:[#allocation2 + $0x24] sm:$0xf] %vm648, %v2189
        %2206 = vst.msk [vmem:[#allocation2 + $0x28] sm:$0xf] %vm648, %v2190
        %2207 = vst.msk [vmem:[#allocation2 + $0x2c] sm:$0xf] %vm648, %v2191
        %2208 = vst.msk [vmem:[#allocation2 + $0x30] sm:$0xf] %vm648, %v2192
        %2209 = vst.msk [vmem:[#allocation2 + $0x34] sm:$0xf] %vm648, %v2193
        %2210 = vst.msk [vmem:[#allocation2 + $0x38] sm:$0xf] %vm648, %v2194
        %2211 = vst.msk [vmem:[#allocation2 + $0x3c] sm:$0xf] %vm648, %v2195
        %v2212 = vld [vmem:[%s2179] sm:$0xc]
        %v2213 = vld [vmem:[%s2179 + $0x4] sm:$0xf]
        %v2214 = vld [vmem:[%s2179 + $0x8] sm:$0x3]
        %v2215 = vld [vmem:[%s2179 + $0xc] sm:$0xc]
        %v2216 = vld [vmem:[%s2179 + $0x10] sm:$0xf]
        %v2217 = vld [vmem:[%s2179 + $0x14] sm:$0x3]
        %v2218 = vld [vmem:[%s2179 + $0x18] sm:$0xc]
        %v2219 = vld [vmem:[%s2179 + $0x1c] sm:$0xf]
        %v2220 = vld [vmem:[%s2179 + $0x20] sm:$0x3]
        %v2221 = vld [vmem:[%s2179 + $0x24] sm:$0xc]
        %v2222 = vld [vmem:[%s2179 + $0x28] sm:$0xf]
        %v2223 = vld [vmem:[%s2179 + $0x2c] sm:$0x3]
        %v2224 = vld [vmem:[%s2179 + $0x30] sm:$0xc]
        %v2225 = vld [vmem:[%s2179 + $0x34] sm:$0xf]
        %v2226 = vld [vmem:[%s2179 + $0x38] sm:$0x3]
        %v2227 = vld [vmem:[%s2179 + $0x3c] sm:$0xc]
        %v2228 = vld [vmem:[%s2179 + $0x40] sm:$0xf]
        %v2229 = vld [vmem:[%s2179 + $0x44] sm:$0x3]
        %v2230 = vld [vmem:[%s2179 + $0x48] sm:$0xc]
        %v2231 = vld [vmem:[%s2179 + $0x4c] sm:$0xf]
        %v2232 = vld [vmem:[%s2179 + $0x50] sm:$0x3]
        %v2233 = vld [vmem:[%s2179 + $0x54] sm:$0xc]
        %v2234 = vld [vmem:[%s2179 + $0x58] sm:$0xf]
        %v2235 = vld [vmem:[%s2179 + $0x5c] sm:$0x3]
        %v2260 = vrot.slane %v2212, 6
        %v2261 = vrot.slane %v2260, 4
        %v2262 = vrot.slane %v2213, 6
        %v2263 = vsel %vm292, %v2261, %v2262
        %v2264 = vrot.slane %v2262, 4
        %v2265 = vrot.slane %v2214, 6
        %v2266 = vsel %vm292, %v2264, %v2265
        %v2267 = vrot.slane %v2215, 6
        %v2268 = vrot.slane %v2267, 4
        %v2269 = vrot.slane %v2216, 6
        %v2270 = vsel %vm292, %v2268, %v2269
        %v2271 = vrot.slane %v2269, 4
        %v2272 = vrot.slane %v2217, 6
        %v2273 = vsel %vm292, %v2271, %v2272
        %v2274 = vrot.slane %v2218, 6
        %v2275 = vrot.slane %v2274, 4
        %v2276 = vrot.slane %v2219, 6
        %v2277 = vsel %vm292, %v2275, %v2276
        %v2278 = vrot.slane %v2276, 4
        %v2279 = vrot.slane %v2220, 6
        %v2280 = vsel %vm292, %v2278, %v2279
        %v2281 = vrot.slane %v2221, 6
        %v2282 = vrot.slane %v2281, 4
        %v2283 = vrot.slane %v2222, 6
        %v2284 = vsel %vm292, %v2282, %v2283
        %v2285 = vrot.slane %v2283, 4
        %v2286 = vrot.slane %v2223, 6
        %v2287 = vsel %vm292, %v2285, %v2286
        %v2288 = vrot.slane %v2224, 6
        %v2289 = vrot.slane %v2288, 4
        %v2290 = vrot.slane %v2225, 6
        %v2291 = vsel %vm292, %v2289, %v2290
        %v2292 = vrot.slane %v2290, 4
        %v2293 = vrot.slane %v2226, 6
        %v2294 = vsel %vm292, %v2292, %v2293
        %v2295 = vrot.slane %v2227, 6
        %v2296 = vrot.slane %v2295, 4
        %v2297 = vrot.slane %v2228, 6
        %v2298 = vsel %vm292, %v2296, %v2297
        %v2299 = vrot.slane %v2297, 4
        %v2300 = vrot.slane %v2229, 6
        %v2301 = vsel %vm292, %v2299, %v2300
        %v2302 = vrot.slane %v2230, 6
        %v2303 = vrot.slane %v2302, 4
        %v2304 = vrot.slane %v2231, 6
        %v2305 = vsel %vm292, %v2303, %v2304
        %v2306 = vrot.slane %v2304, 4
        %v2307 = vrot.slane %v2232, 6
        %v2308 = vsel %vm292, %v2306, %v2307
        %v2309 = vrot.slane %v2233, 6
        %v2310 = vrot.slane %v2309, 4
        %v2311 = vrot.slane %v2234, 6
        %v2312 = vsel %vm292, %v2310, %v2311
        %v2313 = vrot.slane %v2311, 4
        %v2314 = vrot.slane %v2235, 6
        %v2315 = vsel %vm292, %v2313, %v2314
        %2316 = vrot.lane.b32.xlu0 %v2263, 4
        %v2317 = vpop.permute.xlu0 %2316
        %2318 = vrot.lane.b32.xlu0 %v2266, 4
        %v2319 = vpop.permute.xlu0 %2318
        %2320 = vrot.lane.b32.xlu0 %v2270, 4
        %v2321 = vpop.permute.xlu0 %2320
        %2322 = vrot.lane.b32.xlu0 %v2273, 4
        %v2323 = vpop.permute.xlu0 %2322
        %2324 = vrot.lane.b32.xlu0 %v2277, 4
        %v2325 = vpop.permute.xlu0 %2324
        %2326 = vrot.lane.b32.xlu0 %v2280, 4
        %v2327 = vpop.permute.xlu0 %2326
        %2328 = vrot.lane.b32.xlu0 %v2284, 4
        %v2329 = vpop.permute.xlu0 %2328
        %2330 = vrot.lane.b32.xlu0 %v2287, 4
        %v2331 = vpop.permute.xlu0 %2330
        %2332 = vrot.lane.b32.xlu0 %v2291, 4
        %v2333 = vpop.permute.xlu0 %2332
        %2334 = vrot.lane.b32.xlu0 %v2294, 4
        %v2335 = vpop.permute.xlu0 %2334
        %2336 = vrot.lane.b32.xlu0 %v2298, 4
        %v2337 = vpop.permute.xlu0 %2336
        %2338 = vrot.lane.b32.xlu0 %v2301, 4
        %v2339 = vpop.permute.xlu0 %2338
        %2340 = vrot.lane.b32.xlu0 %v2305, 4
        %v2341 = vpop.permute.xlu0 %2340
        %2342 = vrot.lane.b32.xlu0 %v2308, 4
        %v2343 = vpop.permute.xlu0 %2342
        %2344 = vrot.lane.b32.xlu0 %v2312, 4
        %v2345 = vpop.permute.xlu0 %2344
        %2346 = vrot.lane.b32.xlu0 %v2315, 4
        %v2347 = vpop.permute.xlu0 %2346
        %2364 = vst.msk [vmem:[#allocation2] sm:$0xf] %vm817, %v2317
        %2365 = vst.msk [vmem:[#allocation2 + $0x4] sm:$0xf] %vm817, %v2319
        %2366 = vst.msk [vmem:[#allocation2 + $0x8] sm:$0xf] %vm817, %v2321
        %2367 = vst.msk [vmem:[#allocation2 + $0xc] sm:$0xf] %vm817, %v2323
        %2368 = vst.msk [vmem:[#allocation2 + $0x10] sm:$0xf] %vm817, %v2325
        %2369 = vst.msk [vmem:[#allocation2 + $0x14] sm:$0xf] %vm817, %v2327
        %2370 = vst.msk [vmem:[#allocation2 + $0x18] sm:$0xf] %vm817, %v2329
        %2371 = vst.msk [vmem:[#allocation2 + $0x1c] sm:$0xf] %vm817, %v2331
        %2372 = vst.msk [vmem:[#allocation2 + $0x20] sm:$0xf] %vm817, %v2333
        %2373 = vst.msk [vmem:[#allocation2 + $0x24] sm:$0xf] %vm817, %v2335
        %2374 = vst.msk [vmem:[#allocation2 + $0x28] sm:$0xf] %vm817, %v2337
        %2375 = vst.msk [vmem:[#allocation2 + $0x2c] sm:$0xf] %vm817, %v2339
        %2376 = vst.msk [vmem:[#allocation2 + $0x30] sm:$0xf] %vm817, %v2341
        %2377 = vst.msk [vmem:[#allocation2 + $0x34] sm:$0xf] %vm817, %v2343
        %2378 = vst.msk [vmem:[#allocation2 + $0x38] sm:$0xf] %vm817, %v2345
        %2379 = vst.msk [vmem:[#allocation2 + $0x3c] sm:$0xf] %vm817, %v2347
        %v2380 = vld [vmem:[%s2179 + $0x4] sm:$0xf]
        %v2381 = vld [vmem:[%s2179 + $0x8] sm:$0xf]
        %v2382 = vld [vmem:[%s2179 + $0x10] sm:$0xf]
        %v2383 = vld [vmem:[%s2179 + $0x14] sm:$0xf]
        %v2384 = vld [vmem:[%s2179 + $0x1c] sm:$0xf]
        %v2385 = vld [vmem:[%s2179 + $0x20] sm:$0xf]
        %v2386 = vld [vmem:[%s2179 + $0x28] sm:$0xf]
        %v2387 = vld [vmem:[%s2179 + $0x2c] sm:$0xf]
        %v2388 = vld [vmem:[%s2179 + $0x34] sm:$0xf]
        %v2389 = vld [vmem:[%s2179 + $0x38] sm:$0xf]
        %v2390 = vld [vmem:[%s2179 + $0x40] sm:$0xf]
        %v2391 = vld [vmem:[%s2179 + $0x44] sm:$0xf]
        %v2392 = vld [vmem:[%s2179 + $0x4c] sm:$0xf]
        %v2393 = vld [vmem:[%s2179 + $0x50] sm:$0xf]
        %v2394 = vld [vmem:[%s2179 + $0x58] sm:$0xf]
        %v2395 = vld [vmem:[%s2179 + $0x5c] sm:$0xf]
        %2412 = vrot.lane.b32.xlu0 %v2380, 8
        %v2413 = vpop.permute.xlu0 %2412
        %2414 = vrot.lane.b32.xlu0 %v2381, 8
        %v2415 = vpop.permute.xlu0 %2414
        %2416 = vrot.lane.b32.xlu0 %v2382, 8
        %v2417 = vpop.permute.xlu0 %2416
        %2418 = vrot.lane.b32.xlu0 %v2383, 8
        %v2419 = vpop.permute.xlu0 %2418
        %2420 = vrot.lane.b32.xlu0 %v2384, 8
        %v2421 = vpop.permute.xlu0 %2420
        %2422 = vrot.lane.b32.xlu0 %v2385, 8
        %v2423 = vpop.permute.xlu0 %2422
        %2424 = vrot.lane.b32.xlu0 %v2386, 8
        %v2425 = vpop.permute.xlu0 %2424
        %2426 = vrot.lane.b32.xlu0 %v2387, 8
        %v2427 = vpop.permute.xlu0 %2426
        %2428 = vrot.lane.b32.xlu0 %v2388, 8
        %v2429 = vpop.permute.xlu0 %2428
        %2430 = vrot.lane.b32.xlu0 %v2389, 8
        %v2431 = vpop.permute.xlu0 %2430
        %2432 = vrot.lane.b32.xlu0 %v2390, 8
        %v2433 = vpop.permute.xlu0 %2432
        %2434 = vrot.lane.b32.xlu0 %v2391, 8
        %v2435 = vpop.permute.xlu0 %2434
        %2436 = vrot.lane.b32.xlu0 %v2392, 8
        %v2437 = vpop.permute.xlu0 %2436
        %2438 = vrot.lane.b32.xlu0 %v2393, 8
        %v2439 = vpop.permute.xlu0 %2438
        %2440 = vrot.lane.b32.xlu0 %v2394, 8
        %v2441 = vpop.permute.xlu0 %2440
        %2442 = vrot.lane.b32.xlu0 %v2395, 8
        %v2443 = vpop.permute.xlu0 %2442
        %2460 = vst.msk [vmem:[#allocation2] sm:$0xf] %vm989, %v2413
        %2461 = vst.msk [vmem:[#allocation2 + $0x4] sm:$0xf] %vm989, %v2415
        %2462 = vst.msk [vmem:[#allocation2 + $0x8] sm:$0xf] %vm989, %v2417
        %2463 = vst.msk [vmem:[#allocation2 + $0xc] sm:$0xf] %vm989, %v2419
        %2464 = vst.msk [vmem:[#allocation2 + $0x10] sm:$0xf] %vm989, %v2421
        %2465 = vst.msk [vmem:[#allocation2 + $0x14] sm:$0xf] %vm989, %v2423
        %2466 = vst.msk [vmem:[#allocation2 + $0x18] sm:$0xf] %vm989, %v2425
        %2467 = vst.msk [vmem:[#allocation2 + $0x1c] sm:$0xf] %vm989, %v2427
        %2468 = vst.msk [vmem:[#allocation2 + $0x20] sm:$0xf] %vm989, %v2429
        %2469 = vst.msk [vmem:[#allocation2 + $0x24] sm:$0xf] %vm989, %v2431
        %2470 = vst.msk [vmem:[#allocation2 + $0x28] sm:$0xf] %vm989, %v2433
        %2471 = vst.msk [vmem:[#allocation2 + $0x2c] sm:$0xf] %vm989, %v2435
        %2472 = vst.msk [vmem:[#allocation2 + $0x30] sm:$0xf] %vm989, %v2437
        %2473 = vst.msk [vmem:[#allocation2 + $0x34] sm:$0xf] %vm989, %v2439
        %2474 = vst.msk [vmem:[#allocation2 + $0x38] sm:$0xf] %vm989, %v2441
        %2475 = vst.msk [vmem:[#allocation2 + $0x3c] sm:$0xf] %vm989, %v2443
        %v2476 = vld [vmem:[%s241] sm:$0xf]
        %v2477 = vld [vmem:[%s241 + $0x4] sm:$0xf]
        %v2478 = vld [vmem:[%s241 + $0xc] sm:$0xf]
        %v2479 = vld [vmem:[%s241 + $0x10] sm:$0xf]
        %v2480 = vld [vmem:[%s241 + $0x18] sm:$0xf]
        %v2481 = vld [vmem:[%s241 + $0x1c] sm:$0xf]
        %v2482 = vld [vmem:[%s241 + $0x24] sm:$0xf]
        %v2483 = vld [vmem:[%s241 + $0x28] sm:$0xf]
        %v2484 = vld [vmem:[%s241 + $0x30] sm:$0xf]
        %v2485 = vld [vmem:[%s241 + $0x34] sm:$0xf]
        %v2486 = vld [vmem:[%s241 + $0x3c] sm:$0xf]
        %v2487 = vld [vmem:[%s241 + $0x40] sm:$0xf]
        %v2488 = vld [vmem:[%s241 + $0x48] sm:$0xf]
        %v2489 = vld [vmem:[%s241 + $0x4c] sm:$0xf]
        %v2490 = vld [vmem:[%s241 + $0x54] sm:$0xf]
        %v2491 = vld [vmem:[%s241 + $0x58] sm:$0xf]
        %2508 = vrot.lane.b32.xlu0 %v2476, 12
        %v2509 = vpop.permute.xlu0 %2508
        %2510 = vrot.lane.b32.xlu0 %v2477, 12
        %v2511 = vpop.permute.xlu0 %2510
        %2512 = vrot.lane.b32.xlu0 %v2478, 12
        %v2513 = vpop.permute.xlu0 %2512
        %2514 = vrot.lane.b32.xlu0 %v2479, 12
        %v2515 = vpop.permute.xlu0 %2514
        %2516 = vrot.lane.b32.xlu0 %v2480, 12
        %v2517 = vpop.permute.xlu0 %2516
        %2518 = vrot.lane.b32.xlu0 %v2481, 12
        %v2519 = vpop.permute.xlu0 %2518
        %2520 = vrot.lane.b32.xlu0 %v2482, 12
        %v2521 = vpop.permute.xlu0 %2520
        %2522 = vrot.lane.b32.xlu0 %v2483, 12
        %v2523 = vpop.permute.xlu0 %2522
        %2524 = vrot.lane.b32.xlu0 %v2484, 12
        %v2525 = vpop.permute.xlu0 %2524
        %2526 = vrot.lane.b32.xlu0 %v2485, 12
        %v2527 = vpop.permute.xlu0 %2526
        %2528 = vrot.lane.b32.xlu0 %v2486, 12
        %v2529 = vpop.permute.xlu0 %2528
        %2530 = vrot.lane.b32.xlu0 %v2487, 12
        %v2531 = vpop.permute.xlu0 %2530
        %2532 = vrot.lane.b32.xlu0 %v2488, 12
        %v2533 = vpop.permute.xlu0 %2532
        %2534 = vrot.lane.b32.xlu0 %v2489, 12
        %v2535 = vpop.permute.xlu0 %2534
        %2536 = vrot.lane.b32.xlu0 %v2490, 12
        %v2537 = vpop.permute.xlu0 %2536
        %2538 = vrot.lane.b32.xlu0 %v2491, 12
        %v2539 = vpop.permute.xlu0 %2538
        %2556 = vst.msk [vmem:[#allocation2] sm:$0xf] %vm1158, %v2509
        %2557 = vst.msk [vmem:[#allocation2 + $0x4] sm:$0xf] %vm1158, %v2511
        %2558 = vst.msk [vmem:[#allocation2 + $0x8] sm:$0xf] %vm1158, %v2513
        %2559 = vst.msk [vmem:[#allocation2 + $0xc] sm:$0xf] %vm1158, %v2515
        %2560 = vst.msk [vmem:[#allocation2 + $0x10] sm:$0xf] %vm1158, %v2517
        %2561 = vst.msk [vmem:[#allocation2 + $0x14] sm:$0xf] %vm1158, %v2519
        %2562 = vst.msk [vmem:[#allocation2 + $0x18] sm:$0xf] %vm1158, %v2521
        %2563 = vst.msk [vmem:[#allocation2 + $0x1c] sm:$0xf] %vm1158, %v2523
        %2564 = vst.msk [vmem:[#allocation2 + $0x20] sm:$0xf] %vm1158, %v2525
        %2565 = vst.msk [vmem:[#allocation2 + $0x24] sm:$0xf] %vm1158, %v2527
        %2566 = vst.msk [vmem:[#allocation2 + $0x28] sm:$0xf] %vm1158, %v2529
        %2567 = vst.msk [vmem:[#allocation2 + $0x2c] sm:$0xf] %vm1158, %v2531
        %2568 = vst.msk [vmem:[#allocation2 + $0x30] sm:$0xf] %vm1158, %v2533
        %2569 = vst.msk [vmem:[#allocation2 + $0x34] sm:$0xf] %vm1158, %v2535
        %2570 = vst.msk [vmem:[#allocation2 + $0x38] sm:$0xf] %vm1158, %v2537
        %2571 = vst.msk [vmem:[#allocation2 + $0x3c] sm:$0xf] %vm1158, %v2539
        %v2572 = vld [vmem:[%s241] sm:$0xc]
        %v2573 = vld [vmem:[%s241 + $0x4] sm:$0xf]
        %v2574 = vld [vmem:[%s241 + $0x8] sm:$0x3]
        %v2575 = vld [vmem:[%s241 + $0xc] sm:$0xc]
        %v2576 = vld [vmem:[%s241 + $0x10] sm:$0xf]
        %v2577 = vld [vmem:[%s241 + $0x14] sm:$0x3]
        %v2578 = vld [vmem:[%s241 + $0x18] sm:$0xc]
        %v2579 = vld [vmem:[%s241 + $0x1c] sm:$0xf]
        %v2580 = vld [vmem:[%s241 + $0x20] sm:$0x3]
        %v2581 = vld [vmem:[%s241 + $0x24] sm:$0xc]
        %v2582 = vld [vmem:[%s241 + $0x28] sm:$0xf]
        %v2583 = vld [vmem:[%s241 + $0x2c] sm:$0x3]
        %v2584 = vld [vmem:[%s241 + $0x30] sm:$0xc]
        %v2585 = vld [vmem:[%s241 + $0x34] sm:$0xf]
        %v2586 = vld [vmem:[%s241 + $0x38] sm:$0x3]
        %v2587 = vld [vmem:[%s241 + $0x3c] sm:$0xc]
        %v2588 = vld [vmem:[%s241 + $0x40] sm:$0xf]
        %v2589 = vld [vmem:[%s241 + $0x44] sm:$0x3]
        %v2590 = vld [vmem:[%s241 + $0x48] sm:$0xc]
        %v2591 = vld [vmem:[%s241 + $0x4c] sm:$0xf]
        %v2592 = vld [vmem:[%s241 + $0x50] sm:$0x3]
        %v2593 = vld [vmem:[%s241 + $0x54] sm:$0xc]
        %v2594 = vld [vmem:[%s241 + $0x58] sm:$0xf]
        %v2595 = vld [vmem:[%s241 + $0x5c] sm:$0x3]
        %v2620 = vrot.slane %v2572, 6
        %v2621 = vrot.slane %v2620, 4
        %v2622 = vrot.slane %v2573, 6
        %v2623 = vsel %vm292, %v2621, %v2622
        %v2624 = vrot.slane %v2622, 4
        %v2625 = vrot.slane %v2574, 6
        %v2626 = vsel %vm292, %v2624, %v2625
        %v2627 = vrot.slane %v2575, 6
        %v2628 = vrot.slane %v2627, 4
        %v2629 = vrot.slane %v2576, 6
        %v2630 = vsel %vm292, %v2628, %v2629
        %v2631 = vrot.slane %v2629, 4
        %v2632 = vrot.slane %v2577, 6
        %v2633 = vsel %vm292, %v2631, %v2632
        %v2634 = vrot.slane %v2578, 6
        %v2635 = vrot.slane %v2634, 4
        %v2636 = vrot.slane %v2579, 6
        %v2637 = vsel %vm292, %v2635, %v2636
        %v2638 = vrot.slane %v2636, 4
        %v2639 = vrot.slane %v2580, 6
        %v2640 = vsel %vm292, %v2638, %v2639
        %v2641 = vrot.slane %v2581, 6
        %v2642 = vrot.slane %v2641, 4
        %v2643 = vrot.slane %v2582, 6
        %v2644 = vsel %vm292, %v2642, %v2643
        %v2645 = vrot.slane %v2643, 4
        %v2646 = vrot.slane %v2583, 6
        %v2647 = vsel %vm292, %v2645, %v2646
        %v2648 = vrot.slane %v2584, 6
        %v2649 = vrot.slane %v2648, 4
        %v2650 = vrot.slane %v2585, 6
        %v2651 = vsel %vm292, %v2649, %v2650
        %v2652 = vrot.slane %v2650, 4
        %v2653 = vrot.slane %v2586, 6
        %v2654 = vsel %vm292, %v2652, %v2653
        %v2655 = vrot.slane %v2587, 6
        %v2656 = vrot.slane %v2655, 4
        %v2657 = vrot.slane %v2588, 6
        %v2658 = vsel %vm292, %v2656, %v2657
        %v2659 = vrot.slane %v2657, 4
        %v2660 = vrot.slane %v2589, 6
        %v2661 = vsel %vm292, %v2659, %v2660
        %v2662 = vrot.slane %v2590, 6
        %v2663 = vrot.slane %v2662, 4
        %v2664 = vrot.slane %v2591, 6
        %v2665 = vsel %vm292, %v2663, %v2664
        %v2666 = vrot.slane %v2664, 4
        %v2667 = vrot.slane %v2592, 6
        %v2668 = vsel %vm292, %v2666, %v2667
        %v2669 = vrot.slane %v2593, 6
        %v2670 = vrot.slane %v2669, 4
        %v2671 = vrot.slane %v2594, 6
        %v2672 = vsel %vm292, %v2670, %v2671
        %v2673 = vrot.slane %v2671, 4
        %v2674 = vrot.slane %v2595, 6
        %v2675 = vsel %vm292, %v2673, %v2674
        %2676 = vrot.lane.b32.xlu0 %v2623, 16
        %v2677 = vpop.permute.xlu0 %2676
        %2678 = vrot.lane.b32.xlu0 %v2626, 16
        %v2679 = vpop.permute.xlu0 %2678
        %2680 = vrot.lane.b32.xlu0 %v2630, 16
        %v2681 = vpop.permute.xlu0 %2680
        %2682 = vrot.lane.b32.xlu0 %v2633, 16
        %v2683 = vpop.permute.xlu0 %2682
        %2684 = vrot.lane.b32.xlu0 %v2637, 16
        %v2685 = vpop.permute.xlu0 %2684
        %2686 = vrot.lane.b32.xlu0 %v2640, 16
        %v2687 = vpop.permute.xlu0 %2686
        %2688 = vrot.lane.b32.xlu0 %v2644, 16
        %v2689 = vpop.permute.xlu0 %2688
        %2690 = vrot.lane.b32.xlu0 %v2647, 16
        %v2691 = vpop.permute.xlu0 %2690
        %2692 = vrot.lane.b32.xlu0 %v2651, 16
        %v2693 = vpop.permute.xlu0 %2692
        %2694 = vrot.lane.b32.xlu0 %v2654, 16
        %v2695 = vpop.permute.xlu0 %2694
        %2696 = vrot.lane.b32.xlu0 %v2658, 16
        %v2697 = vpop.permute.xlu0 %2696
        %2698 = vrot.lane.b32.xlu0 %v2661, 16
        %v2699 = vpop.permute.xlu0 %2698
        %2700 = vrot.lane.b32.xlu0 %v2665, 16
        %v2701 = vpop.permute.xlu0 %2700
        %2702 = vrot.lane.b32.xlu0 %v2668, 16
        %v2703 = vpop.permute.xlu0 %2702
        %2704 = vrot.lane.b32.xlu0 %v2672, 16
        %v2705 = vpop.permute.xlu0 %2704
        %2706 = vrot.lane.b32.xlu0 %v2675, 16
        %v2707 = vpop.permute.xlu0 %2706
        %2724 = vst.msk [vmem:[#allocation2] sm:$0xf] %vm1327, %v2677
        %2725 = vst.msk [vmem:[#allocation2 + $0x4] sm:$0xf] %vm1327, %v2679
        %2726 = vst.msk [vmem:[#allocation2 + $0x8] sm:$0xf] %vm1327, %v2681
        %2727 = vst.msk [vmem:[#allocation2 + $0xc] sm:$0xf] %vm1327, %v2683
        %2728 = vst.msk [vmem:[#allocation2 + $0x10] sm:$0xf] %vm1327, %v2685
        %2729 = vst.msk [vmem:[#allocation2 + $0x14] sm:$0xf] %vm1327, %v2687
        %2730 = vst.msk [vmem:[#allocation2 + $0x18] sm:$0xf] %vm1327, %v2689
        %2731 = vst.msk [vmem:[#allocation2 + $0x1c] sm:$0xf] %vm1327, %v2691
        %2732 = vst.msk [vmem:[#allocation2 + $0x20] sm:$0xf] %vm1327, %v2693
        %2733 = vst.msk [vmem:[#allocation2 + $0x24] sm:$0xf] %vm1327, %v2695
        %2734 = vst.msk [vmem:[#allocation2 + $0x28] sm:$0xf] %vm1327, %v2697
        %2735 = vst.msk [vmem:[#allocation2 + $0x2c] sm:$0xf] %vm1327, %v2699
        %2736 = vst.msk [vmem:[#allocation2 + $0x30] sm:$0xf] %vm1327, %v2701
        %2737 = vst.msk [vmem:[#allocation2 + $0x34] sm:$0xf] %vm1327, %v2703
        %2738 = vst.msk [vmem:[#allocation2 + $0x38] sm:$0xf] %vm1327, %v2705
        %2739 = vst.msk [vmem:[#allocation2 + $0x3c] sm:$0xf] %vm1327, %v2707
        %v2740 = vld [vmem:[%s241 + $0x4] sm:$0xf]
        %v2741 = vld [vmem:[%s241 + $0x8] sm:$0xf]
        %v2742 = vld [vmem:[%s241 + $0x10] sm:$0xf]
        %v2743 = vld [vmem:[%s241 + $0x14] sm:$0xf]
        %v2744 = vld [vmem:[%s241 + $0x1c] sm:$0xf]
        %v2745 = vld [vmem:[%s241 + $0x20] sm:$0xf]
        %v2746 = vld [vmem:[%s241 + $0x28] sm:$0xf]
        %v2747 = vld [vmem:[%s241 + $0x2c] sm:$0xf]
        %v2748 = vld [vmem:[%s241 + $0x34] sm:$0xf]
        %v2749 = vld [vmem:[%s241 + $0x38] sm:$0xf]
        %v2750 = vld [vmem:[%s241 + $0x40] sm:$0xf]
        %v2751 = vld [vmem:[%s241 + $0x44] sm:$0xf]
        %v2752 = vld [vmem:[%s241 + $0x4c] sm:$0xf]
        %v2753 = vld [vmem:[%s241 + $0x50] sm:$0xf]
        %v2754 = vld [vmem:[%s241 + $0x58] sm:$0xf]
        %v2755 = vld [vmem:[%s241 + $0x5c] sm:$0xf]
        %2772 = vrot.lane.b32.xlu0 %v2740, 20
        %v2773 = vpop.permute.xlu0 %2772
        %2774 = vrot.lane.b32.xlu0 %v2741, 20
        %v2775 = vpop.permute.xlu0 %2774
        %2776 = vrot.lane.b32.xlu0 %v2742, 20
        %v2777 = vpop.permute.xlu0 %2776
        %2778 = vrot.lane.b32.xlu0 %v2743, 20
        %v2779 = vpop.permute.xlu0 %2778
        %2780 = vrot.lane.b32.xlu0 %v2744, 20
        %v2781 = vpop.permute.xlu0 %2780
        %2782 = vrot.lane.b32.xlu0 %v2745, 20
        %v2783 = vpop.permute.xlu0 %2782
        %2784 = vrot.lane.b32.xlu0 %v2746, 20
        %v2785 = vpop.permute.xlu0 %2784
        %2786 = vrot.lane.b32.xlu0 %v2747, 20
        %v2787 = vpop.permute.xlu0 %2786
        %2788 = vrot.lane.b32.xlu0 %v2748, 20
        %v2789 = vpop.permute.xlu0 %2788
        %2790 = vrot.lane.b32.xlu0 %v2749, 20
        %v2791 = vpop.permute.xlu0 %2790
        %2792 = vrot.lane.b32.xlu0 %v2750, 20
        %v2793 = vpop.permute.xlu0 %2792
        %2794 = vrot.lane.b32.xlu0 %v2751, 20
        %v2795 = vpop.permute.xlu0 %2794
        %2796 = vrot.lane.b32.xlu0 %v2752, 20
        %v2797 = vpop.permute.xlu0 %2796
        %2798 = vrot.lane.b32.xlu0 %v2753, 20
        %v2799 = vpop.permute.xlu0 %2798
        %2800 = vrot.lane.b32.xlu0 %v2754, 20
        %v2801 = vpop.permute.xlu0 %2800
        %2802 = vrot.lane.b32.xlu0 %v2755, 20
        %v2803 = vpop.permute.xlu0 %2802
        %2820 = vst.msk [vmem:[#allocation2] sm:$0xf] %vm1496, %v2773
        %2821 = vst.msk [vmem:[#allocation2 + $0x4] sm:$0xf] %vm1496, %v2775
        %2822 = vst.msk [vmem:[#allocation2 + $0x8] sm:$0xf] %vm1496, %v2777
        %2823 = vst.msk [vmem:[#allocation2 + $0xc] sm:$0xf] %vm1496, %v2779
        %2824 = vst.msk [vmem:[#allocation2 + $0x10] sm:$0xf] %vm1496, %v2781
        %2825 = vst.msk [vmem:[#allocation2 + $0x14] sm:$0xf] %vm1496, %v2783
        %2826 = vst.msk [vmem:[#allocation2 + $0x18] sm:$0xf] %vm1496, %v2785
        %2827 = vst.msk [vmem:[#allocation2 + $0x1c] sm:$0xf] %vm1496, %v2787
        %2828 = vst.msk [vmem:[#allocation2 + $0x20] sm:$0xf] %vm1496, %v2789
        %2829 = vst.msk [vmem:[#allocation2 + $0x24] sm:$0xf] %vm1496, %v2791
        %2830 = vst.msk [vmem:[#allocation2 + $0x28] sm:$0xf] %vm1496, %v2793
        %2831 = vst.msk [vmem:[#allocation2 + $0x2c] sm:$0xf] %vm1496, %v2795
        %2832 = vst.msk [vmem:[#allocation2 + $0x30] sm:$0xf] %vm1496, %v2797
        %2833 = vst.msk [vmem:[#allocation2 + $0x34] sm:$0xf] %vm1496, %v2799
        %2834 = vst.msk [vmem:[#allocation2 + $0x38] sm:$0xf] %vm1496, %v2801
        %2835 = vst.msk [vmem:[#allocation2 + $0x3c] sm:$0xf] %vm1496, %v2803
        %s2836 = sadd.s32 %s237, 8
        %s2837 = smul.u32 %s2836, 3
        %s2838 = smul.addr %s2837, 4
        %s2839 = scalar_lea.vmem %s224, %s2838
        %v2840 = vld [vmem:[%s2839] sm:$0xf]
        %v2841 = vld [vmem:[%s2839 + $0x4] sm:$0xf]
        %v2842 = vld [vmem:[%s2839 + $0xc] sm:$0xf]
        %v2843 = vld [vmem:[%s2839 + $0x10] sm:$0xf]
        %v2844 = vld [vmem:[%s2839 + $0x18] sm:$0xf]
        %v2845 = vld [vmem:[%s2839 + $0x1c] sm:$0xf]
        %v2846 = vld [vmem:[%s2839 + $0x24] sm:$0xf]
        %v2847 = vld [vmem:[%s2839 + $0x28] sm:$0xf]
        %v2848 = vld [vmem:[%s2839 + $0x30] sm:$0xf]
        %v2849 = vld [vmem:[%s2839 + $0x34] sm:$0xf]
        %v2850 = vld [vmem:[%s2839 + $0x3c] sm:$0xf]
        %v2851 = vld [vmem:[%s2839 + $0x40] sm:$0xf]
        %v2852 = vld [vmem:[%s2839 + $0x48] sm:$0xf]
        %v2853 = vld [vmem:[%s2839 + $0x4c] sm:$0xf]
        %v2854 = vld [vmem:[%s2839 + $0x54] sm:$0xf]
        %v2855 = vld [vmem:[%s2839 + $0x58] sm:$0xf]
        %2872 = vrot.lane.b32.xlu0 %v2840, 24
        %v2873 = vpop.permute.xlu0 %2872
        %2874 = vrot.lane.b32.xlu0 %v2841, 24
        %v2875 = vpop.permute.xlu0 %2874
        %2876 = vrot.lane.b32.xlu0 %v2842, 24
        %v2877 = vpop.permute.xlu0 %2876
        %2878 = vrot.lane.b32.xlu0 %v2843, 24
        %v2879 = vpop.permute.xlu0 %2878
        %2880 = vrot.lane.b32.xlu0 %v2844, 24
        %v2881 = vpop.permute.xlu0 %2880
        %2882 = vrot.lane.b32.xlu0 %v2845, 24
        %v2883 = vpop.permute.xlu0 %2882
        %2884 = vrot.lane.b32.xlu0 %v2846, 24
        %v2885 = vpop.permute.xlu0 %2884
        %2886 = vrot.lane.b32.xlu0 %v2847, 24
        %v2887 = vpop.permute.xlu0 %2886
        %2888 = vrot.lane.b32.xlu0 %v2848, 24
        %v2889 = vpop.permute.xlu0 %2888
        %2890 = vrot.lane.b32.xlu0 %v2849, 24
        %v2891 = vpop.permute.xlu0 %2890
        %2892 = vrot.lane.b32.xlu0 %v2850, 24
        %v2893 = vpop.permute.xlu0 %2892
        %2894 = vrot.lane.b32.xlu0 %v2851, 24
        %v2895 = vpop.permute.xlu0 %2894
        %2896 = vrot.lane.b32.xlu0 %v2852, 24
        %v2897 = vpop.permute.xlu0 %2896
        %2898 = vrot.lane.b32.xlu0 %v2853, 24
        %v2899 = vpop.permute.xlu0 %2898
        %2900 = vrot.lane.b32.xlu0 %v2854, 24
        %v2901 = vpop.permute.xlu0 %2900
        %2902 = vrot.lane.b32.xlu0 %v2855, 24
        %v2903 = vpop.permute.xlu0 %2902
        %2920 = vst.msk [vmem:[#allocation2] sm:$0xf] %vm1669, %v2873
        %2921 = vst.msk [vmem:[#allocation2 + $0x4] sm:$0xf] %vm1669, %v2875
        %2922 = vst.msk [vmem:[#allocation2 + $0x8] sm:$0xf] %vm1669, %v2877
        %2923 = vst.msk [vmem:[#allocation2 + $0xc] sm:$0xf] %vm1669, %v2879
        %2924 = vst.msk [vmem:[#allocation2 + $0x10] sm:$0xf] %vm1669, %v2881
        %2925 = vst.msk [vmem:[#allocation2 + $0x14] sm:$0xf] %vm1669, %v2883
        %2926 = vst.msk [vmem:[#allocation2 + $0x18] sm:$0xf] %vm1669, %v2885
        %2927 = vst.msk [vmem:[#allocation2 + $0x1c] sm:$0xf] %vm1669, %v2887
        %2928 = vst.msk [vmem:[#allocation2 + $0x20] sm:$0xf] %vm1669, %v2889
        %2929 = vst.msk [vmem:[#allocation2 + $0x24] sm:$0xf] %vm1669, %v2891
        %2930 = vst.msk [vmem:[#allocation2 + $0x28] sm:$0xf] %vm1669, %v2893
        %2931 = vst.msk [vmem:[#allocation2 + $0x2c] sm:$0xf] %vm1669, %v2895
        %2932 = vst.msk [vmem:[#allocation2 + $0x30] sm:$0xf] %vm1669, %v2897
        %2933 = vst.msk [vmem:[#allocation2 + $0x34] sm:$0xf] %vm1669, %v2899
        %2934 = vst.msk [vmem:[#allocation2 + $0x38] sm:$0xf] %vm1669, %v2901
        %2935 = vst.msk [vmem:[#allocation2 + $0x3c] sm:$0xf] %vm1669, %v2903
        %v2936 = vld [vmem:[%s2839] sm:$0xc]
        %v2937 = vld [vmem:[%s2839 + $0x4] sm:$0xf]
        %v2938 = vld [vmem:[%s2839 + $0x8] sm:$0x3]
        %v2939 = vld [vmem:[%s2839 + $0xc] sm:$0xc]
        %v2940 = vld [vmem:[%s2839 + $0x10] sm:$0xf]
        %v2941 = vld [vmem:[%s2839 + $0x14] sm:$0x3]
        %v2942 = vld [vmem:[%s2839 + $0x18] sm:$0xc]
        %v2943 = vld [vmem:[%s2839 + $0x1c] sm:$0xf]
        %v2944 = vld [vmem:[%s2839 + $0x20] sm:$0x3]
        %v2945 = vld [vmem:[%s2839 + $0x24] sm:$0xc]
        %v2946 = vld [vmem:[%s2839 + $0x28] sm:$0xf]
        %v2947 = vld [vmem:[%s2839 + $0x2c] sm:$0x3]
        %v2948 = vld [vmem:[%s2839 + $0x30] sm:$0xc]
        %v2949 = vld [vmem:[%s2839 + $0x34] sm:$0xf]
        %v2950 = vld [vmem:[%s2839 + $0x38] sm:$0x3]
        %v2951 = vld [vmem:[%s2839 + $0x3c] sm:$0xc]
        %v2952 = vld [vmem:[%s2839 + $0x40] sm:$0xf]
        %v2953 = vld [vmem:[%s2839 + $0x44] sm:$0x3]
        %v2954 = vld [vmem:[%s2839 + $0x48] sm:$0xc]
        %v2955 = vld [vmem:[%s2839 + $0x4c] sm:$0xf]
        %v2956 = vld [vmem:[%s2839 + $0x50] sm:$0x3]
        %v2957 = vld [vmem:[%s2839 + $0x54] sm:$0xc]
        %v2958 = vld [vmem:[%s2839 + $0x58] sm:$0xf]
        %v2959 = vld [vmem:[%s2839 + $0x5c] sm:$0x3]
        %v2984 = vrot.slane %v2936, 6
        %v2985 = vrot.slane %v2984, 4
        %v2986 = vrot.slane %v2937, 6
        %v2987 = vsel %vm292, %v2985, %v2986
        %v2988 = vrot.slane %v2986, 4
        %v2989 = vrot.slane %v2938, 6
        %v2990 = vsel %vm292, %v2988, %v2989
        %v2991 = vrot.slane %v2939, 6
        %v2992 = vrot.slane %v2991, 4
        %v2993 = vrot.slane %v2940, 6
        %v2994 = vsel %vm292, %v2992, %v2993
        %v2995 = vrot.slane %v2993, 4
        %v2996 = vrot.slane %v2941, 6
        %v2997 = vsel %vm292, %v2995, %v2996
        %v2998 = vrot.slane %v2942, 6
        %v2999 = vrot.slane %v2998, 4
        %v3000 = vrot.slane %v2943, 6
        %v3001 = vsel %vm292, %v2999, %v3000
        %v3002 = vrot.slane %v3000, 4
        %v3003 = vrot.slane %v2944, 6
        %v3004 = vsel %vm292, %v3002, %v3003
        %v3005 = vrot.slane %v2945, 6
        %v3006 = vrot.slane %v3005, 4
        %v3007 = vrot.slane %v2946, 6
        %v3008 = vsel %vm292, %v3006, %v3007
        %v3009 = vrot.slane %v3007, 4
        %v3010 = vrot.slane %v2947, 6
        %v3011 = vsel %vm292, %v3009, %v3010
        %v3012 = vrot.slane %v2948, 6
        %v3013 = vrot.slane %v3012, 4
        %v3014 = vrot.slane %v2949, 6
        %v3015 = vsel %vm292, %v3013, %v3014
        %v3016 = vrot.slane %v3014, 4
        %v3017 = vrot.slane %v2950, 6
        %v3018 = vsel %vm292, %v3016, %v3017
        %v3019 = vrot.slane %v2951, 6
        %v3020 = vrot.slane %v3019, 4
        %v3021 = vrot.slane %v2952, 6
        %v3022 = vsel %vm292, %v3020, %v3021
        %v3023 = vrot.slane %v3021, 4
        %v3024 = vrot.slane %v2953, 6
        %v3025 = vsel %vm292, %v3023, %v3024
        %v3026 = vrot.slane %v2954, 6
        %v3027 = vrot.slane %v3026, 4
        %v3028 = vrot.slane %v2955, 6
        %v3029 = vsel %vm292, %v3027, %v3028
        %v3030 = vrot.slane %v3028, 4
        %v3031 = vrot.slane %v2956, 6
        %v3032 = vsel %vm292, %v3030, %v3031
        %v3033 = vrot.slane %v2957, 6
        %v3034 = vrot.slane %v3033, 4
        %v3035 = vrot.slane %v2958, 6
        %v3036 = vsel %vm292, %v3034, %v3035
        %v3037 = vrot.slane %v3035, 4
        %v3038 = vrot.slane %v2959, 6
        %v3039 = vsel %vm292, %v3037, %v3038
        %3040 = vrot.lane.b32.xlu0 %v2987, 28
        %v3041 = vpop.permute.xlu0 %3040
        %3042 = vrot.lane.b32.xlu0 %v2990, 28
        %v3043 = vpop.permute.xlu0 %3042
        %3044 = vrot.lane.b32.xlu0 %v2994, 28
        %v3045 = vpop.permute.xlu0 %3044
        %3046 = vrot.lane.b32.xlu0 %v2997, 28
        %v3047 = vpop.permute.xlu0 %3046
        %3048 = vrot.lane.b32.xlu0 %v3001, 28
        %v3049 = vpop.permute.xlu0 %3048
        %3050 = vrot.lane.b32.xlu0 %v3004, 28
        %v3051 = vpop.permute.xlu0 %3050
        %3052 = vrot.lane.b32.xlu0 %v3008, 28
        %v3053 = vpop.permute.xlu0 %3052
        %3054 = vrot.lane.b32.xlu0 %v3011, 28
        %v3055 = vpop.permute.xlu0 %3054
        %3056 = vrot.lane.b32.xlu0 %v3015, 28
        %v3057 = vpop.permute.xlu0 %3056
        %3058 = vrot.lane.b32.xlu0 %v3018, 28
        %v3059 = vpop.permute.xlu0 %3058
        %3060 = vrot.lane.b32.xlu0 %v3022, 28
        %v3061 = vpop.permute.xlu0 %3060
        %3062 = vrot.lane.b32.xlu0 %v3025, 28
        %v3063 = vpop.permute.xlu0 %3062
        %3064 = vrot.lane.b32.xlu0 %v3029, 28
        %v3065 = vpop.permute.xlu0 %3064
        %3066 = vrot.lane.b32.xlu0 %v3032, 28
        %v3067 = vpop.permute.xlu0 %3066
        %3068 = vrot.lane.b32.xlu0 %v3036, 28
        %v3069 = vpop.permute.xlu0 %3068
        %3070 = vrot.lane.b32.xlu0 %v3039, 28
        %v3071 = vpop.permute.xlu0 %3070
        %3088 = vst.msk [vmem:[#allocation2] sm:$0xf] %vm1838, %v3041
        %3089 = vst.msk [vmem:[#allocation2 + $0x4] sm:$0xf] %vm1838, %v3043
        %3090 = vst.msk [vmem:[#allocation2 + $0x8] sm:$0xf] %vm1838, %v3045
        %3091 = vst.msk [vmem:[#allocation2 + $0xc] sm:$0xf] %vm1838, %v3047
        %3092 = vst.msk [vmem:[#allocation2 + $0x10] sm:$0xf] %vm1838, %v3049
        %3093 = vst.msk [vmem:[#allocation2 + $0x14] sm:$0xf] %vm1838, %v3051
        %3094 = vst.msk [vmem:[#allocation2 + $0x18] sm:$0xf] %vm1838, %v3053
        %3095 = vst.msk [vmem:[#allocation2 + $0x1c] sm:$0xf] %vm1838, %v3055
        %3096 = vst.msk [vmem:[#allocation2 + $0x20] sm:$0xf] %vm1838, %v3057
        %3097 = vst.msk [vmem:[#allocation2 + $0x24] sm:$0xf] %vm1838, %v3059
        %3098 = vst.msk [vmem:[#allocation2 + $0x28] sm:$0xf] %vm1838, %v3061
        %3099 = vst.msk [vmem:[#allocation2 + $0x2c] sm:$0xf] %vm1838, %v3063
        %3100 = vst.msk [vmem:[#allocation2 + $0x30] sm:$0xf] %vm1838, %v3065
        %3101 = vst.msk [vmem:[#allocation2 + $0x34] sm:$0xf] %vm1838, %v3067
        %3102 = vst.msk [vmem:[#allocation2 + $0x38] sm:$0xf] %vm1838, %v3069
        %3103 = vst.msk [vmem:[#allocation2 + $0x3c] sm:$0xf] %vm1838, %v3071
        %v3104 = vld [vmem:[%s2839 + $0x4] sm:$0xf]
        %v3105 = vld [vmem:[%s2839 + $0x8] sm:$0xf]
        %v3106 = vld [vmem:[%s2839 + $0x10] sm:$0xf]
        %v3107 = vld [vmem:[%s2839 + $0x14] sm:$0xf]
        %v3108 = vld [vmem:[%s2839 + $0x1c] sm:$0xf]
        %v3109 = vld [vmem:[%s2839 + $0x20] sm:$0xf]
        %v3110 = vld [vmem:[%s2839 + $0x28] sm:$0xf]
        %v3111 = vld [vmem:[%s2839 + $0x2c] sm:$0xf]
        %v3112 = vld [vmem:[%s2839 + $0x34] sm:$0xf]
        %v3113 = vld [vmem:[%s2839 + $0x38] sm:$0xf]
        %v3114 = vld [vmem:[%s2839 + $0x40] sm:$0xf]
        %v3115 = vld [vmem:[%s2839 + $0x44] sm:$0xf]
        %v3116 = vld [vmem:[%s2839 + $0x4c] sm:$0xf]
        %v3117 = vld [vmem:[%s2839 + $0x50] sm:$0xf]
        %v3118 = vld [vmem:[%s2839 + $0x58] sm:$0xf]
        %v3119 = vld [vmem:[%s2839 + $0x5c] sm:$0xf]
        %3136 = vrot.lane.b32.xlu0 %v3104, 32
        %v3137 = vpop.permute.xlu0 %3136
        %3138 = vrot.lane.b32.xlu0 %v3105, 32
        %v3139 = vpop.permute.xlu0 %3138
        %3140 = vrot.lane.b32.xlu0 %v3106, 32
        %v3141 = vpop.permute.xlu0 %3140
        %3142 = vrot.lane.b32.xlu0 %v3107, 32
        %v3143 = vpop.permute.xlu0 %3142
        %3144 = vrot.lane.b32.xlu0 %v3108, 32
        %v3145 = vpop.permute.xlu0 %3144
        %3146 = vrot.lane.b32.xlu0 %v3109, 32
        %v3147 = vpop.permute.xlu0 %3146
        %3148 = vrot.lane.b32.xlu0 %v3110, 32
        %v3149 = vpop.permute.xlu0 %3148
        %3150 = vrot.lane.b32.xlu0 %v3111, 32
        %v3151 = vpop.permute.xlu0 %3150
        %3152 = vrot.lane.b32.xlu0 %v3112, 32
        %v3153 = vpop.permute.xlu0 %3152
        %3154 = vrot.lane.b32.xlu0 %v3113, 32
        %v3155 = vpop.permute.xlu0 %3154
        %3156 = vrot.lane.b32.xlu0 %v3114, 32
        %v3157 = vpop.permute.xlu0 %3156
        %3158 = vrot.lane.b32.xlu0 %v3115, 32
        %v3159 = vpop.permute.xlu0 %3158
        %3160 = vrot.lane.b32.xlu0 %v3116, 32
        %v3161 = vpop.permute.xlu0 %3160
        %3162 = vrot.lane.b32.xlu0 %v3117, 32
        %v3163 = vpop.permute.xlu0 %3162
        %3164 = vrot.lane.b32.xlu0 %v3118, 32
        %v3165 = vpop.permute.xlu0 %3164
        %3166 = vrot.lane.b32.xlu0 %v3119, 32
        %v3167 = vpop.permute.xlu0 %3166
        %3184 = vst.msk [vmem:[#allocation2] sm:$0xf] %vm2007, %v3137
        %3185 = vst.msk [vmem:[#allocation2 + $0x4] sm:$0xf] %vm2007, %v3139
        %3186 = vst.msk [vmem:[#allocation2 + $0x8] sm:$0xf] %vm2007, %v3141
        %3187 = vst.msk [vmem:[#allocation2 + $0xc] sm:$0xf] %vm2007, %v3143
        %3188 = vst.msk [vmem:[#allocation2 + $0x10] sm:$0xf] %vm2007, %v3145
        %3189 = vst.msk [vmem:[#allocation2 + $0x14] sm:$0xf] %vm2007, %v3147
        %3190 = vst.msk [vmem:[#allocation2 + $0x18] sm:$0xf] %vm2007, %v3149
        %3191 = vst.msk [vmem:[#allocation2 + $0x1c] sm:$0xf] %vm2007, %v3151
        %3192 = vst.msk [vmem:[#allocation2 + $0x20] sm:$0xf] %vm2007, %v3153
        %3193 = vst.msk [vmem:[#allocation2 + $0x24] sm:$0xf] %vm2007, %v3155
        %3194 = vst.msk [vmem:[#allocation2 + $0x28] sm:$0xf] %vm2007, %v3157
        %3195 = vst.msk [vmem:[#allocation2 + $0x2c] sm:$0xf] %vm2007, %v3159
        %3196 = vst.msk [vmem:[#allocation2 + $0x30] sm:$0xf] %vm2007, %v3161
        %3197 = vst.msk [vmem:[#allocation2 + $0x34] sm:$0xf] %vm2007, %v3163
        %3198 = vst.msk [vmem:[#allocation2 + $0x38] sm:$0xf] %vm2007, %v3165
        %3199 = vst.msk [vmem:[#allocation2 + $0x3c] sm:$0xf] %vm2007, %v3167
        %v3200 = vld [vmem:[#allocation2] sm:$0xf]
        %v3201 = vld [vmem:[#allocation2 + $0x4] sm:$0xf]
        %v3202 = vld [vmem:[#allocation2 + $0x8] sm:$0xf]
        %v3203 = vld [vmem:[#allocation2 + $0xc] sm:$0xf]
        %v3204 = vld [vmem:[#allocation2 + $0x10] sm:$0xf]
        %v3205 = vld [vmem:[#allocation2 + $0x14] sm:$0xf]
        %v3206 = vld [vmem:[#allocation2 + $0x18] sm:$0xf]
        %v3207 = vld [vmem:[#allocation2 + $0x1c] sm:$0xf]
        %v3208 = vld [vmem:[#allocation2 + $0x20] sm:$0xf]
        %v3209 = vld [vmem:[#allocation2 + $0x24] sm:$0xf]
        %v3210 = vld [vmem:[#allocation2 + $0x28] sm:$0xf]
        %v3211 = vld [vmem:[#allocation2 + $0x2c] sm:$0xf]
        %v3212 = vld [vmem:[#allocation2 + $0x30] sm:$0xf]
        %v3213 = vld [vmem:[#allocation2 + $0x34] sm:$0xf]
        %v3214 = vld [vmem:[#allocation2 + $0x38] sm:$0xf]
        %v3215 = vld [vmem:[#allocation2 + $0x3c] sm:$0xf]
        %s3216 = scalar_lea.vmem %s2, 20
        %v3217 = vld [vmem:[%s3216] sm:$0xf]
        %v3218 = vld [vmem:[%s3216 + $0x4] sm:$0xf]
        %v3219 = vld [vmem:[%s3216 + $0x8] sm:$0xf]
        %v3220 = vld [vmem:[%s3216 + $0xc] sm:$0xf]
        %v3221 = vld [vmem:[%s3216 + $0x10] sm:$0x3]
        %v3238 = vunpack.c.l.b16 %v3200
        %v3239 = vunpack.c.l.b16 %v3201
        %v3240 = vunpack.c.l.b16 %v3202
        %v3241 = vunpack.c.l.b16 %v3203
        %v3242 = vunpack.c.l.b16 %v3204
        %v3243 = vunpack.c.l.b16 %v3205
        %v3244 = vunpack.c.l.b16 %v3206
        %v3245 = vunpack.c.l.b16 %v3207
        %v3246 = vunpack.c.l.b16 %v3208
        %v3247 = vunpack.c.l.b16 %v3209
        %v3248 = vunpack.c.l.b16 %v3210
        %v3249 = vunpack.c.l.b16 %v3211
        %v3250 = vunpack.c.l.b16 %v3212
        %v3251 = vunpack.c.l.b16 %v3213
        %v3252 = vunpack.c.l.b16 %v3214
        %v3253 = vunpack.c.l.b16 %v3215
        %v3254 = vpack.c.b16 %v3239, %v3238
        %v3255 = vpack.c.b16 %v3241, %v3240
        %v3256 = vpack.c.b16 %v3243, %v3242
        %v3257 = vpack.c.b16 %v3245, %v3244
        %v3258 = vpack.c.b16 %v3247, %v3246
        %v3259 = vpack.c.b16 %v3249, %v3248
        %v3260 = vpack.c.b16 %v3251, %v3250
        %v3261 = vpack.c.b16 %v3253, %v3252
        %v3267 = vunpack.c.l.b16 %v3217
        %v3268 = vunpack.c.l.b16 %v3218
        %v3269 = vunpack.c.l.b16 %v3219
        %v3270 = vunpack.c.l.b16 %v3220
        %v3271 = vunpack.c.l.b16 %v3221
        %v3272 = vpack.c.b16 %v3268, %v3267
        %v3273 = vpack.c.b16 %v3270, %v3269
        %v3274 = vpack.c.b16 %v3271, %v3271
        %v3278 = vsel %vm2100, %v3254, 0
        %v3281 = vsel %vm2100, %v3255, 0
        %v3284 = vsel %vm2100, %v3256, 0
        %v3287 = vsel %vm2100, %v3257, 0
        %v3290 = vsel %vm2100, %v3258, 0
        %v3293 = vsel %vm2100, %v3259, 0
        %v3296 = vsel %vm2100, %v3260, 0
        %v3299 = vsel %vm2100, %v3261, 0
        %v3302 = vsel %vm468, %v3274, 0
        %3304 = vmatpush.bf16.msra.mxu0 0
        %3305 = vmatpush.bf16.msra.mxu0 0
        %3306 = vmatpush.bf16.msra.mxu0 0
        %3307 = vmatpush.bf16.msra.mxu0 0
        %3308 = vmatpush.bf16.msra.mxu0 0
        %3309 = vmatpush.bf16.msra.mxu0 %v3302
        %3310 = vmatpush.bf16.msra.mxu0 %v3273
        %3311 = vmatpush.bf16.msra.mxu0 %v3272
        %3312 = vmatmul.bf16.gmra.mxu0 %v3278
        %v3313 = vpop.f32.mrf.mxu0
        %v3314 = vadd.f32 0.0, %v3313
        %v3315 = vpop.f32.mrf.mxu0
        %v3316 = vadd.f32 0.0, %v3315
        %3317 = vmatmul.bf16.gmra.mxu0 %v3281
        %v3318 = vpop.f32.mrf.mxu0
        %v3319 = vadd.f32 0.0, %v3318
        %v3320 = vpop.f32.mrf.mxu0
        %v3321 = vadd.f32 0.0, %v3320
        %3322 = vmatmul.bf16.gmra.mxu0 %v3284
        %v3323 = vpop.f32.mrf.mxu0
        %v3324 = vadd.f32 0.0, %v3323
        %v3325 = vpop.f32.mrf.mxu0
        %v3326 = vadd.f32 0.0, %v3325
        %3327 = vmatmul.bf16.gmra.mxu0 %v3287
        %v3328 = vpop.f32.mrf.mxu0
        %v3329 = vadd.f32 0.0, %v3328
        %v3330 = vpop.f32.mrf.mxu0
        %v3331 = vadd.f32 0.0, %v3330
        %3332 = vmatmul.bf16.gmra.mxu0 %v3290
        %v3333 = vpop.f32.mrf.mxu0
        %v3334 = vadd.f32 0.0, %v3333
        %v3335 = vpop.f32.mrf.mxu0
        %v3336 = vadd.f32 0.0, %v3335
        %3337 = vmatmul.bf16.gmra.mxu0 %v3293
        %v3338 = vpop.f32.mrf.mxu0
        %v3339 = vadd.f32 0.0, %v3338
        %v3340 = vpop.f32.mrf.mxu0
        %v3341 = vadd.f32 0.0, %v3340
        %3342 = vmatmul.bf16.gmra.mxu0 %v3296
        %v3343 = vpop.f32.mrf.mxu0
        %v3344 = vadd.f32 0.0, %v3343
        %v3345 = vpop.f32.mrf.mxu0
        %v3346 = vadd.f32 0.0, %v3345
        %3347 = vmatmul.bf16.gmra.mxu0 %v3299
        %v3348 = vpop.f32.mrf.mxu0
        %v3349 = vadd.f32 0.0, %v3348
        %v3350 = vpop.f32.mrf.mxu0
        %v3351 = vadd.f32 0.0, %v3350
        %3352 = vdwg.mxu0
        %3369 = vrot.lane.b32.xlu0 %v2138, 4
        %v3370 = vpop.permute.xlu0 %3369
        %3371 = vrot.lane.b32.xlu0 %v2140, 4
        %v3372 = vpop.permute.xlu0 %3371
        %3373 = vrot.lane.b32.xlu0 %v2143, 4
        %v3374 = vpop.permute.xlu0 %3373
        %3375 = vrot.lane.b32.xlu0 %v2145, 4
        %v3376 = vpop.permute.xlu0 %3375
        %3377 = vrot.lane.b32.xlu0 %v2148, 4
        %v3378 = vpop.permute.xlu0 %3377
        %3379 = vrot.lane.b32.xlu0 %v2150, 4
        %v3380 = vpop.permute.xlu0 %3379
        %3381 = vrot.lane.b32.xlu0 %v2153, 4
        %v3382 = vpop.permute.xlu0 %3381
        %3383 = vrot.lane.b32.xlu0 %v2155, 4
        %v3384 = vpop.permute.xlu0 %3383
        %3385 = vrot.lane.b32.xlu0 %v2158, 4
        %v3386 = vpop.permute.xlu0 %3385
        %3387 = vrot.lane.b32.xlu0 %v2160, 4
        %v3388 = vpop.permute.xlu0 %3387
        %3389 = vrot.lane.b32.xlu0 %v2163, 4
        %v3390 = vpop.permute.xlu0 %3389
        %3391 = vrot.lane.b32.xlu0 %v2165, 4
        %v3392 = vpop.permute.xlu0 %3391
        %3393 = vrot.lane.b32.xlu0 %v2168, 4
        %v3394 = vpop.permute.xlu0 %3393
        %3395 = vrot.lane.b32.xlu0 %v2170, 4
        %v3396 = vpop.permute.xlu0 %3395
        %3397 = vrot.lane.b32.xlu0 %v2173, 4
        %v3398 = vpop.permute.xlu0 %3397
        %3399 = vrot.lane.b32.xlu0 %v2175, 4
        %v3400 = vpop.permute.xlu0 %3399
        %3433 = vrot.lane.b32.xlu0 %v3314, 8
        %v3434 = vpop.permute.xlu0 %3433
        %3435 = vrot.lane.b32.xlu0 %v3316, 8
        %v3436 = vpop.permute.xlu0 %3435
        %3437 = vrot.lane.b32.xlu0 %v3319, 8
        %v3438 = vpop.permute.xlu0 %3437
        %3439 = vrot.lane.b32.xlu0 %v3321, 8
        %v3440 = vpop.permute.xlu0 %3439
        %3441 = vrot.lane.b32.xlu0 %v3324, 8
        %v3442 = vpop.permute.xlu0 %3441
        %3443 = vrot.lane.b32.xlu0 %v3326, 8
        %v3444 = vpop.permute.xlu0 %3443
        %3445 = vrot.lane.b32.xlu0 %v3329, 8
        %v3446 = vpop.permute.xlu0 %3445
        %3447 = vrot.lane.b32.xlu0 %v3331, 8
        %v3448 = vpop.permute.xlu0 %3447
        %3449 = vrot.lane.b32.xlu0 %v3334, 8
        %v3450 = vpop.permute.xlu0 %3449
        %3451 = vrot.lane.b32.xlu0 %v3336, 8
        %v3452 = vpop.permute.xlu0 %3451
        %3453 = vrot.lane.b32.xlu0 %v3339, 8
        %v3454 = vpop.permute.xlu0 %3453
        %3455 = vrot.lane.b32.xlu0 %v3341, 8
        %v3456 = vpop.permute.xlu0 %3455
        %3457 = vrot.lane.b32.xlu0 %v3344, 8
        %v3458 = vpop.permute.xlu0 %3457
        %3459 = vrot.lane.b32.xlu0 %v3346, 8
        %v3460 = vpop.permute.xlu0 %3459
        %3461 = vrot.lane.b32.xlu0 %v3349, 8
        %v3462 = vpop.permute.xlu0 %3461
        %3463 = vrot.lane.b32.xlu0 %v3351, 8
        %v3464 = vpop.permute.xlu0 %3463
        %v3481 = vsel %vm381, %v482, %v3370
        %v3482 = vsel %vm381, %v484, %v3372
        %v3483 = vsel %vm381, %v487, %v3374
        %v3484 = vsel %vm381, %v489, %v3376
        %v3485 = vsel %vm381, %v492, %v3378
        %v3486 = vsel %vm381, %v494, %v3380
        %v3487 = vsel %vm381, %v497, %v3382
        %v3488 = vsel %vm381, %v499, %v3384
        %v3489 = vsel %vm381, %v502, %v3386
        %v3490 = vsel %vm381, %v504, %v3388
        %v3491 = vsel %vm381, %v507, %v3390
        %v3492 = vsel %vm381, %v509, %v3392
        %v3493 = vsel %vm381, %v512, %v3394
        %v3494 = vsel %vm381, %v514, %v3396
        %v3495 = vsel %vm381, %v517, %v3398
        %v3496 = vsel %vm381, %v519, %v3400
        %vm3497 = vcmask 64512
        %v3498 = vsel %vm3497, %v3481, %v3434
        %v3499 = vsel %vm3497, %v3482, %v3436
        %v3500 = vsel %vm3497, %v3483, %v3438
        %v3501 = vsel %vm3497, %v3484, %v3440
        %v3502 = vsel %vm3497, %v3485, %v3442
        %v3503 = vsel %vm3497, %v3486, %v3444
        %v3504 = vsel %vm3497, %v3487, %v3446
        %v3505 = vsel %vm3497, %v3488, %v3448
        %v3506 = vsel %vm3497, %v3489, %v3450
        %v3507 = vsel %vm3497, %v3490, %v3452
        %v3508 = vsel %vm3497, %v3491, %v3454
        %v3509 = vsel %vm3497, %v3492, %v3456
        %v3510 = vsel %vm3497, %v3493, %v3458
        %v3511 = vsel %vm3497, %v3494, %v3460
        %v3512 = vsel %vm3497, %v3495, %v3462
        %v3513 = vsel %vm3497, %v3496, %v3464
        %vm3514 = vcmask 97280
        %3515 = vst.msk [vmem:[%s234] sm:$0xff] %vm3514, %v3498
        %3516 = vst.msk [vmem:[%s234 + $0x8] sm:$0xff] %vm3514, %v3499
        %3517 = vst.msk [vmem:[%s234 + $0x10] sm:$0xff] %vm3514, %v3500
        %3518 = vst.msk [vmem:[%s234 + $0x18] sm:$0xff] %vm3514, %v3501
        %3519 = vst.msk [vmem:[%s234 + $0x20] sm:$0xff] %vm3514, %v3502
        %3520 = vst.msk [vmem:[%s234 + $0x28] sm:$0xff] %vm3514, %v3503
        %3521 = vst.msk [vmem:[%s234 + $0x30] sm:$0xff] %vm3514, %v3504
        %3522 = vst.msk [vmem:[%s234 + $0x38] sm:$0xff] %vm3514, %v3505
        %3523 = vst.msk [vmem:[%s234 + $0x40] sm:$0xff] %vm3514, %v3506
        %3524 = vst.msk [vmem:[%s234 + $0x48] sm:$0xff] %vm3514, %v3507
        %3525 = vst.msk [vmem:[%s234 + $0x50] sm:$0xff] %vm3514, %v3508
        %3526 = vst.msk [vmem:[%s234 + $0x58] sm:$0xff] %vm3514, %v3509
        %3527 = vst.msk [vmem:[%s234 + $0x60] sm:$0xff] %vm3514, %v3510
        %3528 = vst.msk [vmem:[%s234 + $0x68] sm:$0xff] %vm3514, %v3511
        %3529 = vst.msk [vmem:[%s234 + $0x70] sm:$0xff] %vm3514, %v3512
        %3530 = vst.msk [vmem:[%s234 + $0x78] sm:$0xff] %vm3514, %v3513
        %v3531 = vsel %vm3514, %v3498, 0.0
        %v3532 = vsel %vm3514, %v3499, 0.0
        %v3533 = vadd.f32 %v3531, %v3532
        %v3534 = vsel %vm3514, %v3500, 0.0
        %v3535 = vadd.f32 %v3533, %v3534
        %v3536 = vsel %vm3514, %v3501, 0.0
        %v3537 = vadd.f32 %v3535, %v3536
        %v3538 = vsel %vm3514, %v3502, 0.0
        %v3539 = vadd.f32 %v3537, %v3538
        %v3540 = vsel %vm3514, %v3503, 0.0
        %v3541 = vadd.f32 %v3539, %v3540
        %v3542 = vsel %vm3514, %v3504, 0.0
        %v3543 = vadd.f32 %v3541, %v3542
        %v3544 = vsel %vm3514, %v3505, 0.0
        %v3545 = vadd.f32 %v3543, %v3544
        %v3546 = vsel %vm3514, %v3506, 0.0
        %v3547 = vadd.f32 %v3545, %v3546
        %v3548 = vsel %vm3514, %v3507, 0.0
        %v3549 = vadd.f32 %v3547, %v3548
        %v3550 = vsel %vm3514, %v3508, 0.0
        %v3551 = vadd.f32 %v3549, %v3550
        %v3552 = vsel %vm3514, %v3509, 0.0
        %v3553 = vadd.f32 %v3551, %v3552
        %v3554 = vsel %vm3514, %v3510, 0.0
        %v3555 = vadd.f32 %v3553, %v3554
        %v3556 = vsel %vm3514, %v3511, 0.0
        %v3557 = vadd.f32 %v3555, %v3556
        %v3558 = vsel %vm3514, %v3512, 0.0
        %v3559 = vadd.f32 %v3557, %v3558
        %v3560 = vsel %vm3514, %v3513, 0.0
        %v3561 = vadd.f32 %v3559, %v3560
        %v3562 = vrot.slane %v3561, 4
        %v3563 = vadd.f32 %v3561, %v3562
        %v3564 = vrot.slane %v3563, 2
        %v3565 = vadd.f32 %v3563, %v3564
        %v3566 = vrot.slane %v3565, 1
        %v3567 = vadd.f32 %v3565, %v3566
        %v3568 = vmul.f32 %v3567, 0.0078125
        %v3569 = vsub.f32 %v3498, %v3568
        %v3570 = vsub.f32 %v3499, %v3568
        %v3571 = vsub.f32 %v3500, %v3568
        %v3572 = vsub.f32 %v3501, %v3568
        %v3573 = vsub.f32 %v3502, %v3568
        %v3574 = vsub.f32 %v3503, %v3568
        %v3575 = vsub.f32 %v3504, %v3568
        %v3576 = vsub.f32 %v3505, %v3568
        %v3577 = vsub.f32 %v3506, %v3568
        %v3578 = vsub.f32 %v3507, %v3568
        %v3579 = vsub.f32 %v3508, %v3568
        %v3580 = vsub.f32 %v3509, %v3568
        %v3581 = vsub.f32 %v3510, %v3568
        %v3582 = vsub.f32 %v3511, %v3568
        %v3583 = vsub.f32 %v3512, %v3568
        %v3584 = vsub.f32 %v3513, %v3568
        %v3585 = vmul.f32 %v3569, %v3569
        %v3586 = vmul.f32 %v3570, %v3570
        %v3587 = vmul.f32 %v3571, %v3571
        %v3588 = vmul.f32 %v3572, %v3572
        %v3589 = vmul.f32 %v3573, %v3573
        %v3590 = vmul.f32 %v3574, %v3574
        %v3591 = vmul.f32 %v3575, %v3575
        %v3592 = vmul.f32 %v3576, %v3576
        %v3593 = vmul.f32 %v3577, %v3577
        %v3594 = vmul.f32 %v3578, %v3578
        %v3595 = vmul.f32 %v3579, %v3579
        %v3596 = vmul.f32 %v3580, %v3580
        %v3597 = vmul.f32 %v3581, %v3581
        %v3598 = vmul.f32 %v3582, %v3582
        %v3599 = vmul.f32 %v3583, %v3583
        %v3600 = vmul.f32 %v3584, %v3584
        %v3601 = vsel %vm3514, %v3585, 0.0
        %v3602 = vsel %vm3514, %v3586, 0.0
        %v3603 = vadd.f32 %v3601, %v3602
        %v3604 = vsel %vm3514, %v3587, 0.0
        %v3605 = vadd.f32 %v3603, %v3604
        %v3606 = vsel %vm3514, %v3588, 0.0
        %v3607 = vadd.f32 %v3605, %v3606
        %v3608 = vsel %vm3514, %v3589, 0.0
        %v3609 = vadd.f32 %v3607, %v3608
        %v3610 = vsel %vm3514, %v3590, 0.0
        %v3611 = vadd.f32 %v3609, %v3610
        %v3612 = vsel %vm3514, %v3591, 0.0
        %v3613 = vadd.f32 %v3611, %v3612
        %v3614 = vsel %vm3514, %v3592, 0.0
        %v3615 = vadd.f32 %v3613, %v3614
        %v3616 = vsel %vm3514, %v3593, 0.0
        %v3617 = vadd.f32 %v3615, %v3616
        %v3618 = vsel %vm3514, %v3594, 0.0
        %v3619 = vadd.f32 %v3617, %v3618
        %v3620 = vsel %vm3514, %v3595, 0.0
        %v3621 = vadd.f32 %v3619, %v3620
        %v3622 = vsel %vm3514, %v3596, 0.0
        %v3623 = vadd.f32 %v3621, %v3622
        %v3624 = vsel %vm3514, %v3597, 0.0
        %v3625 = vadd.f32 %v3623, %v3624
        %v3626 = vsel %vm3514, %v3598, 0.0
        %v3627 = vadd.f32 %v3625, %v3626
        %v3628 = vsel %vm3514, %v3599, 0.0
        %v3629 = vadd.f32 %v3627, %v3628
        %v3630 = vsel %vm3514, %v3600, 0.0
        %v3631 = vadd.f32 %v3629, %v3630
        %v3632 = vrot.slane %v3631, 4
        %v3633 = vadd.f32 %v3631, %v3632
        %v3634 = vrot.slane %v3633, 2
        %v3635 = vadd.f32 %v3633, %v3634
        %v3636 = vrot.slane %v3635, 1
        %v3637 = vadd.f32 %v3635, %v3636
        %v3638 = vsel %vm381, %v418, 0.0
        %v3640 = vrot.slane %v3638, 6
        %vm3642 = vcmask 1040384
        %v3643 = vsel %vm3642, %v3567, %v3637
        %v3644 = vsel %vm468, %v3643, %v3640
        %vm3645 = vcmask 1042432
        %v3646 = vsel %vm3645, %v3644, 0.0
        %3647 = vst.msk [vmem:[%s219] sm:$0xff] %vm3514, %v3646
        %s3648 = smul.u32 8, %s24
        %p3649 = scmp.lt.s32.totalorder %s23, 1
        %s3650 = scalar_select %p3649, %s23, 1
        %p3651 = scmp.lt.s32.totalorder %s3648, 15
        %s3652 = scalar_select %p3651, %s3648, 15
        %s3653 = smul.addr %s3652, 2
        %s3654 = smul.addr %s3650, 32
        %s3655 = sadd.s32 %s3653, %s3654
        %s3656 = smul.addr %s3655, 8
        %s3657 = scalar_lea.vmem %s3, %s3656
        %s3658 = sand.u32 %s137, 1
        %s3659 = scalar_lea.sflag [#allocation4], %s3658
        %s3660 = sand.u32 %s137, 1
        %s3661 = smul.addr %s3660, 8
        %s3662 = scalar_lea.vmem [#allocation3], %s3661
        // Predicated region
        $region33: #{tpu_custom_call.1} parent=31 // pred_check
          %p3663 = pneg %p119
        $region34: #{tpu_custom_call.1} parent=31 // pred_check_branch
          %3665 = sbr.rel (%p3663) target = $region36
        $region35: #{tpu_custom_call.1} parent=31 // pred_region
          %s3666 = smul.u32 8, %s24
        $region36: #{tpu_custom_call.1} parent=31 // pred_fallthru
          _
        // Predicated region
        $region37: #{tpu_custom_call.1} parent=31 // pred_check
          %p3667 = pneg %p147
        $region38: #{tpu_custom_call.1} parent=31 // pred_check_branch
          %3669 = sbr.rel (%p3667) target = $region40
        $region39: #{tpu_custom_call.1} parent=31 // pred_region
          %3671 = vsyncadd %s3659, 0
          %s3672 = smul.addr %s23, 2
          %s3673 = sadd.s32 %s24, %s3672
          %s3674 = smul.addr %s3673, 8
          %s3675 = scalar_lea.hbm %s4, %s3674
          %s3677 = sshll.u32 %s3662, 4
          %s3678 = int_to_ptr.vmem [resolvable:$true] %s3677
          %s3679 = sshll.u32 %s3675, 4
          %s3680 = int_to_ptr.hbm [resolvable:$true] %s3679
          %3682 = dma.vmem_to_hbm [thread:$0]  %s3678, 128, %s3680, %s3659
        $region40: #{tpu_custom_call.1} parent=31 // pred_fallthru
          _
      $region32: #{tpu_custom_call.1} parent=5 // pred_fallthru
        _
      %p3683 = scmp.le.s32.totalorder 2, %s14
      // Predicated region
      $region41: #{tpu_custom_call.1} parent=5 // pred_check
        %p3684 = pneg %p3683
      $region42: #{tpu_custom_call.1} parent=5 // pred_check_branch
        %3686 = sbr.rel (%p3684) target = $region44
      $region43: #{tpu_custom_call.1} parent=5 // pred_region
        %s3687 = ssub.s32 %s14, 2
        // Predicated region
        $region45: #{tpu_custom_call.1} parent=43 // pred_check
          %p3688 = pneg %p125
        $region46: #{tpu_custom_call.1} parent=43 // pred_check_branch
          %3690 = sbr.rel (%p3688) target = $region48
        $region47: #{tpu_custom_call.1} parent=43 // pred_region
          %s3691 = smul.u32 8, %s26
          %p3692 = scmp.lt.s32.totalorder %s25, 1
          %s3693 = scalar_select %p3692, %s25, 1
          %p3694 = scmp.lt.s32.totalorder %s3691, 15
          %s3695 = scalar_select %p3694, %s3691, 15
          %s3696 = smul.addr %s3695, 2
          %s3697 = smul.addr %s3693, 32
          %s3698 = sadd.s32 %s3696, %s3697
          %s3699 = smul.addr %s3698, 8
          %s3700 = scalar_lea.vmem %s3, %s3699
        $region48: #{tpu_custom_call.1} parent=43 // pred_fallthru
          _
        // Predicated region
        $region49: #{tpu_custom_call.1} parent=43 // pred_check
          %p3701 = pneg %p153
        $region50: #{tpu_custom_call.1} parent=43 // pred_check_branch
          %3703 = sbr.rel (%p3701) target = $region52
        $region51: #{tpu_custom_call.1} parent=43 // pred_region
          %s3704 = sand.u32 %s138, 1
          %s3705 = scalar_lea.sflag [#allocation4], %s3704
          %s3706 = sand.u32 %s138, 1
          %s3707 = smul.addr %s3706, 8
          %s3708 = scalar_lea.vmem [#allocation3], %s3707
          %3710 = dma.done %s3705, 128
        $region52: #{tpu_custom_call.1} parent=43 // pred_fallthru
          _
      $region44: #{tpu_custom_call.1} parent=5 // pred_fallthru
        _
    $region6: #{tpu_custom_call.1} parent=1 // loop_footer
      %s18 = sadd.s32 1, %s14
    $region7: #{tpu_custom_call.1} parent=1 // loop_footer_branch
      %13 = sbr.rel target = $region3
    $region8: #{tpu_custom_call.1} parent=1 // loop_exit
      _
    %3711 = vsyncpa [#allocation4], 1
    %s3712 = scalar_lea.sflag [#allocation4], 1
    %3713 = vsyncpa %s3712, 1

</llo_original>
